<compile_context>
chip_gen: v7x
topology: tpu7x:2x2x1
jax: 0.10.0
libtpu: 0.0.40
codegen_flags: <defaults>
</compile_context>

<pallas_src>
import math

import jax
import jax.numpy as jnp
from jax import lax
from jax.experimental import pallas as pl
from jax.experimental.pallas import tpu as pltpu


# ----------------------------------------------------------------------------
# Fused dense-block kernel (one pallas_call for the whole make_dense block)
# ----------------------------------------------------------------------------
def _make_dense_block_kernel(layer_meta, H, W, C0, mxu_dtype):
    """Builds the kernel body; one batch element per grid step.

    refs = (x_ref, *param_refs, out_ref, pad_ref)
      x_ref   : (1, H, W, C0)       original input channels of this batch element
      params  : per layer:
                  single    : scale1 (1,Cin), shift1 (1,Cin), w3 (9*Cin, g)
                  bottleneck: scale1 (1,Cin), shift1 (1,Cin), w1 (Cin, inter),
                              scale2 (1,inter), shift2 (1,inter), w3 (9*inter, g)
      out_ref : (1, H, W, C_total)  full dense-block output; each layer appends
                                    its growthRate channels in place (no concat)
      pad_ref : (H+2, W+2, C3_max)  conv-input scratch (mxu dtype) with zero halo
    """
    n_params = sum(6 if m["bottleneck"] else 3 for m in layer_meta)

    def kernel(*refs):
        x_ref = refs[0]
        param_refs = refs[1:1 + n_params]
        out_ref = refs[1 + n_params]
        pad_ref = refs[2 + n_params]
        Cp = pad_ref.shape[2]

        # Seed the in-place activation buffer with the block's input channels.
        out_ref[:, :, :, :C0] = x_ref[...]

        # Zero only the 1-wide halo strips; the interior is rewritten every layer.
        # (Re-done each grid step so per-core scratch on megacore is always valid.)
        zrow = jnp.zeros((1, W + 2, Cp), mxu_dtype)
        zcol = jnp.zeros((H + 2, 1, Cp), mxu_dtype)
        pad_ref[0:1, :, :] = zrow
        pad_ref[H + 1:H + 2, :, :] = zrow
        pad_ref[:, 0:1, :] = zcol
        pad_ref[:, W + 1:W + 2, :] = zcol

        idx = 0
        for m in layer_meta:
            c_in, g = m["c_in"], m["growth"]
            # Read the first c_in channels of the in-place buffer: (1, H, W, c_in)
            x = out_ref[:, :, :, :c_in]

            if m["bottleneck"]:
                s1, b1, w1, s2, b2, w3 = param_refs[idx:idx + 6]
                idx += 6
                inter = m["inter"]
                # h = Conv1x1(ReLU(BN1(x))) -- fused, stays in VMEM.
                a1 = jnp.maximum(x * s1[0] + b1[0], 0.0)          # f32 elementwise
                h = jnp.dot(a1.reshape(H * W, c_in).astype(mxu_dtype), w1[...],
                            preferred_element_type=jnp.float32)   # (H*W, inter) f32
                a2 = jnp.maximum(h * s2[0] + b2[0], 0.0).reshape(H, W, inter)
                c3 = inter
            else:
                s1, b1, w3 = param_refs[idx:idx + 3]
                idx += 3
                a2 = jnp.maximum(x * s1[0] + b1[0], 0.0).reshape(H, W, c_in)
                c3 = c_in

            # 3x3 conv as ONE im2col matmul (H*W, 9*c3) x (9*c3, g) on the MXU.
            # Scratch is already in the MXU dtype -> no per-slice casts below.
            pad_ref[1:H + 1, 1:W + 1, :c3] = a2.astype(mxu_dtype)
            cols = [pad_ref[dy:dy + H, dx:dx + W, :c3].reshape(H * W, c3)
                    for dy in range(3) for dx in range(3)]
            col = jnp.concatenate(cols, axis=-1)                     # (H*W, 9*c3)
            new = jnp.dot(col, w3[...], preferred_element_type=jnp.float32)

            # In-place "concat": write the growthRate new channels at offset c_in.
            out_ref[:, :, :, c_in:c_in + g] = (
                new.reshape(1, H, W, g).astype(out_ref.dtype))

    return kernel


# ----------------------------------------------------------------------------
# pallas_call wrapper (NCHW in / NCHW out, PyTorch convention)
# ----------------------------------------------------------------------------
def make_dense_forward(params, x_nchw, mxu_dtype=jnp.bfloat16):
    x = jnp.transpose(x_nchw, (0, 2, 3, 1)).astype(jnp.float32)   # NCHW -> NHWC
    N, H, W, C0 = x.shape

    layer_meta, flat_params = [], []
    c = C0
    for p in params:
        if p["kind"] == "bottleneck":
            inter = p["w1"].shape[0]
            g = p["w2"].shape[0]
            s1, b1 = p["bn1"]
            s2, b2 = p["bn2"]
            w1 = jnp.transpose(p["w1"][:, :, 0, 0], (1, 0))              # (c, inter)
            w3 = jnp.transpose(p["w2"], (2, 3, 1, 0)).reshape(9 * inter, g)
            flat_params += [s1.reshape(1, c), b1.reshape(1, c),
                            w1.astype(mxu_dtype),
                            s2.reshape(1, inter), b2.reshape(1, inter),
                            w3.astype(mxu_dtype)]
            layer_meta.append(dict(bottleneck=True, c_in=c, inter=inter, growth=g))
        else:
            g = p["w1"].shape[0]
            s1, b1 = p["bn1"]
            w3 = jnp.transpose(p["w1"], (2, 3, 1, 0)).reshape(9 * c, g)
            flat_params += [s1.reshape(1, c), b1.reshape(1, c),
                            w3.astype(mxu_dtype)]
            layer_meta.append(dict(bottleneck=False, c_in=c, growth=g))
        c += growth if (growth := g) is None else g   # noqa: keep simple increment
    C_total = c
    C3_max = max(m["inter"] if m["bottleneck"] else m["c_in"] for m in layer_meta)

    kernel = _make_dense_block_kernel(layer_meta, H, W, C0, mxu_dtype)

    in_specs = [pl.BlockSpec((1, H, W, C0), lambda n: (n, 0, 0, 0))]
    for a in flat_params:   # all params are 2-D, grid-invariant (constant index map)
        in_specs.append(pl.BlockSpec(a.shape, lambda n: (0, 0)))

    # VMEM budget: double-buffered in/out blocks + weights + conv scratch (mxu dtype).
    # (Cap at 64 MiB so the same setting is valid on v7x's smaller VMEM.)
    weight_bytes = sum(int(a.size) * a.dtype.itemsize for a in flat_params)
    pad_bytes = jnp.dtype(mxu_dtype).itemsize * (H + 2) * (W + 2) * C3_max
    vmem_est = (2 * 4 * H * W * (C0 + C_total) + 2 * weight_bytes
                + pad_bytes + (4 << 20))
    vmem_limit = int(min(max(vmem_est, 32 << 20), 64 << 20))

    out = pl.pallas_call(
        kernel,
        out_shape=jax.ShapeDtypeStruct((N, H, W, C_total), jnp.float32),
        grid_spec=pltpu.PrefetchScalarGridSpec(
            num_scalar_prefetch=0,
            grid=(N,),
            in_specs=in_specs,
            out_specs=pl.BlockSpec((1, H, W, C_total), lambda n: (n, 0, 0, 0)),
            scratch_shapes=[pltpu.VMEM((H + 2, W + 2, C3_max), mxu_dtype)],
        ),
        compiler_params=pltpu.CompilerParams(
            dimension_semantics=("parallel",),   # v7x: 2 TCs split the batch
            vmem_limit_bytes=vmem_limit,
        ),
    )(x, *flat_params)
    # TODO(synk): for very large H*W (e.g. ImageNet stems) add a spatial tile axis
    # (with a halo re-fetch of the growing buffer) so per-step blocks stay within
    # the v7x VMEM budget; not needed at CIFAR-scale spatial sizes.
    return jnp.transpose(out, (0, 3, 1, 2))   # NHWC -> NCHW


# ----------------------------------------------------------------------------
# Parameter init (deterministic, synthetic)
# ----------------------------------------------------------------------------
def _init_bn(key, c, eps=1e-5):
    kg, kb, km, kv = jax.random.split(key, 4)
    gamma = 1.0 + 0.1 * jax.random.normal(kg, (c,), jnp.float32)
    beta = 0.1 * jax.random.normal(kb, (c,), jnp.float32)
    mean = 0.1 * jax.random.normal(km, (c,), jnp.float32)
    var = 1.0 + 0.1 * jax.random.uniform(kv, (c,), jnp.float32)
    scale = gamma / jnp.sqrt(var + eps)
    shift = beta - mean * scale
    return scale, shift


def init_make_dense_params(key, nChannels, growthRate, nDenseBlocks, bottleneck):
    layers = []
    c = nChannels
    for _ in range(int(nDenseBlocks)):
        if bottleneck:
            inter = 4 * growthRate
            key, k1, k2, kb1, kb2 = jax.random.split(key, 5)
            layers.append(dict(
                kind="bottleneck",
                bn1=_init_bn(kb1, c),
                w1=jax.random.normal(k1, (inter, c, 1, 1), jnp.float32)
                * math.sqrt(2.0 / inter),
                bn2=_init_bn(kb2, inter),
                w2=jax.random.normal(k2, (growthRate, inter, 3, 3), jnp.float32)
                * math.sqrt(2.0 / (9 * growthRate)),
            ))
        else:
            key, k1, kb1 = jax.random.split(key, 3)
            layers.append(dict(
                kind="single",
                bn1=_init_bn(kb1, c),
                w1=jax.random.normal(k1, (growthRate, c, 3, 3), jnp.float32)
                * math.sqrt(2.0 / (9 * growthRate)),
            ))
        c += growthRate
    return layers


# ----------------------------------------------------------------------------
# Pure-JAX reference (for numerical verification)
# ----------------------------------------------------------------------------
def _ref_bn_relu_conv(x_nhwc, scale, shift, w_oihw):
    act = jnp.maximum(x_nhwc * scale + shift, 0.0)
    wk = jnp.transpose(w_oihw, (2, 3, 1, 0))  # OIHW -> HWIO
    return lax.conv_general_dilated(
        act, wk, window_strides=(1, 1), padding="SAME",
        dimension_numbers=("NHWC", "HWIO", "NHWC"))


def make_dense_forward_ref(params, x_nchw):
    x = jnp.transpose(x_nchw, (0, 2, 3, 1)).astype(jnp.float32)
    for p in params:
        if p["kind"] == "bottleneck":
            s1, b1 = p["bn1"]
            h = _ref_bn_relu_conv(x, s1, b1, p["w1"])
            s2, b2 = p["bn2"]
            new = _ref_bn_relu_conv(h, s2, b2, p["w2"])
        else:
            s1, b1 = p["bn1"]
            new = _ref_bn_relu_conv(x, s1, b1, p["w1"])
        x = jnp.concatenate([x, new], axis=-1)
    return jnp.transpose(x, (0, 3, 1, 2))


# ----------------------------------------------------------------------------
if __name__ == "__main__":
    key = jax.random.PRNGKey(0)
    k_in, k_pb, k_ps = jax.random.split(key, 3)

    N, C, H, W = 2, 8, 8, 8          # small NCHW input
    growthRate, nDenseBlocks = 8, 3

    x = jax.random.normal(k_in, (N, C, H, W), jnp.float32)
    C_out = C + growthRate * nDenseBlocks

    # ---- Bottleneck=True path (DenseNet-BC layers) ----
    params_b = init_make_dense_params(k_pb, C, growthRate, nDenseBlocks, bottleneck=True)
    ref_b = make_dense_forward_ref(params_b, x)
    # exactness check with f32 MXU operands
    out_b32 = jax.block_until_ready(make_dense_forward(params_b, x, mxu_dtype=jnp.float32))
    assert out_b32.shape == (N, C_out, H, W)
    assert jnp.allclose(out_b32, ref_b, atol=1e-4, rtol=1e-4)
    # default performance mode: bf16 MXU operands, f32 accumulation (loose tolerance)
    out_b16 = jax.block_until_ready(make_dense_forward(params_b, x, mxu_dtype=jnp.bfloat16))
    assert out_b16.shape == (N, C_out, H, W)
    assert jnp.allclose(out_b16, ref_b, atol=1e-1, rtol=1e-1)

    # ---- Bottleneck=False path (SingleLayer) ----
    params_s = init_make_dense_params(k_ps, C, growthRate, nDenseBlocks, bottleneck=False)
    ref_s = make_dense_forward_ref(params_s, x)
    out_s32 = jax.block_until_ready(make_dense_forward(params_s, x, mxu_dtype=jnp.float32))
    assert out_s32.shape == (N, C_out, H, W)
    assert jnp.allclose(out_s32, ref_s, atol=1e-4, rtol=1e-4)
    out_s16 = jax.block_until_ready(make_dense_forward(params_s, x, mxu_dtype=jnp.bfloat16))
    assert out_s16.shape == (N, C_out, H, W)
    assert jnp.allclose(out_s16, ref_s, atol=1e-1, rtol=1e-1)

    print("KERNEL_OK")
</pallas_src>

<mosaic_0001>
module attributes {stable_mosaic.version = 11 : i64} {
  func.func @kernel(%arg0: i32, %arg1: memref<1x8x8x8xf32, #tpu.memory_space<vmem>>, %arg2: memref<1x8xf32, #tpu.memory_space<vmem>>, %arg3: memref<1x8xf32, #tpu.memory_space<vmem>>, %arg4: memref<8x32xf32, #tpu.memory_space<vmem>>, %arg5: memref<1x32xf32, #tpu.memory_space<vmem>>, %arg6: memref<1x32xf32, #tpu.memory_space<vmem>>, %arg7: memref<288x8xf32, #tpu.memory_space<vmem>>, %arg8: memref<1x16xf32, #tpu.memory_space<vmem>>, %arg9: memref<1x16xf32, #tpu.memory_space<vmem>>, %arg10: memref<16x32xf32, #tpu.memory_space<vmem>>, %arg11: memref<1x32xf32, #tpu.memory_space<vmem>>, %arg12: memref<1x32xf32, #tpu.memory_space<vmem>>, %arg13: memref<288x8xf32, #tpu.memory_space<vmem>>, %arg14: memref<1x24xf32, #tpu.memory_space<vmem>>, %arg15: memref<1x24xf32, #tpu.memory_space<vmem>>, %arg16: memref<24x32xf32, #tpu.memory_space<vmem>>, %arg17: memref<1x32xf32, #tpu.memory_space<vmem>>, %arg18: memref<1x32xf32, #tpu.memory_space<vmem>>, %arg19: memref<288x8xf32, #tpu.memory_space<vmem>>, %arg20: memref<1x8x8x32xf32, #tpu.memory_space<vmem>>, %arg21: memref<10x10x32xf32, #tpu.memory_space<vmem>>) attributes {dimension_semantics = [#tpu.dimension_semantics<parallel>], iteration_bounds = array<i64: 2>, scalar_prefetch = 0 : i64, scratch_operands = 1 : i64, tpu.core_type = #tpu.core_type<tc>, window_params = [{transform_indices = @transform_0, window_bounds = array<i64: 1, 8, 8, 8>}, {pipeline_mode = #tpu.pipeline_mode<synchronous>, transform_indices = @transform_1, window_bounds = array<i64: 1, 8>}, {pipeline_mode = #tpu.pipeline_mode<synchronous>, transform_indices = @transform_2, window_bounds = array<i64: 1, 8>}, {pipeline_mode = #tpu.pipeline_mode<synchronous>, transform_indices = @transform_3, window_bounds = array<i64: 8, 32>}, {pipeline_mode = #tpu.pipeline_mode<synchronous>, transform_indices = @transform_4, window_bounds = array<i64: 1, 32>}, {pipeline_mode = #tpu.pipeline_mode<synchronous>, transform_indices = @transform_5, window_bounds = array<i64: 1, 32>}, {pipeline_mode = #tpu.pipeline_mode<synchronous>, transform_indices = @transform_6, window_bounds = array<i64: 288, 8>}, {pipeline_mode = #tpu.pipeline_mode<synchronous>, transform_indices = @transform_7, window_bounds = array<i64: 1, 16>}, {pipeline_mode = #tpu.pipeline_mode<synchronous>, transform_indices = @transform_8, window_bounds = array<i64: 1, 16>}, {pipeline_mode = #tpu.pipeline_mode<synchronous>, transform_indices = @transform_9, window_bounds = array<i64: 16, 32>}, {pipeline_mode = #tpu.pipeline_mode<synchronous>, transform_indices = @transform_10, window_bounds = array<i64: 1, 32>}, {pipeline_mode = #tpu.pipeline_mode<synchronous>, transform_indices = @transform_11, window_bounds = array<i64: 1, 32>}, {pipeline_mode = #tpu.pipeline_mode<synchronous>, transform_indices = @transform_12, window_bounds = array<i64: 288, 8>}, {pipeline_mode = #tpu.pipeline_mode<synchronous>, transform_indices = @transform_13, window_bounds = array<i64: 1, 24>}, {pipeline_mode = #tpu.pipeline_mode<synchronous>, transform_indices = @transform_14, window_bounds = array<i64: 1, 24>}, {pipeline_mode = #tpu.pipeline_mode<synchronous>, transform_indices = @transform_15, window_bounds = array<i64: 24, 32>}, {pipeline_mode = #tpu.pipeline_mode<synchronous>, transform_indices = @transform_16, window_bounds = array<i64: 1, 32>}, {pipeline_mode = #tpu.pipeline_mode<synchronous>, transform_indices = @transform_17, window_bounds = array<i64: 1, 32>}, {pipeline_mode = #tpu.pipeline_mode<synchronous>, transform_indices = @transform_18, window_bounds = array<i64: 288, 8>}, {transform_indices = @transform_19, window_bounds = array<i64: 1, 8, 8, 32>}]} {
    %c0 = arith.constant 0 : index
    %c0_0 = arith.constant 0 : index
    %c0_1 = arith.constant 0 : index
    %c0_2 = arith.constant 0 : index
    %0 = vector.load %arg1[%c0, %c0_0, %c0_1, %c0_2] : memref<1x8x8x8xf32, #tpu.memory_space<vmem>>, vector<1x8x8x8xf32>
    %c0_3 = arith.constant 0 : index
    %c0_4 = arith.constant 0 : index
    %c0_5 = arith.constant 0 : index
    %c0_6 = arith.constant 0 : index
    %1 = vector.load %arg20[%c0_3, %c0_4, %c0_5, %c0_6] : memref<1x8x8x32xf32, #tpu.memory_space<vmem>>, vector<1x8x8x8xf32>
    tpu.vector_store %arg20[%c0_3, %c0_4, %c0_5, %c0_6], %0 {strides = array<i32>} : memref<1x8x8x32xf32, #tpu.memory_space<vmem>>, vector<1x8x8x8xf32>,
    %cst = arith.constant 0.000000e+00 : f32
    %2 = vector.broadcast %cst : f32 to vector<1x10x32xf32>
    %cst_7 = arith.constant 0.000000e+00 : f32
    %3 = vector.broadcast %cst_7 : f32 to vector<10x1x32xf32>
    %c0_8 = arith.constant 0 : index
    %c0_9 = arith.constant 0 : index
    %c0_10 = arith.constant 0 : index
    %4 = vector.load %arg21[%c0_8, %c0_9, %c0_10] : memref<10x10x32xf32, #tpu.memory_space<vmem>>, vector<1x10x32xf32>
    tpu.vector_store %arg21[%c0_8, %c0_9, %c0_10], %2 {strides = array<i32>} : memref<10x10x32xf32, #tpu.memory_space<vmem>>, vector<1x10x32xf32>,
    %c9 = arith.constant 9 : index
    %c0_11 = arith.constant 0 : index
    %c0_12 = arith.constant 0 : index
    %5 = vector.load %arg21[%c9, %c0_11, %c0_12] : memref<10x10x32xf32, #tpu.memory_space<vmem>>, vector<1x10x32xf32>
    tpu.vector_store %arg21[%c9, %c0_11, %c0_12], %2 {strides = array<i32>} : memref<10x10x32xf32, #tpu.memory_space<vmem>>, vector<1x10x32xf32>,
    %c0_13 = arith.constant 0 : index
    %c0_14 = arith.constant 0 : index
    %c0_15 = arith.constant 0 : index
    %6 = vector.load %arg21[%c0_13, %c0_14, %c0_15] : memref<10x10x32xf32, #tpu.memory_space<vmem>>, vector<10x1x32xf32>
    tpu.vector_store %arg21[%c0_13, %c0_14, %c0_15], %3 {strides = array<i32>} : memref<10x10x32xf32, #tpu.memory_space<vmem>>, vector<10x1x32xf32>,
    %c0_16 = arith.constant 0 : index
    %c9_17 = arith.constant 9 : index
    %c0_18 = arith.constant 0 : index
    %7 = vector.load %arg21[%c0_16, %c9_17, %c0_18] : memref<10x10x32xf32, #tpu.memory_space<vmem>>, vector<10x1x32xf32>
    tpu.vector_store %arg21[%c0_16, %c9_17, %c0_18], %3 {strides = array<i32>} : memref<10x10x32xf32, #tpu.memory_space<vmem>>, vector<10x1x32xf32>,
    %c0_19 = arith.constant 0 : index
    %c0_20 = arith.constant 0 : index
    %c0_21 = arith.constant 0 : index
    %c0_22 = arith.constant 0 : index
    %8 = vector.load %arg20[%c0_19, %c0_20, %c0_21, %c0_22] : memref<1x8x8x32xf32, #tpu.memory_space<vmem>>, vector<1x8x8x8xf32>
    %c0_23 = arith.constant 0 : index
    %c0_24 = arith.constant 0 : index
    %9 = vector.load %arg2[%c0_23, %c0_24] : memref<1x8xf32, #tpu.memory_space<vmem>>, vector<1x8xf32>
    %10 = vector.shape_cast %9 : vector<1x8xf32> to vector<8xf32>
    %11 = vector.shape_cast %10 : vector<8xf32> to vector<1x1x1x8xf32>
    %12 = vector.broadcast %11 : vector<1x1x1x8xf32> to vector<1x8x8x8xf32>
    %13 = arith.mulf %8, %12 : vector<1x8x8x8xf32>
    %c0_25 = arith.constant 0 : index
    %c0_26 = arith.constant 0 : index
    %14 = vector.load %arg3[%c0_25, %c0_26] : memref<1x8xf32, #tpu.memory_space<vmem>>, vector<1x8xf32>
    %15 = vector.shape_cast %14 : vector<1x8xf32> to vector<8xf32>
    %16 = vector.shape_cast %15 : vector<8xf32> to vector<1x1x1x8xf32>
    %17 = vector.broadcast %16 : vector<1x1x1x8xf32> to vector<1x8x8x8xf32>
    %18 = arith.addf %13, %17 : vector<1x8x8x8xf32>
    %cst_27 = arith.constant 0.000000e+00 : f32
    %19 = vector.broadcast %cst_27 : f32 to vector<1x8x8x8xf32>
    %20 = arith.maximumf %18, %19 : vector<1x8x8x8xf32>
    %21 = vector.shape_cast %20 : vector<1x8x8x8xf32> to vector<64x8xf32>
    %c0_28 = arith.constant 0 : index
    %c0_29 = arith.constant 0 : index
    %22 = vector.load %arg4[%c0_28, %c0_29] : memref<8x32xf32, #tpu.memory_space<vmem>>, vector<8x32xf32>
    %cst_30 = arith.constant dense<0.000000e+00> : vector<64x32xf32>
    %23 = tpu.matmul %21, %22, %cst_30 {dimension_numbers = #tpu.dot_dimension_numbers<[1], [0], [0], [1], [0, 0, 1, 1], [], []>} : vector<64x8xf32>, vector<8x32xf32>, vector<64x32xf32> -> vector<64x32xf32>
    %c0_31 = arith.constant 0 : index
    %c0_32 = arith.constant 0 : index
    %24 = vector.load %arg5[%c0_31, %c0_32] : memref<1x32xf32, #tpu.memory_space<vmem>>, vector<1x32xf32>
    %25 = vector.shape_cast %24 : vector<1x32xf32> to vector<32xf32>
    %26 = vector.shape_cast %25 : vector<32xf32> to vector<1x32xf32>
    %27 = vector.broadcast %26 : vector<1x32xf32> to vector<64x32xf32>
    %28 = arith.mulf %23, %27 : vector<64x32xf32>
    %c0_33 = arith.constant 0 : index
    %c0_34 = arith.constant 0 : index
    %29 = vector.load %arg6[%c0_33, %c0_34] : memref<1x32xf32, #tpu.memory_space<vmem>>, vector<1x32xf32>
    %30 = vector.shape_cast %29 : vector<1x32xf32> to vector<32xf32>
    %31 = vector.shape_cast %30 : vector<32xf32> to vector<1x32xf32>
    %32 = vector.broadcast %31 : vector<1x32xf32> to vector<64x32xf32>
    %33 = arith.addf %28, %32 : vector<64x32xf32>
    %cst_35 = arith.constant 0.000000e+00 : f32
    %34 = vector.broadcast %cst_35 : f32 to vector<64x32xf32>
    %35 = arith.maximumf %33, %34 : vector<64x32xf32>
    %36 = vector.shape_cast %35 : vector<64x32xf32> to vector<8x8x32xf32>
    %c1 = arith.constant 1 : index
    %c1_36 = arith.constant 1 : index
    %c0_37 = arith.constant 0 : index
    %37 = vector.load %arg21[%c1, %c1_36, %c0_37] : memref<10x10x32xf32, #tpu.memory_space<vmem>>, vector<8x8x32xf32>
    tpu.vector_store %arg21[%c1, %c1_36, %c0_37], %36 {strides = array<i32>} : memref<10x10x32xf32, #tpu.memory_space<vmem>>, vector<8x8x32xf32>,
    %c0_38 = arith.constant 0 : index
    %c0_39 = arith.constant 0 : index
    %c0_40 = arith.constant 0 : index
    %38 = vector.load %arg21[%c0_38, %c0_39, %c0_40] : memref<10x10x32xf32, #tpu.memory_space<vmem>>, vector<8x8x32xf32>
    %39 = vector.shape_cast %38 : vector<8x8x32xf32> to vector<64x32xf32>
    %c0_41 = arith.constant 0 : index
    %c1_42 = arith.constant 1 : index
    %c0_43 = arith.constant 0 : index
    %40 = vector.load %arg21[%c0_41, %c1_42, %c0_43] : memref<10x10x32xf32, #tpu.memory_space<vmem>>, vector<8x8x32xf32>
    %41 = vector.shape_cast %40 : vector<8x8x32xf32> to vector<64x32xf32>
    %c0_44 = arith.constant 0 : index
    %c2 = arith.constant 2 : index
    %c0_45 = arith.constant 0 : index
    %42 = vector.load %arg21[%c0_44, %c2, %c0_45] : memref<10x10x32xf32, #tpu.memory_space<vmem>>, vector<8x8x32xf32>
    %43 = vector.shape_cast %42 : vector<8x8x32xf32> to vector<64x32xf32>
    %c1_46 = arith.constant 1 : index
    %c0_47 = arith.constant 0 : index
    %c0_48 = arith.constant 0 : index
    %44 = vector.load %arg21[%c1_46, %c0_47, %c0_48] : memref<10x10x32xf32, #tpu.memory_space<vmem>>, vector<8x8x32xf32>
    %45 = vector.shape_cast %44 : vector<8x8x32xf32> to vector<64x32xf32>
    %c1_49 = arith.constant 1 : index
    %c1_50 = arith.constant 1 : index
    %c0_51 = arith.constant 0 : index
    %46 = vector.load %arg21[%c1_49, %c1_50, %c0_51] : memref<10x10x32xf32, #tpu.memory_space<vmem>>, vector<8x8x32xf32>
    %47 = vector.shape_cast %46 : vector<8x8x32xf32> to vector<64x32xf32>
    %c1_52 = arith.constant 1 : index
    %c2_53 = arith.constant 2 : index
    %c0_54 = arith.constant 0 : index
    %48 = vector.load %arg21[%c1_52, %c2_53, %c0_54] : memref<10x10x32xf32, #tpu.memory_space<vmem>>, vector<8x8x32xf32>
    %49 = vector.shape_cast %48 : vector<8x8x32xf32> to vector<64x32xf32>
    %c2_55 = arith.constant 2 : index
    %c0_56 = arith.constant 0 : index
    %c0_57 = arith.constant 0 : index
    %50 = vector.load %arg21[%c2_55, %c0_56, %c0_57] : memref<10x10x32xf32, #tpu.memory_space<vmem>>, vector<8x8x32xf32>
    %51 = vector.shape_cast %50 : vector<8x8x32xf32> to vector<64x32xf32>
    %c2_58 = arith.constant 2 : index
    %c1_59 = arith.constant 1 : index
    %c0_60 = arith.constant 0 : index
    %52 = vector.load %arg21[%c2_58, %c1_59, %c0_60] : memref<10x10x32xf32, #tpu.memory_space<vmem>>, vector<8x8x32xf32>
    %53 = vector.shape_cast %52 : vector<8x8x32xf32> to vector<64x32xf32>
    %c2_61 = arith.constant 2 : index
    %c2_62 = arith.constant 2 : index
    %c0_63 = arith.constant 0 : index
    %54 = vector.load %arg21[%c2_61, %c2_62, %c0_63] : memref<10x10x32xf32, #tpu.memory_space<vmem>>, vector<8x8x32xf32>
    %55 = vector.shape_cast %54 : vector<8x8x32xf32> to vector<64x32xf32>
    %56 = tpu.concatenate %39, %41, %43, %45, %47, %49, %51, %53, %55 in 1 : vector<64x32xf32>, vector<64x32xf32>, vector<64x32xf32>, vector<64x32xf32>, vector<64x32xf32>, vector<64x32xf32>, vector<64x32xf32>, vector<64x32xf32>, vector<64x32xf32> -> vector<64x288xf32>
    %c0_64 = arith.constant 0 : index
    %c0_65 = arith.constant 0 : index
    %57 = vector.load %arg7[%c0_64, %c0_65] : memref<288x8xf32, #tpu.memory_space<vmem>>, vector<288x8xf32>
    %cst_66 = arith.constant dense<0.000000e+00> : vector<64x8xf32>
    %58 = tpu.matmul %56, %57, %cst_66 {dimension_numbers = #tpu.dot_dimension_numbers<[1], [0], [0], [1], [0, 0, 1, 1], [], []>} : vector<64x288xf32>, vector<288x8xf32>, vector<64x8xf32> -> vector<64x8xf32>
    %59 = vector.shape_cast %58 : vector<64x8xf32> to vector<1x8x8x8xf32>
    %c0_67 = arith.constant 0 : index
    %c0_68 = arith.constant 0 : index
    %c0_69 = arith.constant 0 : index
    %c8 = arith.constant 8 : index
    %60 = vector.load %arg20[%c0_67, %c0_68, %c0_69, %c8] : memref<1x8x8x32xf32, #tpu.memory_space<vmem>>, vector<1x8x8x8xf32>
    tpu.vector_store %arg20[%c0_67, %c0_68, %c0_69, %c8], %59 {strides = array<i32>} : memref<1x8x8x32xf32, #tpu.memory_space<vmem>>, vector<1x8x8x8xf32>,
    %c0_70 = arith.constant 0 : index
    %c0_71 = arith.constant 0 : index
    %c0_72 = arith.constant 0 : index
    %c0_73 = arith.constant 0 : index
    %61 = vector.load %arg20[%c0_70, %c0_71, %c0_72, %c0_73] : memref<1x8x8x32xf32, #tpu.memory_space<vmem>>, vector<1x8x8x16xf32>
    %c0_74 = arith.constant 0 : index
    %c0_75 = arith.constant 0 : index
    %62 = vector.load %arg8[%c0_74, %c0_75] : memref<1x16xf32, #tpu.memory_space<vmem>>, vector<1x16xf32>
    %63 = vector.shape_cast %62 : vector<1x16xf32> to vector<16xf32>
    %64 = vector.shape_cast %63 : vector<16xf32> to vector<1x1x1x16xf32>
    %65 = vector.broadcast %64 : vector<1x1x1x16xf32> to vector<1x8x8x16xf32>
    %66 = arith.mulf %61, %65 : vector<1x8x8x16xf32>
    %c0_76 = arith.constant 0 : index
    %c0_77 = arith.constant 0 : index
    %67 = vector.load %arg9[%c0_76, %c0_77] : memref<1x16xf32, #tpu.memory_space<vmem>>, vector<1x16xf32>
    %68 = vector.shape_cast %67 : vector<1x16xf32> to vector<16xf32>
    %69 = vector.shape_cast %68 : vector<16xf32> to vector<1x1x1x16xf32>
    %70 = vector.broadcast %69 : vector<1x1x1x16xf32> to vector<1x8x8x16xf32>
    %71 = arith.addf %66, %70 : vector<1x8x8x16xf32>
    %cst_78 = arith.constant 0.000000e+00 : f32
    %72 = vector.broadcast %cst_78 : f32 to vector<1x8x8x16xf32>
    %73 = arith.maximumf %71, %72 : vector<1x8x8x16xf32>
    %74 = vector.shape_cast %73 : vector<1x8x8x16xf32> to vector<64x16xf32>
    %c0_79 = arith.constant 0 : index
    %c0_80 = arith.constant 0 : index
    %75 = vector.load %arg10[%c0_79, %c0_80] : memref<16x32xf32, #tpu.memory_space<vmem>>, vector<16x32xf32>
    %cst_81 = arith.constant dense<0.000000e+00> : vector<64x32xf32>
    %76 = tpu.matmul %74, %75, %cst_81 {dimension_numbers = #tpu.dot_dimension_numbers<[1], [0], [0], [1], [0, 0, 1, 1], [], []>} : vector<64x16xf32>, vector<16x32xf32>, vector<64x32xf32> -> vector<64x32xf32>
    %c0_82 = arith.constant 0 : index
    %c0_83 = arith.constant 0 : index
    %77 = vector.load %arg11[%c0_82, %c0_83] : memref<1x32xf32, #tpu.memory_space<vmem>>, vector<1x32xf32>
    %78 = vector.shape_cast %77 : vector<1x32xf32> to vector<32xf32>
    %79 = vector.shape_cast %78 : vector<32xf32> to vector<1x32xf32>
    %80 = vector.broadcast %79 : vector<1x32xf32> to vector<64x32xf32>
    %81 = arith.mulf %76, %80 : vector<64x32xf32>
    %c0_84 = arith.constant 0 : index
    %c0_85 = arith.constant 0 : index
    %82 = vector.load %arg12[%c0_84, %c0_85] : memref<1x32xf32, #tpu.memory_space<vmem>>, vector<1x32xf32>
    %83 = vector.shape_cast %82 : vector<1x32xf32> to vector<32xf32>
    %84 = vector.shape_cast %83 : vector<32xf32> to vector<1x32xf32>
    %85 = vector.broadcast %84 : vector<1x32xf32> to vector<64x32xf32>
    %86 = arith.addf %81, %85 : vector<64x32xf32>
    %cst_86 = arith.constant 0.000000e+00 : f32
    %87 = vector.broadcast %cst_86 : f32 to vector<64x32xf32>
    %88 = arith.maximumf %86, %87 : vector<64x32xf32>
    %89 = vector.shape_cast %88 : vector<64x32xf32> to vector<8x8x32xf32>
    %c1_87 = arith.constant 1 : index
    %c1_88 = arith.constant 1 : index
    %c0_89 = arith.constant 0 : index
    %90 = vector.load %arg21[%c1_87, %c1_88, %c0_89] : memref<10x10x32xf32, #tpu.memory_space<vmem>>, vector<8x8x32xf32>
    tpu.vector_store %arg21[%c1_87, %c1_88, %c0_89], %89 {strides = array<i32>} : memref<10x10x32xf32, #tpu.memory_space<vmem>>, vector<8x8x32xf32>,
    %c0_90 = arith.constant 0 : index
    %c0_91 = arith.constant 0 : index
    %c0_92 = arith.constant 0 : index
    %91 = vector.load %arg21[%c0_90, %c0_91, %c0_92] : memref<10x10x32xf32, #tpu.memory_space<vmem>>, vector<8x8x32xf32>
    %92 = vector.shape_cast %91 : vector<8x8x32xf32> to vector<64x32xf32>
    %c0_93 = arith.constant 0 : index
    %c1_94 = arith.constant 1 : index
    %c0_95 = arith.constant 0 : index
    %93 = vector.load %arg21[%c0_93, %c1_94, %c0_95] : memref<10x10x32xf32, #tpu.memory_space<vmem>>, vector<8x8x32xf32>
    %94 = vector.shape_cast %93 : vector<8x8x32xf32> to vector<64x32xf32>
    %c0_96 = arith.constant 0 : index
    %c2_97 = arith.constant 2 : index
    %c0_98 = arith.constant 0 : index
    %95 = vector.load %arg21[%c0_96, %c2_97, %c0_98] : memref<10x10x32xf32, #tpu.memory_space<vmem>>, vector<8x8x32xf32>
    %96 = vector.shape_cast %95 : vector<8x8x32xf32> to vector<64x32xf32>
    %c1_99 = arith.constant 1 : index
    %c0_100 = arith.constant 0 : index
    %c0_101 = arith.constant 0 : index
    %97 = vector.load %arg21[%c1_99, %c0_100, %c0_101] : memref<10x10x32xf32, #tpu.memory_space<vmem>>, vector<8x8x32xf32>
    %98 = vector.shape_cast %97 : vector<8x8x32xf32> to vector<64x32xf32>
    %c1_102 = arith.constant 1 : index
    %c1_103 = arith.constant 1 : index
    %c0_104 = arith.constant 0 : index
    %99 = vector.load %arg21[%c1_102, %c1_103, %c0_104] : memref<10x10x32xf32, #tpu.memory_space<vmem>>, vector<8x8x32xf32>
    %100 = vector.shape_cast %99 : vector<8x8x32xf32> to vector<64x32xf32>
    %c1_105 = arith.constant 1 : index
    %c2_106 = arith.constant 2 : index
    %c0_107 = arith.constant 0 : index
    %101 = vector.load %arg21[%c1_105, %c2_106, %c0_107] : memref<10x10x32xf32, #tpu.memory_space<vmem>>, vector<8x8x32xf32>
    %102 = vector.shape_cast %101 : vector<8x8x32xf32> to vector<64x32xf32>
    %c2_108 = arith.constant 2 : index
    %c0_109 = arith.constant 0 : index
    %c0_110 = arith.constant 0 : index
    %103 = vector.load %arg21[%c2_108, %c0_109, %c0_110] : memref<10x10x32xf32, #tpu.memory_space<vmem>>, vector<8x8x32xf32>
    %104 = vector.shape_cast %103 : vector<8x8x32xf32> to vector<64x32xf32>
    %c2_111 = arith.constant 2 : index
    %c1_112 = arith.constant 1 : index
    %c0_113 = arith.constant 0 : index
    %105 = vector.load %arg21[%c2_111, %c1_112, %c0_113] : memref<10x10x32xf32, #tpu.memory_space<vmem>>, vector<8x8x32xf32>
    %106 = vector.shape_cast %105 : vector<8x8x32xf32> to vector<64x32xf32>
    %c2_114 = arith.constant 2 : index
    %c2_115 = arith.constant 2 : index
    %c0_116 = arith.constant 0 : index
    %107 = vector.load %arg21[%c2_114, %c2_115, %c0_116] : memref<10x10x32xf32, #tpu.memory_space<vmem>>, vector<8x8x32xf32>
    %108 = vector.shape_cast %107 : vector<8x8x32xf32> to vector<64x32xf32>
    %109 = tpu.concatenate %92, %94, %96, %98, %100, %102, %104, %106, %108 in 1 : vector<64x32xf32>, vector<64x32xf32>, vector<64x32xf32>, vector<64x32xf32>, vector<64x32xf32>, vector<64x32xf32>, vector<64x32xf32>, vector<64x32xf32>, vector<64x32xf32> -> vector<64x288xf32>
    %c0_117 = arith.constant 0 : index
    %c0_118 = arith.constant 0 : index
    %110 = vector.load %arg13[%c0_117, %c0_118] : memref<288x8xf32, #tpu.memory_space<vmem>>, vector<288x8xf32>
    %cst_119 = arith.constant dense<0.000000e+00> : vector<64x8xf32>
    %111 = tpu.matmul %109, %110, %cst_119 {dimension_numbers = #tpu.dot_dimension_numbers<[1], [0], [0], [1], [0, 0, 1, 1], [], []>} : vector<64x288xf32>, vector<288x8xf32>, vector<64x8xf32> -> vector<64x8xf32>
    %112 = vector.shape_cast %111 : vector<64x8xf32> to vector<1x8x8x8xf32>
    %c0_120 = arith.constant 0 : index
    %c0_121 = arith.constant 0 : index
    %c0_122 = arith.constant 0 : index
    %c16 = arith.constant 16 : index
    %113 = vector.load %arg20[%c0_120, %c0_121, %c0_122, %c16] : memref<1x8x8x32xf32, #tpu.memory_space<vmem>>, vector<1x8x8x8xf32>
    tpu.vector_store %arg20[%c0_120, %c0_121, %c0_122, %c16], %112 {strides = array<i32>} : memref<1x8x8x32xf32, #tpu.memory_space<vmem>>, vector<1x8x8x8xf32>,
    %c0_123 = arith.constant 0 : index
    %c0_124 = arith.constant 0 : index
    %c0_125 = arith.constant 0 : index
    %c0_126 = arith.constant 0 : index
    %114 = vector.load %arg20[%c0_123, %c0_124, %c0_125, %c0_126] : memref<1x8x8x32xf32, #tpu.memory_space<vmem>>, vector<1x8x8x24xf32>
    %c0_127 = arith.constant 0 : index
    %c0_128 = arith.constant 0 : index
    %115 = vector.load %arg14[%c0_127, %c0_128] : memref<1x24xf32, #tpu.memory_space<vmem>>, vector<1x24xf32>
    %116 = vector.shape_cast %115 : vector<1x24xf32> to vector<24xf32>
    %117 = vector.shape_cast %116 : vector<24xf32> to vector<1x1x1x24xf32>
    %118 = vector.broadcast %117 : vector<1x1x1x24xf32> to vector<1x8x8x24xf32>
    %119 = arith.mulf %114, %118 : vector<1x8x8x24xf32>
    %c0_129 = arith.constant 0 : index
    %c0_130 = arith.constant 0 : index
    %120 = vector.load %arg15[%c0_129, %c0_130] : memref<1x24xf32, #tpu.memory_space<vmem>>, vector<1x24xf32>
    %121 = vector.shape_cast %120 : vector<1x24xf32> to vector<24xf32>
    %122 = vector.shape_cast %121 : vector<24xf32> to vector<1x1x1x24xf32>
    %123 = vector.broadcast %122 : vector<1x1x1x24xf32> to vector<1x8x8x24xf32>
    %124 = arith.addf %119, %123 : vector<1x8x8x24xf32>
    %cst_131 = arith.constant 0.000000e+00 : f32
    %125 = vector.broadcast %cst_131 : f32 to vector<1x8x8x24xf32>
    %126 = arith.maximumf %124, %125 : vector<1x8x8x24xf32>
    %127 = vector.shape_cast %126 : vector<1x8x8x24xf32> to vector<64x24xf32>
    %c0_132 = arith.constant 0 : index
    %c0_133 = arith.constant 0 : index
    %128 = vector.load %arg16[%c0_132, %c0_133] : memref<24x32xf32, #tpu.memory_space<vmem>>, vector<24x32xf32>
    %cst_134 = arith.constant dense<0.000000e+00> : vector<64x32xf32>
    %129 = tpu.matmul %127, %128, %cst_134 {dimension_numbers = #tpu.dot_dimension_numbers<[1], [0], [0], [1], [0, 0, 1, 1], [], []>} : vector<64x24xf32>, vector<24x32xf32>, vector<64x32xf32> -> vector<64x32xf32>
    %c0_135 = arith.constant 0 : index
    %c0_136 = arith.constant 0 : index
    %130 = vector.load %arg17[%c0_135, %c0_136] : memref<1x32xf32, #tpu.memory_space<vmem>>, vector<1x32xf32>
    %131 = vector.shape_cast %130 : vector<1x32xf32> to vector<32xf32>
    %132 = vector.shape_cast %131 : vector<32xf32> to vector<1x32xf32>
    %133 = vector.broadcast %132 : vector<1x32xf32> to vector<64x32xf32>
    %134 = arith.mulf %129, %133 : vector<64x32xf32>
    %c0_137 = arith.constant 0 : index
    %c0_138 = arith.constant 0 : index
    %135 = vector.load %arg18[%c0_137, %c0_138] : memref<1x32xf32, #tpu.memory_space<vmem>>, vector<1x32xf32>
    %136 = vector.shape_cast %135 : vector<1x32xf32> to vector<32xf32>
    %137 = vector.shape_cast %136 : vector<32xf32> to vector<1x32xf32>
    %138 = vector.broadcast %137 : vector<1x32xf32> to vector<64x32xf32>
    %139 = arith.addf %134, %138 : vector<64x32xf32>
    %cst_139 = arith.constant 0.000000e+00 : f32
    %140 = vector.broadcast %cst_139 : f32 to vector<64x32xf32>
    %141 = arith.maximumf %139, %140 : vector<64x32xf32>
    %142 = vector.shape_cast %141 : vector<64x32xf32> to vector<8x8x32xf32>
    %c1_140 = arith.constant 1 : index
    %c1_141 = arith.constant 1 : index
    %c0_142 = arith.constant 0 : index
    %143 = vector.load %arg21[%c1_140, %c1_141, %c0_142] : memref<10x10x32xf32, #tpu.memory_space<vmem>>, vector<8x8x32xf32>
    tpu.vector_store %arg21[%c1_140, %c1_141, %c0_142], %142 {strides = array<i32>} : memref<10x10x32xf32, #tpu.memory_space<vmem>>, vector<8x8x32xf32>,
    %c0_143 = arith.constant 0 : index
    %c0_144 = arith.constant 0 : index
    %c0_145 = arith.constant 0 : index
    %144 = vector.load %arg21[%c0_143, %c0_144, %c0_145] : memref<10x10x32xf32, #tpu.memory_space<vmem>>, vector<8x8x32xf32>
    %145 = vector.shape_cast %144 : vector<8x8x32xf32> to vector<64x32xf32>
    %c0_146 = arith.constant 0 : index
    %c1_147 = arith.constant 1 : index
    %c0_148 = arith.constant 0 : index
    %146 = vector.load %arg21[%c0_146, %c1_147, %c0_148] : memref<10x10x32xf32, #tpu.memory_space<vmem>>, vector<8x8x32xf32>
    %147 = vector.shape_cast %146 : vector<8x8x32xf32> to vector<64x32xf32>
    %c0_149 = arith.constant 0 : index
    %c2_150 = arith.constant 2 : index
    %c0_151 = arith.constant 0 : index
    %148 = vector.load %arg21[%c0_149, %c2_150, %c0_151] : memref<10x10x32xf32, #tpu.memory_space<vmem>>, vector<8x8x32xf32>
    %149 = vector.shape_cast %148 : vector<8x8x32xf32> to vector<64x32xf32>
    %c1_152 = arith.constant 1 : index
    %c0_153 = arith.constant 0 : index
    %c0_154 = arith.constant 0 : index
    %150 = vector.load %arg21[%c1_152, %c0_153, %c0_154] : memref<10x10x32xf32, #tpu.memory_space<vmem>>, vector<8x8x32xf32>
    %151 = vector.shape_cast %150 : vector<8x8x32xf32> to vector<64x32xf32>
    %c1_155 = arith.constant 1 : index
    %c1_156 = arith.constant 1 : index
    %c0_157 = arith.constant 0 : index
    %152 = vector.load %arg21[%c1_155, %c1_156, %c0_157] : memref<10x10x32xf32, #tpu.memory_space<vmem>>, vector<8x8x32xf32>
    %153 = vector.shape_cast %152 : vector<8x8x32xf32> to vector<64x32xf32>
    %c1_158 = arith.constant 1 : index
    %c2_159 = arith.constant 2 : index
    %c0_160 = arith.constant 0 : index
    %154 = vector.load %arg21[%c1_158, %c2_159, %c0_160] : memref<10x10x32xf32, #tpu.memory_space<vmem>>, vector<8x8x32xf32>
    %155 = vector.shape_cast %154 : vector<8x8x32xf32> to vector<64x32xf32>
    %c2_161 = arith.constant 2 : index
    %c0_162 = arith.constant 0 : index
    %c0_163 = arith.constant 0 : index
    %156 = vector.load %arg21[%c2_161, %c0_162, %c0_163] : memref<10x10x32xf32, #tpu.memory_space<vmem>>, vector<8x8x32xf32>
    %157 = vector.shape_cast %156 : vector<8x8x32xf32> to vector<64x32xf32>
    %c2_164 = arith.constant 2 : index
    %c1_165 = arith.constant 1 : index
    %c0_166 = arith.constant 0 : index
    %158 = vector.load %arg21[%c2_164, %c1_165, %c0_166] : memref<10x10x32xf32, #tpu.memory_space<vmem>>, vector<8x8x32xf32>
    %159 = vector.shape_cast %158 : vector<8x8x32xf32> to vector<64x32xf32>
    %c2_167 = arith.constant 2 : index
    %c2_168 = arith.constant 2 : index
    %c0_169 = arith.constant 0 : index
    %160 = vector.load %arg21[%c2_167, %c2_168, %c0_169] : memref<10x10x32xf32, #tpu.memory_space<vmem>>, vector<8x8x32xf32>
    %161 = vector.shape_cast %160 : vector<8x8x32xf32> to vector<64x32xf32>
    %162 = tpu.concatenate %145, %147, %149, %151, %153, %155, %157, %159, %161 in 1 : vector<64x32xf32>, vector<64x32xf32>, vector<64x32xf32>, vector<64x32xf32>, vector<64x32xf32>, vector<64x32xf32>, vector<64x32xf32>, vector<64x32xf32>, vector<64x32xf32> -> vector<64x288xf32>
    %c0_170 = arith.constant 0 : index
    %c0_171 = arith.constant 0 : index
    %163 = vector.load %arg19[%c0_170, %c0_171] : memref<288x8xf32, #tpu.memory_space<vmem>>, vector<288x8xf32>
    %cst_172 = arith.constant dense<0.000000e+00> : vector<64x8xf32>
    %164 = tpu.matmul %162, %163, %cst_172 {dimension_numbers = #tpu.dot_dimension_numbers<[1], [0], [0], [1], [0, 0, 1, 1], [], []>} : vector<64x288xf32>, vector<288x8xf32>, vector<64x8xf32> -> vector<64x8xf32>
    %165 = vector.shape_cast %164 : vector<64x8xf32> to vector<1x8x8x8xf32>
    %c0_173 = arith.constant 0 : index
    %c0_174 = arith.constant 0 : index
    %c0_175 = arith.constant 0 : index
    %c24 = arith.constant 24 : index
    %166 = vector.load %arg20[%c0_173, %c0_174, %c0_175, %c24] : memref<1x8x8x32xf32, #tpu.memory_space<vmem>>, vector<1x8x8x8xf32>
    tpu.vector_store %arg20[%c0_173, %c0_174, %c0_175, %c24], %165 {strides = array<i32>} : memref<1x8x8x32xf32, #tpu.memory_space<vmem>>, vector<1x8x8x8xf32>,
    return
  }
  func.func @transform_0(%arg0: i32) -> (i32, i32, i32, i32) {
    %c0_i32 = arith.constant 0 : i32
    %c0_i32_0 = arith.constant 0 : i32
    %c0_i32_1 = arith.constant 0 : i32
    %c0_i32_2 = arith.constant 0 : i32
    return %arg0, %c0_i32, %c0_i32_0, %c0_i32_1 : i32, i32, i32, i32
  }
  func.func @transform_1(%arg0: i32) -> (i32, i32) {
    %c0_i32 = arith.constant 0 : i32
    %c0_i32_0 = arith.constant 0 : i32
    %c0_i32_1 = arith.constant 0 : i32
    return %c0_i32, %c0_i32_0 : i32, i32
  }
  func.func @transform_2(%arg0: i32) -> (i32, i32) {
    %c0_i32 = arith.constant 0 : i32
    %c0_i32_0 = arith.constant 0 : i32
    %c0_i32_1 = arith.constant 0 : i32
    return %c0_i32, %c0_i32_0 : i32, i32
  }
  func.func @transform_3(%arg0: i32) -> (i32, i32) {
    %c0_i32 = arith.constant 0 : i32
    %c0_i32_0 = arith.constant 0 : i32
    %c0_i32_1 = arith.constant 0 : i32
    return %c0_i32, %c0_i32_0 : i32, i32
  }
  func.func @transform_4(%arg0: i32) -> (i32, i32) {
    %c0_i32 = arith.constant 0 : i32
    %c0_i32_0 = arith.constant 0 : i32
    %c0_i32_1 = arith.constant 0 : i32
    return %c0_i32, %c0_i32_0 : i32, i32
  }
  func.func @transform_5(%arg0: i32) -> (i32, i32) {
    %c0_i32 = arith.constant 0 : i32
    %c0_i32_0 = arith.constant 0 : i32
    %c0_i32_1 = arith.constant 0 : i32
    return %c0_i32, %c0_i32_0 : i32, i32
  }
  func.func @transform_6(%arg0: i32) -> (i32, i32) {
    %c0_i32 = arith.constant 0 : i32
    %c0_i32_0 = arith.constant 0 : i32
    %c0_i32_1 = arith.constant 0 : i32
    return %c0_i32, %c0_i32_0 : i32, i32
  }
  func.func @transform_7(%arg0: i32) -> (i32, i32) {
    %c0_i32 = arith.constant 0 : i32
    %c0_i32_0 = arith.constant 0 : i32
    %c0_i32_1 = arith.constant 0 : i32
    return %c0_i32, %c0_i32_0 : i32, i32
  }
  func.func @transform_8(%arg0: i32) -> (i32, i32) {
    %c0_i32 = arith.constant 0 : i32
    %c0_i32_0 = arith.constant 0 : i32
    %c0_i32_1 = arith.constant 0 : i32
    return %c0_i32, %c0_i32_0 : i32, i32
  }
  func.func @transform_9(%arg0: i32) -> (i32, i32) {
    %c0_i32 = arith.constant 0 : i32
    %c0_i32_0 = arith.constant 0 : i32
    %c0_i32_1 = arith.constant 0 : i32
    return %c0_i32, %c0_i32_0 : i32, i32
  }
  func.func @transform_10(%arg0: i32) -> (i32, i32) {
    %c0_i32 = arith.constant 0 : i32
    %c0_i32_0 = arith.constant 0 : i32
    %c0_i32_1 = arith.constant 0 : i32
    return %c0_i32, %c0_i32_0 : i32, i32
  }
  func.func @transform_11(%arg0: i32) -> (i32, i32) {
    %c0_i32 = arith.constant 0 : i32
    %c0_i32_0 = arith.constant 0 : i32
    %c0_i32_1 = arith.constant 0 : i32
    return %c0_i32, %c0_i32_0 : i32, i32
  }
  func.func @transform_12(%arg0: i32) -> (i32, i32) {
    %c0_i32 = arith.constant 0 : i32
    %c0_i32_0 = arith.constant 0 : i32
    %c0_i32_1 = arith.constant 0 : i32
    return %c0_i32, %c0_i32_0 : i32, i32
  }
  func.func @transform_13(%arg0: i32) -> (i32, i32) {
    %c0_i32 = arith.constant 0 : i32
    %c0_i32_0 = arith.constant 0 : i32
    %c0_i32_1 = arith.constant 0 : i32
    return %c0_i32, %c0_i32_0 : i32, i32
  }
  func.func @transform_14(%arg0: i32) -> (i32, i32) {
    %c0_i32 = arith.constant 0 : i32
    %c0_i32_0 = arith.constant 0 : i32
    %c0_i32_1 = arith.constant 0 : i32
    return %c0_i32, %c0_i32_0 : i32, i32
  }
  func.func @transform_15(%arg0: i32) -> (i32, i32) {
    %c0_i32 = arith.constant 0 : i32
    %c0_i32_0 = arith.constant 0 : i32
    %c0_i32_1 = arith.constant 0 : i32
    return %c0_i32, %c0_i32_0 : i32, i32
  }
  func.func @transform_16(%arg0: i32) -> (i32, i32) {
    %c0_i32 = arith.constant 0 : i32
    %c0_i32_0 = arith.constant 0 : i32
    %c0_i32_1 = arith.constant 0 : i32
    return %c0_i32, %c0_i32_0 : i32, i32
  }
  func.func @transform_17(%arg0: i32) -> (i32, i32) {
    %c0_i32 = arith.constant 0 : i32
    %c0_i32_0 = arith.constant 0 : i32
    %c0_i32_1 = arith.constant 0 : i32
    return %c0_i32, %c0_i32_0 : i32, i32
  }
  func.func @transform_18(%arg0: i32) -> (i32, i32) {
    %c0_i32 = arith.constant 0 : i32
    %c0_i32_0 = arith.constant 0 : i32
    %c0_i32_1 = arith.constant 0 : i32
    return %c0_i32, %c0_i32_0 : i32, i32
  }
  func.func @transform_19(%arg0: i32) -> (i32, i32, i32, i32) {
    %c0_i32 = arith.constant 0 : i32
    %c0_i32_0 = arith.constant 0 : i32
    %c0_i32_1 = arith.constant 0 : i32
    %c0_i32_2 = arith.constant 0 : i32
    return %arg0, %c0_i32, %c0_i32_0, %c0_i32_1 : i32, i32, i32, i32
  }
}

</mosaic_0001>

<llo_original>
// kernel: tpu_custom_call.1
$region0: #{tpu_custom_call.1}
  #allocation0 [shape = 'u32[]', space=smem, size = 0x4, offset = 0x4, fixed_abs, tag = 'smem constant byte address 0x4 - core index']
  #allocation1 [shape = 'u32[144,128]{1,0:T(1,128)}', space=vmem, size = 0x12000, scoped, tag = 'internal scratch']
  #allocation2 [shape = 'f32[10,10,32]{2,1,0:T(8,128)}', space=vmem, size = 0x14000, scoped, tag = 'scratch operand']
  %s0 = inlined_call_operand.vmem [shape: f32[2,8,8,8], index: 0, kind: input, shape index: {}]
  %s1 = inlined_call_operand.vmem [shape: f32[1,8], index: 1, kind: input, shape index: {}]
  %s2 = inlined_call_operand.vmem [shape: f32[1,8], index: 2, kind: input, shape index: {}]
  %s3 = inlined_call_operand.vmem [shape: f32[8,32], index: 3, kind: input, shape index: {}]
  %s4 = inlined_call_operand.vmem [shape: f32[1,32], index: 4, kind: input, shape index: {}]
  %s5 = inlined_call_operand.vmem [shape: f32[1,32], index: 5, kind: input, shape index: {}]
  %s6 = inlined_call_operand.vmem [shape: f32[288,8], index: 6, kind: input, shape index: {}]
  %s7 = inlined_call_operand.vmem [shape: f32[1,16], index: 7, kind: input, shape index: {}]
  %s8 = inlined_call_operand.vmem [shape: f32[1,16], index: 8, kind: input, shape index: {}]
  %s9 = inlined_call_operand.vmem [shape: f32[16,32], index: 9, kind: input, shape index: {}]
  %s10 = inlined_call_operand.vmem [shape: f32[1,32], index: 10, kind: input, shape index: {}]
  %s11 = inlined_call_operand.vmem [shape: f32[1,32], index: 11, kind: input, shape index: {}]
  %s12 = inlined_call_operand.vmem [shape: f32[288,8], index: 12, kind: input, shape index: {}]
  %s13 = inlined_call_operand.vmem [shape: f32[1,24], index: 13, kind: input, shape index: {}]
  %s14 = inlined_call_operand.vmem [shape: f32[1,24], index: 14, kind: input, shape index: {}]
  %s15 = inlined_call_operand.vmem [shape: f32[24,32], index: 15, kind: input, shape index: {}]
  %s16 = inlined_call_operand.vmem [shape: f32[1,32], index: 16, kind: input, shape index: {}]
  %s17 = inlined_call_operand.vmem [shape: f32[1,32], index: 17, kind: input, shape index: {}]
  %s18 = inlined_call_operand.vmem [shape: f32[288,8], index: 18, kind: input, shape index: {}]
  %s19 = inlined_call_operand.hbm [shape: f32[2,8,8,32], index: 19, kind: output, shape index: {}]
  %s20 = sld [smem:[#allocation0]]
  $region109: #{tpu_custom_call.1} parent=0
    _
  %s22 = ssub.s32 1, %s20
  %s23 = scalar_select 0, %s22, %s20
  $region1: #{tpu_custom_call.1} parent=0
    #allocation3 [shape = 'u8[65536]{0}', space=vmem, size = 0x10000, scoped, tag = 'output window, operand 0']
    #allocation4 [shape = 's32[2]{0}', space=sflag, size = 0x8, scoped, tag = 'scoped memory for tpu_custom_call.1']
    %24 = vsyncpa [#allocation4], 0
    %s25 = scalar_lea.sflag [#allocation4], 1
    %26 = vsyncpa %s25, 0
    loop: start=0, step=1, limit=4
    $region2: #{tpu_custom_call.1} parent=1 // loop_pre_header
      _
    $region3: #{tpu_custom_call.1} parent=1 // loop_header
      %s28 = sphi 0, %s32
      %p29 = scmp.ge.s32.totalorder %s28, 4
      %s38 = sphi 0, %s40
      %s41 = sphi 0, %s38
      %s42 = sphi 0, %s41
      %s58 = sphi 0, %s42
      %s62 = sphi 0, %s62
      %s64 = sphi 0, %s62
      %s65 = sphi 0, %s64
      %s79 = sphi 0, %s65
      %s83 = sphi 0, %s83
      %s85 = sphi 0, %s83
      %s86 = sphi 0, %s85
      %s100 = sphi 0, %s86
      %s104 = sphi 0, %s104
      %s106 = sphi 0, %s104
      %s107 = sphi 0, %s106
      %s121 = sphi 0, %s107
      %s125 = sphi 0, %s125
      %s127 = sphi 0, %s125
      %s128 = sphi 0, %s127
      %s142 = sphi 0, %s128
      %s146 = sphi 0, %s146
      %s148 = sphi 0, %s146
      %s149 = sphi 0, %s148
      %s163 = sphi 0, %s149
      %s167 = sphi 0, %s167
      %s169 = sphi 0, %s167
      %s170 = sphi 0, %s169
      %s184 = sphi 0, %s170
      %s188 = sphi 0, %s188
      %s190 = sphi 0, %s188
      %s191 = sphi 0, %s190
      %s205 = sphi 0, %s191
      %s209 = sphi 0, %s209
      %s211 = sphi 0, %s209
      %s212 = sphi 0, %s211
      %s226 = sphi 0, %s212
      %s230 = sphi 0, %s230
      %s232 = sphi 0, %s230
      %s233 = sphi 0, %s232
      %s247 = sphi 0, %s233
      %s251 = sphi 0, %s251
      %s253 = sphi 0, %s251
      %s254 = sphi 0, %s253
      %s268 = sphi 0, %s254
      %s272 = sphi 0, %s272
      %s274 = sphi 0, %s272
      %s275 = sphi 0, %s274
      %s289 = sphi 0, %s275
      %s293 = sphi 0, %s293
      %s295 = sphi 0, %s293
      %s296 = sphi 0, %s295
      %s310 = sphi 0, %s296
      %s314 = sphi 0, %s314
      %s316 = sphi 0, %s314
      %s317 = sphi 0, %s316
      %s331 = sphi 0, %s317
      %s335 = sphi 0, %s335
      %s337 = sphi 0, %s335
      %s338 = sphi 0, %s337
      %s352 = sphi 0, %s338
      %s356 = sphi 0, %s356
      %s358 = sphi 0, %s356
      %s359 = sphi 0, %s358
      %s373 = sphi 0, %s359
      %s377 = sphi 0, %s377
      %s379 = sphi 0, %s377
      %s380 = sphi 0, %s379
      %s394 = sphi 0, %s380
      %s398 = sphi 0, %s398
      %s400 = sphi 0, %s398
      %s401 = sphi 0, %s400
      %s415 = sphi 0, %s401
      %s419 = sphi 0, %s419
      %s421 = sphi 0, %s419
      %s422 = sphi 0, %s421
      %s436 = sphi 0, %s422
      %s442 = sphi 0, %s444
      %s445 = sphi 0, %s442
      %s446 = sphi 0, %s445
      %s462 = sphi 0, %s446
    $region4: #{tpu_custom_call.1} parent=1 // loop_header_branch
      %31 = sbr.rel (%p29) target = $region8
    $region5: #{tpu_custom_call.1} parent=1 // loop_body
      %s33 = ssub.s32 %s28, 1
      %s34 = ssub.s32 %s28, 2
      %s35 = sadd.s32 %s28, 1
      %s36 = ssub.s32 %s28, %s35
      %p37 = scmp.eq.s32.totalorder %s36, 0
      %s39 = sadd.s32 %s38, 1
      %s40 = scalar_select %p37, %s38, %s39
      %p43 = pneg %p37
      %p44 = scmp.eq.s32.totalorder %s28, 1
      %p45 = por %p43, %p44
      %p46 = scmp.ne.s32.totalorder %s38, %s41
      %p47 = scmp.eq.s32.totalorder %s28, 0
      %p48 = por %p46, %p47
      %p49 = scmp.ne.s32.totalorder %s38, %s41
      %p50 = scmp.eq.s32.totalorder %s33, 1
      %p51 = por %p49, %p50
      %p52 = scmp.ne.s32.totalorder %s41, %s42
      %p53 = scmp.eq.s32.totalorder %s33, 0
      %p54 = por %p52, %p53
      %p55 = scmp.ne.s32.totalorder %s41, %s42
      %p56 = scmp.eq.s32.totalorder %s34, 1
      %p57 = por %p55, %p56
      %p59 = scmp.ne.s32.totalorder %s42, %s58
      %p60 = scmp.eq.s32.totalorder %s34, 0
      %p61 = por %p59, %p60
      %s63 = sadd.s32 %s62, 1
      %p66 = scmp.eq.s32.totalorder %s28, 1
      %p67 = scmp.ne.s32.totalorder %s62, %s64
      %p68 = scmp.eq.s32.totalorder %s28, 0
      %p69 = por %p67, %p68
      %p70 = scmp.ne.s32.totalorder %s62, %s64
      %p71 = scmp.eq.s32.totalorder %s33, 1
      %p72 = por %p70, %p71
      %p73 = scmp.ne.s32.totalorder %s64, %s65
      %p74 = scmp.eq.s32.totalorder %s33, 0
      %p75 = por %p73, %p74
      %p76 = scmp.ne.s32.totalorder %s64, %s65
      %p77 = scmp.eq.s32.totalorder %s34, 1
      %p78 = por %p76, %p77
      %p80 = scmp.ne.s32.totalorder %s65, %s79
      %p81 = scmp.eq.s32.totalorder %s34, 0
      %p82 = por %p80, %p81
      %s84 = sadd.s32 %s83, 1
      %p87 = scmp.eq.s32.totalorder %s28, 1
      %p88 = scmp.ne.s32.totalorder %s83, %s85
      %p89 = scmp.eq.s32.totalorder %s28, 0
      %p90 = por %p88, %p89
      %p91 = scmp.ne.s32.totalorder %s83, %s85
      %p92 = scmp.eq.s32.totalorder %s33, 1
      %p93 = por %p91, %p92
      %p94 = scmp.ne.s32.totalorder %s85, %s86
      %p95 = scmp.eq.s32.totalorder %s33, 0
      %p96 = por %p94, %p95
      %p97 = scmp.ne.s32.totalorder %s85, %s86
      %p98 = scmp.eq.s32.totalorder %s34, 1
      %p99 = por %p97, %p98
      %p101 = scmp.ne.s32.totalorder %s86, %s100
      %p102 = scmp.eq.s32.totalorder %s34, 0
      %p103 = por %p101, %p102
      %s105 = sadd.s32 %s104, 1
      %p108 = scmp.eq.s32.totalorder %s28, 1
      %p109 = scmp.ne.s32.totalorder %s104, %s106
      %p110 = scmp.eq.s32.totalorder %s28, 0
      %p111 = por %p109, %p110
      %p112 = scmp.ne.s32.totalorder %s104, %s106
      %p113 = scmp.eq.s32.totalorder %s33, 1
      %p114 = por %p112, %p113
      %p115 = scmp.ne.s32.totalorder %s106, %s107
      %p116 = scmp.eq.s32.totalorder %s33, 0
      %p117 = por %p115, %p116
      %p118 = scmp.ne.s32.totalorder %s106, %s107
      %p119 = scmp.eq.s32.totalorder %s34, 1
      %p120 = por %p118, %p119
      %p122 = scmp.ne.s32.totalorder %s107, %s121
      %p123 = scmp.eq.s32.totalorder %s34, 0
      %p124 = por %p122, %p123
      %s126 = sadd.s32 %s125, 1
      %p129 = scmp.eq.s32.totalorder %s28, 1
      %p130 = scmp.ne.s32.totalorder %s125, %s127
      %p131 = scmp.eq.s32.totalorder %s28, 0
      %p132 = por %p130, %p131
      %p133 = scmp.ne.s32.totalorder %s125, %s127
      %p134 = scmp.eq.s32.totalorder %s33, 1
      %p135 = por %p133, %p134
      %p136 = scmp.ne.s32.totalorder %s127, %s128
      %p137 = scmp.eq.s32.totalorder %s33, 0
      %p138 = por %p136, %p137
      %p139 = scmp.ne.s32.totalorder %s127, %s128
      %p140 = scmp.eq.s32.totalorder %s34, 1
      %p141 = por %p139, %p140
      %p143 = scmp.ne.s32.totalorder %s128, %s142
      %p144 = scmp.eq.s32.totalorder %s34, 0
      %p145 = por %p143, %p144
      %s147 = sadd.s32 %s146, 1
      %p150 = scmp.eq.s32.totalorder %s28, 1
      %p151 = scmp.ne.s32.totalorder %s146, %s148
      %p152 = scmp.eq.s32.totalorder %s28, 0
      %p153 = por %p151, %p152
      %p154 = scmp.ne.s32.totalorder %s146, %s148
      %p155 = scmp.eq.s32.totalorder %s33, 1
      %p156 = por %p154, %p155
      %p157 = scmp.ne.s32.totalorder %s148, %s149
      %p158 = scmp.eq.s32.totalorder %s33, 0
      %p159 = por %p157, %p158
      %p160 = scmp.ne.s32.totalorder %s148, %s149
      %p161 = scmp.eq.s32.totalorder %s34, 1
      %p162 = por %p160, %p161
      %p164 = scmp.ne.s32.totalorder %s149, %s163
      %p165 = scmp.eq.s32.totalorder %s34, 0
      %p166 = por %p164, %p165
      %s168 = sadd.s32 %s167, 1
      %p171 = scmp.eq.s32.totalorder %s28, 1
      %p172 = scmp.ne.s32.totalorder %s167, %s169
      %p173 = scmp.eq.s32.totalorder %s28, 0
      %p174 = por %p172, %p173
      %p175 = scmp.ne.s32.totalorder %s167, %s169
      %p176 = scmp.eq.s32.totalorder %s33, 1
      %p177 = por %p175, %p176
      %p178 = scmp.ne.s32.totalorder %s169, %s170
      %p179 = scmp.eq.s32.totalorder %s33, 0
      %p180 = por %p178, %p179
      %p181 = scmp.ne.s32.totalorder %s169, %s170
      %p182 = scmp.eq.s32.totalorder %s34, 1
      %p183 = por %p181, %p182
      %p185 = scmp.ne.s32.totalorder %s170, %s184
      %p186 = scmp.eq.s32.totalorder %s34, 0
      %p187 = por %p185, %p186
      %s189 = sadd.s32 %s188, 1
      %p192 = scmp.eq.s32.totalorder %s28, 1
      %p193 = scmp.ne.s32.totalorder %s188, %s190
      %p194 = scmp.eq.s32.totalorder %s28, 0
      %p195 = por %p193, %p194
      %p196 = scmp.ne.s32.totalorder %s188, %s190
      %p197 = scmp.eq.s32.totalorder %s33, 1
      %p198 = por %p196, %p197
      %p199 = scmp.ne.s32.totalorder %s190, %s191
      %p200 = scmp.eq.s32.totalorder %s33, 0
      %p201 = por %p199, %p200
      %p202 = scmp.ne.s32.totalorder %s190, %s191
      %p203 = scmp.eq.s32.totalorder %s34, 1
      %p204 = por %p202, %p203
      %p206 = scmp.ne.s32.totalorder %s191, %s205
      %p207 = scmp.eq.s32.totalorder %s34, 0
      %p208 = por %p206, %p207
      %s210 = sadd.s32 %s209, 1
      %p213 = scmp.eq.s32.totalorder %s28, 1
      %p214 = scmp.ne.s32.totalorder %s209, %s211
      %p215 = scmp.eq.s32.totalorder %s28, 0
      %p216 = por %p214, %p215
      %p217 = scmp.ne.s32.totalorder %s209, %s211
      %p218 = scmp.eq.s32.totalorder %s33, 1
      %p219 = por %p217, %p218
      %p220 = scmp.ne.s32.totalorder %s211, %s212
      %p221 = scmp.eq.s32.totalorder %s33, 0
      %p222 = por %p220, %p221
      %p223 = scmp.ne.s32.totalorder %s211, %s212
      %p224 = scmp.eq.s32.totalorder %s34, 1
      %p225 = por %p223, %p224
      %p227 = scmp.ne.s32.totalorder %s212, %s226
      %p228 = scmp.eq.s32.totalorder %s34, 0
      %p229 = por %p227, %p228
      %s231 = sadd.s32 %s230, 1
      %p234 = scmp.eq.s32.totalorder %s28, 1
      %p235 = scmp.ne.s32.totalorder %s230, %s232
      %p236 = scmp.eq.s32.totalorder %s28, 0
      %p237 = por %p235, %p236
      %p238 = scmp.ne.s32.totalorder %s230, %s232
      %p239 = scmp.eq.s32.totalorder %s33, 1
      %p240 = por %p238, %p239
      %p241 = scmp.ne.s32.totalorder %s232, %s233
      %p242 = scmp.eq.s32.totalorder %s33, 0
      %p243 = por %p241, %p242
      %p244 = scmp.ne.s32.totalorder %s232, %s233
      %p245 = scmp.eq.s32.totalorder %s34, 1
      %p246 = por %p244, %p245
      %p248 = scmp.ne.s32.totalorder %s233, %s247
      %p249 = scmp.eq.s32.totalorder %s34, 0
      %p250 = por %p248, %p249
      %s252 = sadd.s32 %s251, 1
      %p255 = scmp.eq.s32.totalorder %s28, 1
      %p256 = scmp.ne.s32.totalorder %s251, %s253
      %p257 = scmp.eq.s32.totalorder %s28, 0
      %p258 = por %p256, %p257
      %p259 = scmp.ne.s32.totalorder %s251, %s253
      %p260 = scmp.eq.s32.totalorder %s33, 1
      %p261 = por %p259, %p260
      %p262 = scmp.ne.s32.totalorder %s253, %s254
      %p263 = scmp.eq.s32.totalorder %s33, 0
      %p264 = por %p262, %p263
      %p265 = scmp.ne.s32.totalorder %s253, %s254
      %p266 = scmp.eq.s32.totalorder %s34, 1
      %p267 = por %p265, %p266
      %p269 = scmp.ne.s32.totalorder %s254, %s268
      %p270 = scmp.eq.s32.totalorder %s34, 0
      %p271 = por %p269, %p270
      %s273 = sadd.s32 %s272, 1
      %p276 = scmp.eq.s32.totalorder %s28, 1
      %p277 = scmp.ne.s32.totalorder %s272, %s274
      %p278 = scmp.eq.s32.totalorder %s28, 0
      %p279 = por %p277, %p278
      %p280 = scmp.ne.s32.totalorder %s272, %s274
      %p281 = scmp.eq.s32.totalorder %s33, 1
      %p282 = por %p280, %p281
      %p283 = scmp.ne.s32.totalorder %s274, %s275
      %p284 = scmp.eq.s32.totalorder %s33, 0
      %p285 = por %p283, %p284
      %p286 = scmp.ne.s32.totalorder %s274, %s275
      %p287 = scmp.eq.s32.totalorder %s34, 1
      %p288 = por %p286, %p287
      %p290 = scmp.ne.s32.totalorder %s275, %s289
      %p291 = scmp.eq.s32.totalorder %s34, 0
      %p292 = por %p290, %p291
      %s294 = sadd.s32 %s293, 1
      %p297 = scmp.eq.s32.totalorder %s28, 1
      %p298 = scmp.ne.s32.totalorder %s293, %s295
      %p299 = scmp.eq.s32.totalorder %s28, 0
      %p300 = por %p298, %p299
      %p301 = scmp.ne.s32.totalorder %s293, %s295
      %p302 = scmp.eq.s32.totalorder %s33, 1
      %p303 = por %p301, %p302
      %p304 = scmp.ne.s32.totalorder %s295, %s296
      %p305 = scmp.eq.s32.totalorder %s33, 0
      %p306 = por %p304, %p305
      %p307 = scmp.ne.s32.totalorder %s295, %s296
      %p308 = scmp.eq.s32.totalorder %s34, 1
      %p309 = por %p307, %p308
      %p311 = scmp.ne.s32.totalorder %s296, %s310
      %p312 = scmp.eq.s32.totalorder %s34, 0
      %p313 = por %p311, %p312
      %s315 = sadd.s32 %s314, 1
      %p318 = scmp.eq.s32.totalorder %s28, 1
      %p319 = scmp.ne.s32.totalorder %s314, %s316
      %p320 = scmp.eq.s32.totalorder %s28, 0
      %p321 = por %p319, %p320
      %p322 = scmp.ne.s32.totalorder %s314, %s316
      %p323 = scmp.eq.s32.totalorder %s33, 1
      %p324 = por %p322, %p323
      %p325 = scmp.ne.s32.totalorder %s316, %s317
      %p326 = scmp.eq.s32.totalorder %s33, 0
      %p327 = por %p325, %p326
      %p328 = scmp.ne.s32.totalorder %s316, %s317
      %p329 = scmp.eq.s32.totalorder %s34, 1
      %p330 = por %p328, %p329
      %p332 = scmp.ne.s32.totalorder %s317, %s331
      %p333 = scmp.eq.s32.totalorder %s34, 0
      %p334 = por %p332, %p333
      %s336 = sadd.s32 %s335, 1
      %p339 = scmp.eq.s32.totalorder %s28, 1
      %p340 = scmp.ne.s32.totalorder %s335, %s337
      %p341 = scmp.eq.s32.totalorder %s28, 0
      %p342 = por %p340, %p341
      %p343 = scmp.ne.s32.totalorder %s335, %s337
      %p344 = scmp.eq.s32.totalorder %s33, 1
      %p345 = por %p343, %p344
      %p346 = scmp.ne.s32.totalorder %s337, %s338
      %p347 = scmp.eq.s32.totalorder %s33, 0
      %p348 = por %p346, %p347
      %p349 = scmp.ne.s32.totalorder %s337, %s338
      %p350 = scmp.eq.s32.totalorder %s34, 1
      %p351 = por %p349, %p350
      %p353 = scmp.ne.s32.totalorder %s338, %s352
      %p354 = scmp.eq.s32.totalorder %s34, 0
      %p355 = por %p353, %p354
      %s357 = sadd.s32 %s356, 1
      %p360 = scmp.eq.s32.totalorder %s28, 1
      %p361 = scmp.ne.s32.totalorder %s356, %s358
      %p362 = scmp.eq.s32.totalorder %s28, 0
      %p363 = por %p361, %p362
      %p364 = scmp.ne.s32.totalorder %s356, %s358
      %p365 = scmp.eq.s32.totalorder %s33, 1
      %p366 = por %p364, %p365
      %p367 = scmp.ne.s32.totalorder %s358, %s359
      %p368 = scmp.eq.s32.totalorder %s33, 0
      %p369 = por %p367, %p368
      %p370 = scmp.ne.s32.totalorder %s358, %s359
      %p371 = scmp.eq.s32.totalorder %s34, 1
      %p372 = por %p370, %p371
      %p374 = scmp.ne.s32.totalorder %s359, %s373
      %p375 = scmp.eq.s32.totalorder %s34, 0
      %p376 = por %p374, %p375
      %s378 = sadd.s32 %s377, 1
      %p381 = scmp.eq.s32.totalorder %s28, 1
      %p382 = scmp.ne.s32.totalorder %s377, %s379
      %p383 = scmp.eq.s32.totalorder %s28, 0
      %p384 = por %p382, %p383
      %p385 = scmp.ne.s32.totalorder %s377, %s379
      %p386 = scmp.eq.s32.totalorder %s33, 1
      %p387 = por %p385, %p386
      %p388 = scmp.ne.s32.totalorder %s379, %s380
      %p389 = scmp.eq.s32.totalorder %s33, 0
      %p390 = por %p388, %p389
      %p391 = scmp.ne.s32.totalorder %s379, %s380
      %p392 = scmp.eq.s32.totalorder %s34, 1
      %p393 = por %p391, %p392
      %p395 = scmp.ne.s32.totalorder %s380, %s394
      %p396 = scmp.eq.s32.totalorder %s34, 0
      %p397 = por %p395, %p396
      %s399 = sadd.s32 %s398, 1
      %p402 = scmp.eq.s32.totalorder %s28, 1
      %p403 = scmp.ne.s32.totalorder %s398, %s400
      %p404 = scmp.eq.s32.totalorder %s28, 0
      %p405 = por %p403, %p404
      %p406 = scmp.ne.s32.totalorder %s398, %s400
      %p407 = scmp.eq.s32.totalorder %s33, 1
      %p408 = por %p406, %p407
      %p409 = scmp.ne.s32.totalorder %s400, %s401
      %p410 = scmp.eq.s32.totalorder %s33, 0
      %p411 = por %p409, %p410
      %p412 = scmp.ne.s32.totalorder %s400, %s401
      %p413 = scmp.eq.s32.totalorder %s34, 1
      %p414 = por %p412, %p413
      %p416 = scmp.ne.s32.totalorder %s401, %s415
      %p417 = scmp.eq.s32.totalorder %s34, 0
      %p418 = por %p416, %p417
      %s420 = sadd.s32 %s419, 1
      %p423 = scmp.eq.s32.totalorder %s28, 1
      %p424 = scmp.ne.s32.totalorder %s419, %s421
      %p425 = scmp.eq.s32.totalorder %s28, 0
      %p426 = por %p424, %p425
      %p427 = scmp.ne.s32.totalorder %s419, %s421
      %p428 = scmp.eq.s32.totalorder %s33, 1
      %p429 = por %p427, %p428
      %p430 = scmp.ne.s32.totalorder %s421, %s422
      %p431 = scmp.eq.s32.totalorder %s33, 0
      %p432 = por %p430, %p431
      %p433 = scmp.ne.s32.totalorder %s421, %s422
      %p434 = scmp.eq.s32.totalorder %s34, 1
      %p435 = por %p433, %p434
      %p437 = scmp.ne.s32.totalorder %s422, %s436
      %p438 = scmp.eq.s32.totalorder %s34, 0
      %p439 = por %p437, %p438
      %s440 = ssub.s32 %s28, %s35
      %p441 = scmp.eq.s32.totalorder %s440, 0
      %s443 = sadd.s32 %s442, 1
      %s444 = scalar_select %p441, %s442, %s443
      %p447 = pneg %p441
      %p448 = scmp.eq.s32.totalorder %s28, 1
      %p449 = por %p447, %p448
      %p450 = scmp.ne.s32.totalorder %s442, %s445
      %p451 = scmp.eq.s32.totalorder %s28, 0
      %p452 = por %p450, %p451
      %p453 = scmp.ne.s32.totalorder %s442, %s445
      %p454 = scmp.eq.s32.totalorder %s33, 1
      %p455 = por %p453, %p454
      %p456 = scmp.ne.s32.totalorder %s445, %s446
      %p457 = scmp.eq.s32.totalorder %s33, 0
      %p458 = por %p456, %p457
      %p459 = scmp.ne.s32.totalorder %s445, %s446
      %p460 = scmp.eq.s32.totalorder %s34, 1
      %p461 = por %p459, %p460
      %p463 = scmp.ne.s32.totalorder %s446, %s462
      %p464 = scmp.eq.s32.totalorder %s34, 0
      %p465 = por %p463, %p464
      %p466 = scmp.le.s32.totalorder 1, %s28
      %p467 = scmp.lt.s32.totalorder %s28, 3
      %p468 = pnand %p466, %p467
      %p469 = pneg %p468
      // Predicated region
      $region9: #{tpu_custom_call.1} parent=5 // pred_check
        _
      $region10: #{tpu_custom_call.1} parent=5 // pred_check_branch
        %471 = sbr.rel (%p468) target = $region12
      $region11: #{tpu_custom_call.1} parent=5 // pred_region
        %s472 = ssub.s32 %s28, 1
        // Predicated region
        $region13: #{tpu_custom_call.1} parent=11 // pred_check
          %p473 = pneg %p75
        $region14: #{tpu_custom_call.1} parent=11 // pred_check_branch
          %475 = sbr.rel (%p473) target = $region16
        $region15: #{tpu_custom_call.1} parent=11 // pred_region
          _
        $region16: #{tpu_custom_call.1} parent=11 // pred_fallthru
          _
        // Predicated region
        $region17: #{tpu_custom_call.1} parent=11 // pred_check
          %p476 = pneg %p96
        $region18: #{tpu_custom_call.1} parent=11 // pred_check_branch
          %478 = sbr.rel (%p476) target = $region20
        $region19: #{tpu_custom_call.1} parent=11 // pred_region
          _
        $region20: #{tpu_custom_call.1} parent=11 // pred_fallthru
          _
        // Predicated region
        $region21: #{tpu_custom_call.1} parent=11 // pred_check
          %p479 = pneg %p117
        $region22: #{tpu_custom_call.1} parent=11 // pred_check_branch
          %481 = sbr.rel (%p479) target = $region24
        $region23: #{tpu_custom_call.1} parent=11 // pred_region
          _
        $region24: #{tpu_custom_call.1} parent=11 // pred_fallthru
          _
        // Predicated region
        $region25: #{tpu_custom_call.1} parent=11 // pred_check
          %p482 = pneg %p138
        $region26: #{tpu_custom_call.1} parent=11 // pred_check_branch
          %484 = sbr.rel (%p482) target = $region28
        $region27: #{tpu_custom_call.1} parent=11 // pred_region
          _
        $region28: #{tpu_custom_call.1} parent=11 // pred_fallthru
          _
        // Predicated region
        $region29: #{tpu_custom_call.1} parent=11 // pred_check
          %p485 = pneg %p159
        $region30: #{tpu_custom_call.1} parent=11 // pred_check_branch
          %487 = sbr.rel (%p485) target = $region32
        $region31: #{tpu_custom_call.1} parent=11 // pred_region
          _
        $region32: #{tpu_custom_call.1} parent=11 // pred_fallthru
          _
        // Predicated region
        $region33: #{tpu_custom_call.1} parent=11 // pred_check
          %p488 = pneg %p180
        $region34: #{tpu_custom_call.1} parent=11 // pred_check_branch
          %490 = sbr.rel (%p488) target = $region36
        $region35: #{tpu_custom_call.1} parent=11 // pred_region
          _
        $region36: #{tpu_custom_call.1} parent=11 // pred_fallthru
          _
        // Predicated region
        $region37: #{tpu_custom_call.1} parent=11 // pred_check
          %p491 = pneg %p201
        $region38: #{tpu_custom_call.1} parent=11 // pred_check_branch
          %493 = sbr.rel (%p491) target = $region40
        $region39: #{tpu_custom_call.1} parent=11 // pred_region
          _
        $region40: #{tpu_custom_call.1} parent=11 // pred_fallthru
          _
        // Predicated region
        $region41: #{tpu_custom_call.1} parent=11 // pred_check
          %p494 = pneg %p222
        $region42: #{tpu_custom_call.1} parent=11 // pred_check_branch
          %496 = sbr.rel (%p494) target = $region44
        $region43: #{tpu_custom_call.1} parent=11 // pred_region
          _
        $region44: #{tpu_custom_call.1} parent=11 // pred_fallthru
          _
        // Predicated region
        $region45: #{tpu_custom_call.1} parent=11 // pred_check
          %p497 = pneg %p243
        $region46: #{tpu_custom_call.1} parent=11 // pred_check_branch
          %499 = sbr.rel (%p497) target = $region48
        $region47: #{tpu_custom_call.1} parent=11 // pred_region
          _
        $region48: #{tpu_custom_call.1} parent=11 // pred_fallthru
          _
        // Predicated region
        $region49: #{tpu_custom_call.1} parent=11 // pred_check
          %p500 = pneg %p264
        $region50: #{tpu_custom_call.1} parent=11 // pred_check_branch
          %502 = sbr.rel (%p500) target = $region52
        $region51: #{tpu_custom_call.1} parent=11 // pred_region
          _
        $region52: #{tpu_custom_call.1} parent=11 // pred_fallthru
          _
        // Predicated region
        $region53: #{tpu_custom_call.1} parent=11 // pred_check
          %p503 = pneg %p285
        $region54: #{tpu_custom_call.1} parent=11 // pred_check_branch
          %505 = sbr.rel (%p503) target = $region56
        $region55: #{tpu_custom_call.1} parent=11 // pred_region
          _
        $region56: #{tpu_custom_call.1} parent=11 // pred_fallthru
          _
        // Predicated region
        $region57: #{tpu_custom_call.1} parent=11 // pred_check
          %p506 = pneg %p306
        $region58: #{tpu_custom_call.1} parent=11 // pred_check_branch
          %508 = sbr.rel (%p506) target = $region60
        $region59: #{tpu_custom_call.1} parent=11 // pred_region
          _
        $region60: #{tpu_custom_call.1} parent=11 // pred_fallthru
          _
        // Predicated region
        $region61: #{tpu_custom_call.1} parent=11 // pred_check
          %p509 = pneg %p327
        $region62: #{tpu_custom_call.1} parent=11 // pred_check_branch
          %511 = sbr.rel (%p509) target = $region64
        $region63: #{tpu_custom_call.1} parent=11 // pred_region
          _
        $region64: #{tpu_custom_call.1} parent=11 // pred_fallthru
          _
        // Predicated region
        $region65: #{tpu_custom_call.1} parent=11 // pred_check
          %p512 = pneg %p348
        $region66: #{tpu_custom_call.1} parent=11 // pred_check_branch
          %514 = sbr.rel (%p512) target = $region68
        $region67: #{tpu_custom_call.1} parent=11 // pred_region
          _
        $region68: #{tpu_custom_call.1} parent=11 // pred_fallthru
          _
        // Predicated region
        $region69: #{tpu_custom_call.1} parent=11 // pred_check
          %p515 = pneg %p369
        $region70: #{tpu_custom_call.1} parent=11 // pred_check_branch
          %517 = sbr.rel (%p515) target = $region72
        $region71: #{tpu_custom_call.1} parent=11 // pred_region
          _
        $region72: #{tpu_custom_call.1} parent=11 // pred_fallthru
          _
        // Predicated region
        $region73: #{tpu_custom_call.1} parent=11 // pred_check
          %p518 = pneg %p390
        $region74: #{tpu_custom_call.1} parent=11 // pred_check_branch
          %520 = sbr.rel (%p518) target = $region76
        $region75: #{tpu_custom_call.1} parent=11 // pred_region
          _
        $region76: #{tpu_custom_call.1} parent=11 // pred_fallthru
          _
        // Predicated region
        $region77: #{tpu_custom_call.1} parent=11 // pred_check
          %p521 = pneg %p411
        $region78: #{tpu_custom_call.1} parent=11 // pred_check_branch
          %523 = sbr.rel (%p521) target = $region80
        $region79: #{tpu_custom_call.1} parent=11 // pred_region
          _
        $region80: #{tpu_custom_call.1} parent=11 // pred_fallthru
          _
        // Predicated region
        $region81: #{tpu_custom_call.1} parent=11 // pred_check
          %p524 = pneg %p432
        $region82: #{tpu_custom_call.1} parent=11 // pred_check_branch
          %526 = sbr.rel (%p524) target = $region84
        $region83: #{tpu_custom_call.1} parent=11 // pred_region
          _
        $region84: #{tpu_custom_call.1} parent=11 // pred_fallthru
          _
      $region12: #{tpu_custom_call.1} parent=5 // pred_fallthru
        _
      %p527 = scmp.lt.s32.totalorder %s28, 2
      // Predicated region
      $region85: #{tpu_custom_call.1} parent=5 // pred_check
        %p528 = pneg %p527
      $region86: #{tpu_custom_call.1} parent=5 // pred_check_branch
        %530 = sbr.rel (%p528) target = $region88
      $region87: #{tpu_custom_call.1} parent=5 // pred_region
        // Predicated region
        $region89: #{tpu_custom_call.1} parent=87 // pred_check
          %p531 = pneg %p48
        $region90: #{tpu_custom_call.1} parent=87 // pred_check_branch
          %533 = sbr.rel (%p531) target = $region92
        $region91: #{tpu_custom_call.1} parent=87 // pred_region
          %p534 = scmp.lt.s32.totalorder %s28, 1
          %s535 = scalar_select %p534, %s28, 1
          %s536 = smul.addr %s535, 8
          %s537 = smul.addr %s536, 8
          %s538 = scalar_lea.vmem %s0, %s537
        $region92: #{tpu_custom_call.1} parent=87 // pred_fallthru
          _
      $region88: #{tpu_custom_call.1} parent=5 // pred_fallthru
        _
      %p539 = scmp.le.s32.totalorder 1, %s28
      %p540 = scmp.lt.s32.totalorder %s28, 3
      %p541 = pnand %p539, %p540
      %p542 = pneg %p541
      // Predicated region
      $region93: #{tpu_custom_call.1} parent=5 // pred_check
        _
      $region94: #{tpu_custom_call.1} parent=5 // pred_check_branch
        %544 = sbr.rel (%p541) target = $region96
      $region95: #{tpu_custom_call.1} parent=5 // pred_region
        %s545 = ssub.s32 %s28, 1
        %p546 = scmp.lt.s32.totalorder %s33, 1
        %s547 = scalar_select %p546, %s33, 1
        %s548 = smul.addr %s547, 8
        %s549 = smul.addr %s548, 8
        %s550 = scalar_lea.vmem %s0, %s549
        %p551 = pneg %p54
        %p552 = pneg %p51
        %p553 = pneg %p75
        %p554 = pneg %p72
        %p555 = pneg %p96
        %p556 = pneg %p93
        %p557 = pneg %p117
        %p558 = pneg %p114
        %p559 = pneg %p138
        %p560 = pneg %p135
        %p561 = pneg %p159
        %p562 = pneg %p156
        %p563 = pneg %p180
        %p564 = pneg %p177
        %p565 = pneg %p201
        %p566 = pneg %p198
        %p567 = pneg %p222
        %p568 = pneg %p219
        %p569 = pneg %p243
        %p570 = pneg %p240
        %p571 = pneg %p264
        %p572 = pneg %p261
        %p573 = pneg %p285
        %p574 = pneg %p282
        %p575 = pneg %p306
        %p576 = pneg %p303
        %p577 = pneg %p327
        %p578 = pneg %p324
        %p579 = pneg %p348
        %p580 = pneg %p345
        %p581 = pneg %p369
        %p582 = pneg %p366
        %p583 = pneg %p390
        %p584 = pneg %p387
        %p585 = pneg %p411
        %p586 = pneg %p408
        %p587 = pneg %p432
        %p588 = pneg %p429
        %p589 = pneg %p458
        %p590 = pneg %p455
        %s591 = sand.u32 %s445, 1
        %s592 = scalar_lea.sflag [#allocation4], %s591
        %s593 = sand.u32 %s445, 1
        %s594 = smul.addr %s593, 64
        %s595 = scalar_lea.vmem [#allocation3], %s594
        %p596 = scmp.lt.s32.totalorder %s33, 1
        %s597 = scalar_select %p596, %s33, 1
        %s598 = smul.addr %s597, 8
        %s599 = smul.addr %s598, 8
        %s600 = scalar_lea.vmem %s0, %s599
        %v601 = vld [vmem:[%s600] sm:$0xff]
        %v602 = vld [vmem:[%s600 + $0x8] sm:$0xff]
        %v603 = vld [vmem:[%s600 + $0x10] sm:$0xff]
        %v604 = vld [vmem:[%s600 + $0x18] sm:$0xff]
        %v605 = vld [vmem:[%s600 + $0x20] sm:$0xff]
        %v606 = vld [vmem:[%s600 + $0x28] sm:$0xff]
        %v607 = vld [vmem:[%s600 + $0x30] sm:$0xff]
        %v608 = vld [vmem:[%s600 + $0x38] sm:$0xff]
        %vm609 = vcmask 64512
        %610 = vst.msk [vmem:[%s595] sm:$0xff] %vm609, %v601
        %611 = vst.msk [vmem:[%s595 + $0x8] sm:$0xff] %vm609, %v602
        %612 = vst.msk [vmem:[%s595 + $0x10] sm:$0xff] %vm609, %v603
        %613 = vst.msk [vmem:[%s595 + $0x18] sm:$0xff] %vm609, %v604
        %614 = vst.msk [vmem:[%s595 + $0x20] sm:$0xff] %vm609, %v605
        %615 = vst.msk [vmem:[%s595 + $0x28] sm:$0xff] %vm609, %v606
        %616 = vst.msk [vmem:[%s595 + $0x30] sm:$0xff] %vm609, %v607
        %617 = vst.msk [vmem:[%s595 + $0x38] sm:$0xff] %vm609, %v608
        %vm618 = vcmask 261120
        %619 = vst.msk [vmem:[#allocation2] sm:$0xff] %vm618, 0.0
        %vm620 = vcmask 254976
        %621 = vst.msk [vmem:[#allocation2 + $0x8] sm:$0x3] %vm620, 0.0
        %s622 = scalar_lea.vmem [#allocation2], 144
        %623 = vst.msk [vmem:[%s622] sm:$0xff] %vm618, 0.0
        %624 = vst.msk [vmem:[%s622 + $0x8] sm:$0x3] %vm620, 0.0
        %vm625 = vcmask 253952
        %626 = vst.msk [vmem:[#allocation2] sm:$0x1] %vm625, 0.0
        %627 = vst.msk [vmem:[#allocation2 + $0x10] sm:$0x1] %vm625, 0.0
        %628 = vst.msk [vmem:[#allocation2 + $0x20] sm:$0x1] %vm625, 0.0
        %629 = vst.msk [vmem:[#allocation2 + $0x30] sm:$0x1] %vm625, 0.0
        %630 = vst.msk [vmem:[#allocation2 + $0x40] sm:$0x1] %vm625, 0.0
        %631 = vst.msk [vmem:[#allocation2 + $0x50] sm:$0x1] %vm625, 0.0
        %632 = vst.msk [vmem:[#allocation2 + $0x60] sm:$0x1] %vm625, 0.0
        %633 = vst.msk [vmem:[#allocation2 + $0x70] sm:$0x1] %vm625, 0.0
        %634 = vst.msk [vmem:[#allocation2 + $0x80] sm:$0x1] %vm625, 0.0
        %635 = vst.msk [vmem:[#allocation2 + $0x90] sm:$0x1] %vm625, 0.0
        %636 = vst.msk [vmem:[#allocation2 + $0x9] sm:$0x1] %vm625, 0.0
        %637 = vst.msk [vmem:[#allocation2 + $0x19] sm:$0x1] %vm625, 0.0
        %638 = vst.msk [vmem:[#allocation2 + $0x29] sm:$0x1] %vm625, 0.0
        %639 = vst.msk [vmem:[#allocation2 + $0x39] sm:$0x1] %vm625, 0.0
        %640 = vst.msk [vmem:[#allocation2 + $0x49] sm:$0x1] %vm625, 0.0
        %641 = vst.msk [vmem:[#allocation2 + $0x59] sm:$0x1] %vm625, 0.0
        %642 = vst.msk [vmem:[#allocation2 + $0x69] sm:$0x1] %vm625, 0.0
        %643 = vst.msk [vmem:[#allocation2 + $0x79] sm:$0x1] %vm625, 0.0
        %644 = vst.msk [vmem:[#allocation2 + $0x89] sm:$0x1] %vm625, 0.0
        %645 = vst.msk [vmem:[#allocation2 + $0x99] sm:$0x1] %vm625, 0.0
        %v646 = vld [vmem:[%s595] sm:$0xff]
        %v647 = vld [vmem:[%s595 + $0x8] sm:$0xff]
        %v648 = vld [vmem:[%s595 + $0x10] sm:$0xff]
        %v649 = vld [vmem:[%s595 + $0x18] sm:$0xff]
        %v650 = vld [vmem:[%s595 + $0x20] sm:$0xff]
        %v651 = vld [vmem:[%s595 + $0x28] sm:$0xff]
        %v652 = vld [vmem:[%s595 + $0x30] sm:$0xff]
        %v653 = vld [vmem:[%s595 + $0x38] sm:$0xff]
        %v654 = vld [vmem:[%s1] sm:$0x1]
        %v656 = vlaneseq
        %v657 = vshrl.u32 %v656, 7
        %v658 = vsub.s32 0, %v657
        %v659 = vrot.slane %v654, %v658
        %v661 = vmul.f32 %v646, %v659
        %v662 = vmul.f32 %v647, %v659
        %v663 = vmul.f32 %v648, %v659
        %v664 = vmul.f32 %v649, %v659
        %v665 = vmul.f32 %v650, %v659
        %v666 = vmul.f32 %v651, %v659
        %v667 = vmul.f32 %v652, %v659
        %v668 = vmul.f32 %v653, %v659
        %v669 = vld [vmem:[%s2] sm:$0x1]
        %v671 = vlaneseq
        %v672 = vshrl.u32 %v671, 7
        %v673 = vsub.s32 0, %v672
        %v674 = vrot.slane %v669, %v673
        %v676 = vadd.f32 %v661, %v674
        %v677 = vadd.f32 %v662, %v674
        %v678 = vadd.f32 %v663, %v674
        %v679 = vadd.f32 %v664, %v674
        %v680 = vadd.f32 %v665, %v674
        %v681 = vadd.f32 %v666, %v674
        %v682 = vadd.f32 %v667, %v674
        %v683 = vadd.f32 %v668, %v674
        %v684 = vmax.f32 %v676, 0.0
        %v685 = vmax.f32 %v677, 0.0
        %v686 = vmax.f32 %v678, 0.0
        %v687 = vmax.f32 %v679, 0.0
        %v688 = vmax.f32 %v680, 0.0
        %v689 = vmax.f32 %v681, 0.0
        %v690 = vmax.f32 %v682, 0.0
        %v691 = vmax.f32 %v683, 0.0
        %v692 = vld [vmem:[%s3] sm:$0xff]
        %v694 = vsel %vm609, %v684, 0
        %v697 = vsel %vm609, %v685, 0
        %v700 = vsel %vm609, %v686, 0
        %v703 = vsel %vm609, %v687, 0
        %v706 = vsel %vm609, %v688, 0
        %v709 = vsel %vm609, %v689, 0
        %v712 = vsel %vm609, %v690, 0
        %v715 = vsel %vm609, %v691, 0
        %717 = vmatprep.subr.mxu0 0.0
        %718 = vmatpush1.msra.mxu0 %v692
        %719 = vmatprep.subr.mxu0 0.0
        %720 = vmatpush1.msra.mxu0 0.0
        %721 = vmatprep.subr.mxu0 0.0
        %722 = vmatpush1.msra.mxu0 0.0
        %723 = vmatprep.subr.mxu0 0.0
        %724 = vmatpush1.msra.mxu0 0.0
        %725 = vmatprep.subr.mxu0 0.0
        %726 = vmatpush1.msra.mxu0 0.0
        %727 = vmatprep.subr.mxu0 0.0
        %728 = vmatpush1.msra.mxu0 0.0
        %729 = vmatprep.subr.mxu0 0.0
        %730 = vmatpush1.msra.mxu0 0.0
        %731 = vmatprep.subr.mxu0 0.0
        %732 = vmatpush1.msra.mxu0 0.0
        %733 = vmatprep.subr.mxu0 0.0
        %734 = vmatpush1.msra.mxu0 0.0
        %735 = vmatprep.subr.mxu0 0.0
        %736 = vmatpush1.msra.mxu0 0.0
        %737 = vmatprep.subr.mxu0 0.0
        %738 = vmatpush1.msra.mxu0 0.0
        %739 = vmatprep.subr.mxu0 0.0
        %740 = vmatpush1.msra.mxu0 0.0
        %741 = vmatprep.subr.mxu0 0.0
        %742 = vmatpush1.msra.mxu0 0.0
        %743 = vmatprep.subr.mxu0 0.0
        %744 = vmatpush1.msra.mxu0 0.0
        %745 = vmatprep.subr.mxu0 0.0
        %746 = vmatpush1.msra.mxu0 0.0
        %747 = vmatprep.subr.mxu0 0.0
        %748 = vmatpush1.msra.mxu0 0.0
        %749 = vmatprep.subr.mxu0 0.0
        %750 = vmatpush1.msra.mxu0 0.0
        %751 = vmatprep.subr.mxu0 0.0
        %752 = vmatpush1.msra.mxu0 0.0
        %753 = vmatprep.subr.mxu0 0.0
        %754 = vmatpush1.msra.mxu0 0.0
        %755 = vmatprep.subr.mxu0 0.0
        %756 = vmatpush1.msra.mxu0 0.0
        %757 = vmatprep.subr.mxu0 0.0
        %758 = vmatpush1.msra.mxu0 0.0
        %759 = vmatprep.subr.mxu0 0.0
        %760 = vmatpush1.msra.mxu0 0.0
        %761 = vmatprep.subr.mxu0 0.0
        %762 = vmatpush1.msra.mxu0 0.0
        %763 = vmatprep.subr.mxu0 0.0
        %764 = vmatpush1.msra.mxu0 0.0
        %765 = vmatprep.subr.mxu0 0.0
        %766 = vmatpush1.msra.mxu0 0.0
        %767 = vmatprep.subr.mxu0 0.0
        %768 = vmatpush1.msra.mxu0 0.0
        %769 = vmatprep.subr.mxu0 0.0
        %770 = vmatpush1.msra.mxu0 0.0
        %771 = vmatprep.subr.mxu0 0.0
        %772 = vmatpush1.msra.mxu0 0.0
        %773 = vmatprep.subr.mxu0 0.0
        %774 = vmatpush1.msra.mxu0 0.0
        %775 = vmatprep.subr.mxu0 0.0
        %776 = vmatpush1.msra.mxu0 0.0
        %777 = vmatprep.subr.mxu0 0.0
        %778 = vmatpush1.msra.mxu0 0.0
        %779 = vmatprep.subr.mxu0 0.0
        %780 = vmatpush1.msra.mxu0 0.0
        %781 = vmatprep.mubr.f32.mxu0 0.0
        %782 = vmatmul.mubr.f32.gmra.mrb[0].mxu0 %v694
        %v783 = vpop.f32.mrb[0].mxu0
        %v784 = vadd.f32 0.0, %v783
        %v785 = vpop.f32.mrb[0].mxu0
        %786 = vmatprep.mubr.f32.mxu0 0.0
        %787 = vmatmul.mubr.f32.gmra.mrb[0].mxu0 %v697
        %v788 = vpop.f32.mrb[0].mxu0
        %v789 = vadd.f32 0.0, %v788
        %v790 = vpop.f32.mrb[0].mxu0
        %791 = vmatprep.mubr.f32.mxu0 0.0
        %792 = vmatmul.mubr.f32.gmra.mrb[0].mxu0 %v700
        %v793 = vpop.f32.mrb[0].mxu0
        %v794 = vadd.f32 0.0, %v793
        %v795 = vpop.f32.mrb[0].mxu0
        %796 = vmatprep.mubr.f32.mxu0 0.0
        %797 = vmatmul.mubr.f32.gmra.mrb[0].mxu0 %v703
        %v798 = vpop.f32.mrb[0].mxu0
        %v799 = vadd.f32 0.0, %v798
        %v800 = vpop.f32.mrb[0].mxu0
        %801 = vmatprep.mubr.f32.mxu0 0.0
        %802 = vmatmul.mubr.f32.gmra.mrb[0].mxu0 %v706
        %v803 = vpop.f32.mrb[0].mxu0
        %v804 = vadd.f32 0.0, %v803
        %v805 = vpop.f32.mrb[0].mxu0
        %806 = vmatprep.mubr.f32.mxu0 0.0
        %807 = vmatmul.mubr.f32.gmra.mrb[0].mxu0 %v709
        %v808 = vpop.f32.mrb[0].mxu0
        %v809 = vadd.f32 0.0, %v808
        %v810 = vpop.f32.mrb[0].mxu0
        %811 = vmatprep.mubr.f32.mxu0 0.0
        %812 = vmatmul.mubr.f32.gmra.mrb[0].mxu0 %v712
        %v813 = vpop.f32.mrb[0].mxu0
        %v814 = vadd.f32 0.0, %v813
        %v815 = vpop.f32.mrb[0].mxu0
        %816 = vmatprep.mubr.f32.mxu0 0.0
        %817 = vmatmul.mubr.f32.gmra.mrb[0].mxu0 %v715
        %v818 = vpop.f32.mrb[0].mxu0
        %v819 = vadd.f32 0.0, %v818
        %v820 = vpop.f32.mrb[0].mxu0
        %821 = vdwg.mxu0
        %v822 = vld [vmem:[%s4] sm:$0x1]
        %v824 = vlaneseq
        %v825 = vshrl.u32 %v824, 7
        %v826 = vsub.s32 0, %v825
        %v827 = vrot.slane %v822, %v826
        %v829 = vmul.f32 %v784, %v827
        %v830 = vmul.f32 %v789, %v827
        %v831 = vmul.f32 %v794, %v827
        %v832 = vmul.f32 %v799, %v827
        %v833 = vmul.f32 %v804, %v827
        %v834 = vmul.f32 %v809, %v827
        %v835 = vmul.f32 %v814, %v827
        %v836 = vmul.f32 %v819, %v827
        %v837 = vld [vmem:[%s5] sm:$0x1]
        %v839 = vlaneseq
        %v840 = vshrl.u32 %v839, 7
        %v841 = vsub.s32 0, %v840
        %v842 = vrot.slane %v837, %v841
        %v844 = vadd.f32 %v829, %v842
        %v845 = vadd.f32 %v830, %v842
        %v846 = vadd.f32 %v831, %v842
        %v847 = vadd.f32 %v832, %v842
        %v848 = vadd.f32 %v833, %v842
        %v849 = vadd.f32 %v834, %v842
        %v850 = vadd.f32 %v835, %v842
        %v851 = vadd.f32 %v836, %v842
        %v852 = vmax.f32 %v844, 0.0
        %v853 = vmax.f32 %v845, 0.0
        %v854 = vmax.f32 %v846, 0.0
        %v855 = vmax.f32 %v847, 0.0
        %v856 = vmax.f32 %v848, 0.0
        %v857 = vmax.f32 %v849, 0.0
        %v858 = vmax.f32 %v850, 0.0
        %v859 = vmax.f32 %v851, 0.0
        %s860 = scalar_lea.vmem [#allocation2], 16
        %861 = vst.msk [vmem:[%s860 + $0x1] sm:$0xff] %vm618, %v852
        %862 = vst.msk [vmem:[%s860 + $0x11] sm:$0xff] %vm618, %v853
        %863 = vst.msk [vmem:[%s860 + $0x21] sm:$0xff] %vm618, %v854
        %864 = vst.msk [vmem:[%s860 + $0x31] sm:$0xff] %vm618, %v855
        %865 = vst.msk [vmem:[%s860 + $0x41] sm:$0xff] %vm618, %v856
        %866 = vst.msk [vmem:[%s860 + $0x51] sm:$0xff] %vm618, %v857
        %867 = vst.msk [vmem:[%s860 + $0x61] sm:$0xff] %vm618, %v858
        %868 = vst.msk [vmem:[%s860 + $0x71] sm:$0xff] %vm618, %v859
        %v869 = vld [vmem:[#allocation2] sm:$0xff]
        %v870 = vld [vmem:[#allocation2 + $0x10] sm:$0xff]
        %v871 = vld [vmem:[#allocation2 + $0x20] sm:$0xff]
        %v872 = vld [vmem:[#allocation2 + $0x30] sm:$0xff]
        %v873 = vld [vmem:[#allocation2 + $0x40] sm:$0xff]
        %v874 = vld [vmem:[#allocation2 + $0x50] sm:$0xff]
        %v875 = vld [vmem:[#allocation2 + $0x60] sm:$0xff]
        %v876 = vld [vmem:[#allocation2 + $0x70] sm:$0xff]
        %v877 = vld [vmem:[#allocation2 + $0x1] sm:$0xff]
        %v878 = vld [vmem:[#allocation2 + $0x11] sm:$0xff]
        %v879 = vld [vmem:[#allocation2 + $0x21] sm:$0xff]
        %v880 = vld [vmem:[#allocation2 + $0x31] sm:$0xff]
        %v881 = vld [vmem:[#allocation2 + $0x41] sm:$0xff]
        %v882 = vld [vmem:[#allocation2 + $0x51] sm:$0xff]
        %v883 = vld [vmem:[#allocation2 + $0x61] sm:$0xff]
        %v884 = vld [vmem:[#allocation2 + $0x71] sm:$0xff]
        %v885 = vld [vmem:[#allocation2 + $0x2] sm:$0xff]
        %v886 = vld [vmem:[#allocation2 + $0x12] sm:$0xff]
        %v887 = vld [vmem:[#allocation2 + $0x22] sm:$0xff]
        %v888 = vld [vmem:[#allocation2 + $0x32] sm:$0xff]
        %v889 = vld [vmem:[#allocation2 + $0x42] sm:$0xff]
        %v890 = vld [vmem:[#allocation2 + $0x52] sm:$0xff]
        %v891 = vld [vmem:[#allocation2 + $0x62] sm:$0xff]
        %v892 = vld [vmem:[#allocation2 + $0x72] sm:$0xff]
        %v893 = vld [vmem:[%s860] sm:$0xff]
        %v894 = vld [vmem:[%s860 + $0x10] sm:$0xff]
        %v895 = vld [vmem:[%s860 + $0x20] sm:$0xff]
        %v896 = vld [vmem:[%s860 + $0x30] sm:$0xff]
        %v897 = vld [vmem:[%s860 + $0x40] sm:$0xff]
        %v898 = vld [vmem:[%s860 + $0x50] sm:$0xff]
        %v899 = vld [vmem:[%s860 + $0x60] sm:$0xff]
        %v900 = vld [vmem:[%s860 + $0x70] sm:$0xff]
        %v901 = vld [vmem:[%s860 + $0x1] sm:$0xff]
        %v902 = vld [vmem:[%s860 + $0x11] sm:$0xff]
        %v903 = vld [vmem:[%s860 + $0x21] sm:$0xff]
        %v904 = vld [vmem:[%s860 + $0x31] sm:$0xff]
        %v905 = vld [vmem:[%s860 + $0x41] sm:$0xff]
        %v906 = vld [vmem:[%s860 + $0x51] sm:$0xff]
        %v907 = vld [vmem:[%s860 + $0x61] sm:$0xff]
        %v908 = vld [vmem:[%s860 + $0x71] sm:$0xff]
        %v909 = vld [vmem:[%s860 + $0x2] sm:$0xff]
        %v910 = vld [vmem:[%s860 + $0x12] sm:$0xff]
        %v911 = vld [vmem:[%s860 + $0x22] sm:$0xff]
        %v912 = vld [vmem:[%s860 + $0x32] sm:$0xff]
        %v913 = vld [vmem:[%s860 + $0x42] sm:$0xff]
        %v914 = vld [vmem:[%s860 + $0x52] sm:$0xff]
        %v915 = vld [vmem:[%s860 + $0x62] sm:$0xff]
        %v916 = vld [vmem:[%s860 + $0x72] sm:$0xff]
        %s917 = scalar_lea.vmem [#allocation2], 32
        %v918 = vld [vmem:[%s917] sm:$0xff]
        %v919 = vld [vmem:[%s917 + $0x10] sm:$0xff]
        %v920 = vld [vmem:[%s917 + $0x20] sm:$0xff]
        %v921 = vld [vmem:[%s917 + $0x30] sm:$0xff]
        %v922 = vld [vmem:[%s917 + $0x40] sm:$0xff]
        %v923 = vld [vmem:[%s917 + $0x50] sm:$0xff]
        %v924 = vld [vmem:[%s917 + $0x60] sm:$0xff]
        %v925 = vld [vmem:[%s917 + $0x70] sm:$0xff]
        %v926 = vld [vmem:[%s917 + $0x1] sm:$0xff]
        %v927 = vld [vmem:[%s917 + $0x11] sm:$0xff]
        %v928 = vld [vmem:[%s917 + $0x21] sm:$0xff]
        %v929 = vld [vmem:[%s917 + $0x31] sm:$0xff]
        %v930 = vld [vmem:[%s917 + $0x41] sm:$0xff]
        %v931 = vld [vmem:[%s917 + $0x51] sm:$0xff]
        %v932 = vld [vmem:[%s917 + $0x61] sm:$0xff]
        %v933 = vld [vmem:[%s917 + $0x71] sm:$0xff]
        %v934 = vld [vmem:[%s917 + $0x2] sm:$0xff]
        %v935 = vld [vmem:[%s917 + $0x12] sm:$0xff]
        %v936 = vld [vmem:[%s917 + $0x22] sm:$0xff]
        %v937 = vld [vmem:[%s917 + $0x32] sm:$0xff]
        %v938 = vld [vmem:[%s917 + $0x42] sm:$0xff]
        %v939 = vld [vmem:[%s917 + $0x52] sm:$0xff]
        %v940 = vld [vmem:[%s917 + $0x62] sm:$0xff]
        %v941 = vld [vmem:[%s917 + $0x72] sm:$0xff]
        %950 = vrot.lane.b32.xlu0 %v877, 32
        %v951 = vpop.permute.xlu0 %950
        %952 = vrot.lane.b32.xlu0 %v878, 32
        %v953 = vpop.permute.xlu0 %952
        %954 = vrot.lane.b32.xlu0 %v879, 32
        %v955 = vpop.permute.xlu0 %954
        %956 = vrot.lane.b32.xlu0 %v880, 32
        %v957 = vpop.permute.xlu0 %956
        %958 = vrot.lane.b32.xlu0 %v881, 32
        %v959 = vpop.permute.xlu0 %958
        %960 = vrot.lane.b32.xlu0 %v882, 32
        %v961 = vpop.permute.xlu0 %960
        %962 = vrot.lane.b32.xlu0 %v883, 32
        %v963 = vpop.permute.xlu0 %962
        %964 = vrot.lane.b32.xlu0 %v884, 32
        %v965 = vpop.permute.xlu0 %964
        %982 = vrot.lane.b32.xlu0 %v885, 64
        %v983 = vpop.permute.xlu0 %982
        %984 = vrot.lane.b32.xlu0 %v886, 64
        %v985 = vpop.permute.xlu0 %984
        %986 = vrot.lane.b32.xlu0 %v887, 64
        %v987 = vpop.permute.xlu0 %986
        %988 = vrot.lane.b32.xlu0 %v888, 64
        %v989 = vpop.permute.xlu0 %988
        %990 = vrot.lane.b32.xlu0 %v889, 64
        %v991 = vpop.permute.xlu0 %990
        %992 = vrot.lane.b32.xlu0 %v890, 64
        %v993 = vpop.permute.xlu0 %992
        %994 = vrot.lane.b32.xlu0 %v891, 64
        %v995 = vpop.permute.xlu0 %994
        %996 = vrot.lane.b32.xlu0 %v892, 64
        %v997 = vpop.permute.xlu0 %996
        %1014 = vrot.lane.b32.xlu0 %v893, 96
        %v1015 = vpop.permute.xlu0 %1014
        %1016 = vrot.lane.b32.xlu0 %v894, 96
        %v1017 = vpop.permute.xlu0 %1016
        %1018 = vrot.lane.b32.xlu0 %v895, 96
        %v1019 = vpop.permute.xlu0 %1018
        %1020 = vrot.lane.b32.xlu0 %v896, 96
        %v1021 = vpop.permute.xlu0 %1020
        %1022 = vrot.lane.b32.xlu0 %v897, 96
        %v1023 = vpop.permute.xlu0 %1022
        %1024 = vrot.lane.b32.xlu0 %v898, 96
        %v1025 = vpop.permute.xlu0 %1024
        %1026 = vrot.lane.b32.xlu0 %v899, 96
        %v1027 = vpop.permute.xlu0 %1026
        %1028 = vrot.lane.b32.xlu0 %v900, 96
        %v1029 = vpop.permute.xlu0 %1028
        %1046 = vrot.lane.b32.xlu0 %v909, 32
        %v1047 = vpop.permute.xlu0 %1046
        %1048 = vrot.lane.b32.xlu0 %v910, 32
        %v1049 = vpop.permute.xlu0 %1048
        %1050 = vrot.lane.b32.xlu0 %v911, 32
        %v1051 = vpop.permute.xlu0 %1050
        %1052 = vrot.lane.b32.xlu0 %v912, 32
        %v1053 = vpop.permute.xlu0 %1052
        %1054 = vrot.lane.b32.xlu0 %v913, 32
        %v1055 = vpop.permute.xlu0 %1054
        %1056 = vrot.lane.b32.xlu0 %v914, 32
        %v1057 = vpop.permute.xlu0 %1056
        %1058 = vrot.lane.b32.xlu0 %v915, 32
        %v1059 = vpop.permute.xlu0 %1058
        %1060 = vrot.lane.b32.xlu0 %v916, 32
        %v1061 = vpop.permute.xlu0 %1060
        %1078 = vrot.lane.b32.xlu0 %v918, 64
        %v1079 = vpop.permute.xlu0 %1078
        %1080 = vrot.lane.b32.xlu0 %v919, 64
        %v1081 = vpop.permute.xlu0 %1080
        %1082 = vrot.lane.b32.xlu0 %v920, 64
        %v1083 = vpop.permute.xlu0 %1082
        %1084 = vrot.lane.b32.xlu0 %v921, 64
        %v1085 = vpop.permute.xlu0 %1084
        %1086 = vrot.lane.b32.xlu0 %v922, 64
        %v1087 = vpop.permute.xlu0 %1086
        %1088 = vrot.lane.b32.xlu0 %v923, 64
        %v1089 = vpop.permute.xlu0 %1088
        %1090 = vrot.lane.b32.xlu0 %v924, 64
        %v1091 = vpop.permute.xlu0 %1090
        %1092 = vrot.lane.b32.xlu0 %v925, 64
        %v1093 = vpop.permute.xlu0 %1092
        %1110 = vrot.lane.b32.xlu0 %v926, 96
        %v1111 = vpop.permute.xlu0 %1110
        %1112 = vrot.lane.b32.xlu0 %v927, 96
        %v1113 = vpop.permute.xlu0 %1112
        %1114 = vrot.lane.b32.xlu0 %v928, 96
        %v1115 = vpop.permute.xlu0 %1114
        %1116 = vrot.lane.b32.xlu0 %v929, 96
        %v1117 = vpop.permute.xlu0 %1116
        %1118 = vrot.lane.b32.xlu0 %v930, 96
        %v1119 = vpop.permute.xlu0 %1118
        %1120 = vrot.lane.b32.xlu0 %v931, 96
        %v1121 = vpop.permute.xlu0 %1120
        %1122 = vrot.lane.b32.xlu0 %v932, 96
        %v1123 = vpop.permute.xlu0 %1122
        %1124 = vrot.lane.b32.xlu0 %v933, 96
        %v1125 = vpop.permute.xlu0 %1124
        %v1134 = vsel %vm618, %v869, %v951
        %v1135 = vsel %vm618, %v870, %v953
        %v1136 = vsel %vm618, %v871, %v955
        %v1137 = vsel %vm618, %v872, %v957
        %v1138 = vsel %vm618, %v873, %v959
        %v1139 = vsel %vm618, %v874, %v961
        %v1140 = vsel %vm618, %v875, %v963
        %v1141 = vsel %vm618, %v876, %v965
        %vm1142 = vcmask 523264
        %v1143 = vsel %vm1142, %v1134, %v983
        %v1144 = vsel %vm1142, %v1135, %v985
        %v1145 = vsel %vm1142, %v1136, %v987
        %v1146 = vsel %vm1142, %v1137, %v989
        %v1147 = vsel %vm1142, %v1138, %v991
        %v1148 = vsel %vm1142, %v1139, %v993
        %v1149 = vsel %vm1142, %v1140, %v995
        %v1150 = vsel %vm1142, %v1141, %v997
        %vm1151 = vcmask 785408
        %v1152 = vsel %vm1151, %v1143, %v1015
        %v1153 = vsel %vm1151, %v1144, %v1017
        %v1154 = vsel %vm1151, %v1145, %v1019
        %v1155 = vsel %vm1151, %v1146, %v1021
        %v1156 = vsel %vm1151, %v1147, %v1023
        %v1157 = vsel %vm1151, %v1148, %v1025
        %v1158 = vsel %vm1151, %v1149, %v1027
        %v1159 = vsel %vm1151, %v1150, %v1029
        %v1160 = vsel %vm618, %v901, %v1047
        %v1161 = vsel %vm618, %v902, %v1049
        %v1162 = vsel %vm618, %v903, %v1051
        %v1163 = vsel %vm618, %v904, %v1053
        %v1164 = vsel %vm618, %v905, %v1055
        %v1165 = vsel %vm618, %v906, %v1057
        %v1166 = vsel %vm618, %v907, %v1059
        %v1167 = vsel %vm618, %v908, %v1061
        %v1168 = vsel %vm1142, %v1160, %v1079
        %v1169 = vsel %vm1142, %v1161, %v1081
        %v1170 = vsel %vm1142, %v1162, %v1083
        %v1171 = vsel %vm1142, %v1163, %v1085
        %v1172 = vsel %vm1142, %v1164, %v1087
        %v1173 = vsel %vm1142, %v1165, %v1089
        %v1174 = vsel %vm1142, %v1166, %v1091
        %v1175 = vsel %vm1142, %v1167, %v1093
        %v1176 = vsel %vm1151, %v1168, %v1111
        %v1177 = vsel %vm1151, %v1169, %v1113
        %v1178 = vsel %vm1151, %v1170, %v1115
        %v1179 = vsel %vm1151, %v1171, %v1117
        %v1180 = vsel %vm1151, %v1172, %v1119
        %v1181 = vsel %vm1151, %v1173, %v1121
        %v1182 = vsel %vm1151, %v1174, %v1123
        %v1183 = vsel %vm1151, %v1175, %v1125
        %v1184 = vld [vmem:[%s6] sm:$0xff]
        %v1185 = vld [vmem:[%s6 + $0x8] sm:$0xff]
        %v1186 = vld [vmem:[%s6 + $0x10] sm:$0xff]
        %v1187 = vld [vmem:[%s6 + $0x18] sm:$0xff]
        %v1188 = vld [vmem:[%s6 + $0x20] sm:$0xff]
        %v1189 = vld [vmem:[%s6 + $0x28] sm:$0xff]
        %v1190 = vld [vmem:[%s6 + $0x30] sm:$0xff]
        %v1191 = vld [vmem:[%s6 + $0x38] sm:$0xff]
        %v1192 = vld [vmem:[%s6 + $0x40] sm:$0xff]
        %v1193 = vld [vmem:[%s6 + $0x48] sm:$0xff]
        %v1194 = vld [vmem:[%s6 + $0x50] sm:$0xff]
        %v1195 = vld [vmem:[%s6 + $0x58] sm:$0xff]
        %v1196 = vld [vmem:[%s6 + $0x60] sm:$0xff]
        %v1197 = vld [vmem:[%s6 + $0x68] sm:$0xff]
        %v1198 = vld [vmem:[%s6 + $0x70] sm:$0xff]
        %v1199 = vld [vmem:[%s6 + $0x78] sm:$0xff]
        %v1200 = vld [vmem:[%s6 + $0x80] sm:$0xff]
        %v1201 = vld [vmem:[%s6 + $0x88] sm:$0xff]
        %v1202 = vld [vmem:[%s6 + $0x90] sm:$0xff]
        %v1203 = vld [vmem:[%s6 + $0x98] sm:$0xff]
        %v1204 = vld [vmem:[%s6 + $0xa0] sm:$0xff]
        %v1205 = vld [vmem:[%s6 + $0xa8] sm:$0xff]
        %v1206 = vld [vmem:[%s6 + $0xb0] sm:$0xff]
        %v1207 = vld [vmem:[%s6 + $0xb8] sm:$0xff]
        %v1208 = vld [vmem:[%s6 + $0xc0] sm:$0xff]
        %v1209 = vld [vmem:[%s6 + $0xc8] sm:$0xff]
        %v1210 = vld [vmem:[%s6 + $0xd0] sm:$0xff]
        %v1211 = vld [vmem:[%s6 + $0xd8] sm:$0xff]
        %v1212 = vld [vmem:[%s6 + $0xe0] sm:$0xff]
        %v1213 = vld [vmem:[%s6 + $0xe8] sm:$0xff]
        %v1214 = vld [vmem:[%s6 + $0xf0] sm:$0xff]
        %v1215 = vld [vmem:[%s6 + $0xf8] sm:$0xff]
        %v1216 = vld [vmem:[%s6 + $0x100] sm:$0xff]
        %v1217 = vld [vmem:[%s6 + $0x108] sm:$0xff]
        %v1218 = vld [vmem:[%s6 + $0x110] sm:$0xff]
        %v1219 = vld [vmem:[%s6 + $0x118] sm:$0xff]
        %v1221 = vsel %vm618, %v934, 0
        %v1224 = vsel %vm618, %v935, 0
        %v1227 = vsel %vm618, %v936, 0
        %v1230 = vsel %vm618, %v937, 0
        %v1233 = vsel %vm618, %v938, 0
        %v1236 = vsel %vm618, %v939, 0
        %v1239 = vsel %vm618, %v940, 0
        %v1242 = vsel %vm618, %v941, 0
        %1244 = vmatprep.subr.mxu0 0.0
        %1245 = vmatpush1.msra.mxu0 %v1184
        %1246 = vmatprep.subr.mxu0 0.0
        %1247 = vmatpush1.msra.mxu0 %v1185
        %1248 = vmatprep.subr.mxu0 0.0
        %1249 = vmatpush1.msra.mxu0 %v1186
        %1250 = vmatprep.subr.mxu0 0.0
        %1251 = vmatpush1.msra.mxu0 %v1187
        %1252 = vmatprep.subr.mxu0 0.0
        %1253 = vmatpush1.msra.mxu0 %v1188
        %1254 = vmatprep.subr.mxu0 0.0
        %1255 = vmatpush1.msra.mxu0 %v1189
        %1256 = vmatprep.subr.mxu0 0.0
        %1257 = vmatpush1.msra.mxu0 %v1190
        %1258 = vmatprep.subr.mxu0 0.0
        %1259 = vmatpush1.msra.mxu0 %v1191
        %1260 = vmatprep.subr.mxu0 0.0
        %1261 = vmatpush1.msra.mxu0 %v1192
        %1262 = vmatprep.subr.mxu0 0.0
        %1263 = vmatpush1.msra.mxu0 %v1193
        %1264 = vmatprep.subr.mxu0 0.0
        %1265 = vmatpush1.msra.mxu0 %v1194
        %1266 = vmatprep.subr.mxu0 0.0
        %1267 = vmatpush1.msra.mxu0 %v1195
        %1268 = vmatprep.subr.mxu0 0.0
        %1269 = vmatpush1.msra.mxu0 %v1196
        %1270 = vmatprep.subr.mxu0 0.0
        %1271 = vmatpush1.msra.mxu0 %v1197
        %1272 = vmatprep.subr.mxu0 0.0
        %1273 = vmatpush1.msra.mxu0 %v1198
        %1274 = vmatprep.subr.mxu0 0.0
        %1275 = vmatpush1.msra.mxu0 %v1199
        %1276 = vmatprep.subr.mxu0 0.0
        %1277 = vmatpush1.msra.mxu0 %v1200
        %1278 = vmatprep.subr.mxu0 0.0
        %1279 = vmatpush1.msra.mxu0 %v1201
        %1280 = vmatprep.subr.mxu0 0.0
        %1281 = vmatpush1.msra.mxu0 %v1202
        %1282 = vmatprep.subr.mxu0 0.0
        %1283 = vmatpush1.msra.mxu0 %v1203
        %1284 = vmatprep.subr.mxu0 0.0
        %1285 = vmatpush1.msra.mxu0 %v1204
        %1286 = vmatprep.subr.mxu0 0.0
        %1287 = vmatpush1.msra.mxu0 %v1205
        %1288 = vmatprep.subr.mxu0 0.0
        %1289 = vmatpush1.msra.mxu0 %v1206
        %1290 = vmatprep.subr.mxu0 0.0
        %1291 = vmatpush1.msra.mxu0 %v1207
        %1292 = vmatprep.subr.mxu0 0.0
        %1293 = vmatpush1.msra.mxu0 %v1208
        %1294 = vmatprep.subr.mxu0 0.0
        %1295 = vmatpush1.msra.mxu0 %v1209
        %1296 = vmatprep.subr.mxu0 0.0
        %1297 = vmatpush1.msra.mxu0 %v1210
        %1298 = vmatprep.subr.mxu0 0.0
        %1299 = vmatpush1.msra.mxu0 %v1211
        %1300 = vmatprep.subr.mxu0 0.0
        %1301 = vmatpush1.msra.mxu0 %v1212
        %1302 = vmatprep.subr.mxu0 0.0
        %1303 = vmatpush1.msra.mxu0 %v1213
        %1304 = vmatprep.subr.mxu0 0.0
        %1305 = vmatpush1.msra.mxu0 %v1214
        %1306 = vmatprep.subr.mxu0 0.0
        %1307 = vmatpush1.msra.mxu0 %v1215
        %1308 = vmatprep.mubr.f32.mxu0 %v1176
        %1309 = vmatmul.mubr.f32.gmra.mrb[0].mxu0 %v1152
        %v1310 = vpop.f32.mrb[0].mxu0
        %v1311 = vadd.f32 0.0, %v1310
        %v1312 = vpop.f32.mrb[0].mxu0
        %1313 = vmatprep.mubr.f32.mxu0 %v1177
        %1314 = vmatmul.mubr.f32.gmra.mrb[0].mxu0 %v1153
        %v1315 = vpop.f32.mrb[0].mxu0
        %v1316 = vadd.f32 0.0, %v1315
        %v1317 = vpop.f32.mrb[0].mxu0
        %1318 = vmatprep.mubr.f32.mxu0 %v1178
        %1319 = vmatmul.mubr.f32.gmra.mrb[0].mxu0 %v1154
        %v1320 = vpop.f32.mrb[0].mxu0
        %v1321 = vadd.f32 0.0, %v1320
        %v1322 = vpop.f32.mrb[0].mxu0
        %1323 = vmatprep.mubr.f32.mxu0 %v1179
        %1324 = vmatmul.mubr.f32.gmra.mrb[0].mxu0 %v1155
        %v1325 = vpop.f32.mrb[0].mxu0
        %v1326 = vadd.f32 0.0, %v1325
        %v1327 = vpop.f32.mrb[0].mxu0
        %1328 = vmatprep.mubr.f32.mxu0 %v1180
        %1329 = vmatmul.mubr.f32.gmra.mrb[0].mxu0 %v1156
        %v1330 = vpop.f32.mrb[0].mxu0
        %v1331 = vadd.f32 0.0, %v1330
        %v1332 = vpop.f32.mrb[0].mxu0
        %1333 = vmatprep.mubr.f32.mxu0 %v1181
        %1334 = vmatmul.mubr.f32.gmra.mrb[0].mxu0 %v1157
        %v1335 = vpop.f32.mrb[0].mxu0
        %v1336 = vadd.f32 0.0, %v1335
        %v1337 = vpop.f32.mrb[0].mxu0
        %1338 = vmatprep.mubr.f32.mxu0 %v1182
        %1339 = vmatmul.mubr.f32.gmra.mrb[0].mxu0 %v1158
        %v1340 = vpop.f32.mrb[0].mxu0
        %v1341 = vadd.f32 0.0, %v1340
        %v1342 = vpop.f32.mrb[0].mxu0
        %1343 = vmatprep.mubr.f32.mxu0 %v1183
        %1344 = vmatmul.mubr.f32.gmra.mrb[0].mxu0 %v1159
        %v1345 = vpop.f32.mrb[0].mxu0
        %v1346 = vadd.f32 0.0, %v1345
        %v1347 = vpop.f32.mrb[0].mxu0
        %1348 = vdwg.mxu0
        %1349 = vmatprep.subr.mxu0 0.0
        %1350 = vmatpush1.msra.mxu0 %v1216
        %1351 = vmatprep.subr.mxu0 0.0
        %1352 = vmatpush1.msra.mxu0 %v1217
        %1353 = vmatprep.subr.mxu0 0.0
        %1354 = vmatpush1.msra.mxu0 %v1218
        %1355 = vmatprep.subr.mxu0 0.0
        %1356 = vmatpush1.msra.mxu0 %v1219
        %1357 = vmatprep.subr.mxu0 0.0
        %1358 = vmatpush1.msra.mxu0 0.0
        %1359 = vmatprep.subr.mxu0 0.0
        %1360 = vmatpush1.msra.mxu0 0.0
        %1361 = vmatprep.subr.mxu0 0.0
        %1362 = vmatpush1.msra.mxu0 0.0
        %1363 = vmatprep.subr.mxu0 0.0
        %1364 = vmatpush1.msra.mxu0 0.0
        %1365 = vmatprep.subr.mxu0 0.0
        %1366 = vmatpush1.msra.mxu0 0.0
        %1367 = vmatprep.subr.mxu0 0.0
        %1368 = vmatpush1.msra.mxu0 0.0
        %1369 = vmatprep.subr.mxu0 0.0
        %1370 = vmatpush1.msra.mxu0 0.0
        %1371 = vmatprep.subr.mxu0 0.0
        %1372 = vmatpush1.msra.mxu0 0.0
        %1373 = vmatprep.subr.mxu0 0.0
        %1374 = vmatpush1.msra.mxu0 0.0
        %1375 = vmatprep.subr.mxu0 0.0
        %1376 = vmatpush1.msra.mxu0 0.0
        %1377 = vmatprep.subr.mxu0 0.0
        %1378 = vmatpush1.msra.mxu0 0.0
        %1379 = vmatprep.subr.mxu0 0.0
        %1380 = vmatpush1.msra.mxu0 0.0
        %1381 = vmatprep.subr.mxu0 0.0
        %1382 = vmatpush1.msra.mxu0 0.0
        %1383 = vmatprep.subr.mxu0 0.0
        %1384 = vmatpush1.msra.mxu0 0.0
        %1385 = vmatprep.subr.mxu0 0.0
        %1386 = vmatpush1.msra.mxu0 0.0
        %1387 = vmatprep.subr.mxu0 0.0
        %1388 = vmatpush1.msra.mxu0 0.0
        %1389 = vmatprep.subr.mxu0 0.0
        %1390 = vmatpush1.msra.mxu0 0.0
        %1391 = vmatprep.subr.mxu0 0.0
        %1392 = vmatpush1.msra.mxu0 0.0
        %1393 = vmatprep.subr.mxu0 0.0
        %1394 = vmatpush1.msra.mxu0 0.0
        %1395 = vmatprep.subr.mxu0 0.0
        %1396 = vmatpush1.msra.mxu0 0.0
        %1397 = vmatprep.subr.mxu0 0.0
        %1398 = vmatpush1.msra.mxu0 0.0
        %1399 = vmatprep.subr.mxu0 0.0
        %1400 = vmatpush1.msra.mxu0 0.0
        %1401 = vmatprep.subr.mxu0 0.0
        %1402 = vmatpush1.msra.mxu0 0.0
        %1403 = vmatprep.subr.mxu0 0.0
        %1404 = vmatpush1.msra.mxu0 0.0
        %1405 = vmatprep.subr.mxu0 0.0
        %1406 = vmatpush1.msra.mxu0 0.0
        %1407 = vmatprep.subr.mxu0 0.0
        %1408 = vmatpush1.msra.mxu0 0.0
        %1409 = vmatprep.subr.mxu0 0.0
        %1410 = vmatpush1.msra.mxu0 0.0
        %1411 = vmatprep.subr.mxu0 0.0
        %1412 = vmatpush1.msra.mxu0 0.0
        %1413 = vmatprep.mubr.f32.mxu0 0.0
        %1414 = vmatmul.mubr.f32.gmra.mrb[0].mxu0 %v1221
        %v1415 = vpop.f32.mrb[0].mxu0
        %v1416 = vadd.f32 %v1311, %v1415
        %v1417 = vpop.f32.mrb[0].mxu0
        %1418 = vmatprep.mubr.f32.mxu0 0.0
        %1419 = vmatmul.mubr.f32.gmra.mrb[0].mxu0 %v1224
        %v1420 = vpop.f32.mrb[0].mxu0
        %v1421 = vadd.f32 %v1316, %v1420
        %v1422 = vpop.f32.mrb[0].mxu0
        %1423 = vmatprep.mubr.f32.mxu0 0.0
        %1424 = vmatmul.mubr.f32.gmra.mrb[0].mxu0 %v1227
        %v1425 = vpop.f32.mrb[0].mxu0
        %v1426 = vadd.f32 %v1321, %v1425
        %v1427 = vpop.f32.mrb[0].mxu0
        %1428 = vmatprep.mubr.f32.mxu0 0.0
        %1429 = vmatmul.mubr.f32.gmra.mrb[0].mxu0 %v1230
        %v1430 = vpop.f32.mrb[0].mxu0
        %v1431 = vadd.f32 %v1326, %v1430
        %v1432 = vpop.f32.mrb[0].mxu0
        %1433 = vmatprep.mubr.f32.mxu0 0.0
        %1434 = vmatmul.mubr.f32.gmra.mrb[0].mxu0 %v1233
        %v1435 = vpop.f32.mrb[0].mxu0
        %v1436 = vadd.f32 %v1331, %v1435
        %v1437 = vpop.f32.mrb[0].mxu0
        %1438 = vmatprep.mubr.f32.mxu0 0.0
        %1439 = vmatmul.mubr.f32.gmra.mrb[0].mxu0 %v1236
        %v1440 = vpop.f32.mrb[0].mxu0
        %v1441 = vadd.f32 %v1336, %v1440
        %v1442 = vpop.f32.mrb[0].mxu0
        %1443 = vmatprep.mubr.f32.mxu0 0.0
        %1444 = vmatmul.mubr.f32.gmra.mrb[0].mxu0 %v1239
        %v1445 = vpop.f32.mrb[0].mxu0
        %v1446 = vadd.f32 %v1341, %v1445
        %v1447 = vpop.f32.mrb[0].mxu0
        %1448 = vmatprep.mubr.f32.mxu0 0.0
        %1449 = vmatmul.mubr.f32.gmra.mrb[0].mxu0 %v1242
        %v1450 = vpop.f32.mrb[0].mxu0
        %v1451 = vadd.f32 %v1346, %v1450
        %v1452 = vpop.f32.mrb[0].mxu0
        %1453 = vdwg.mxu0
        %1462 = vrot.lane.b32.xlu0 %v1416, 8
        %v1463 = vpop.permute.xlu0 %1462
        %1464 = vrot.lane.b32.xlu0 %v1421, 8
        %v1465 = vpop.permute.xlu0 %1464
        %1466 = vrot.lane.b32.xlu0 %v1426, 8
        %v1467 = vpop.permute.xlu0 %1466
        %1468 = vrot.lane.b32.xlu0 %v1431, 8
        %v1469 = vpop.permute.xlu0 %1468
        %1470 = vrot.lane.b32.xlu0 %v1436, 8
        %v1471 = vpop.permute.xlu0 %1470
        %1472 = vrot.lane.b32.xlu0 %v1441, 8
        %v1473 = vpop.permute.xlu0 %1472
        %1474 = vrot.lane.b32.xlu0 %v1446, 8
        %v1475 = vpop.permute.xlu0 %1474
        %1476 = vrot.lane.b32.xlu0 %v1451, 8
        %v1477 = vpop.permute.xlu0 %1476
        %vm1486 = vcmask 130112
        %1487 = vst.msk [vmem:[%s595] sm:$0xff] %vm1486, %v1463
        %1488 = vst.msk [vmem:[%s595 + $0x8] sm:$0xff] %vm1486, %v1465
        %1489 = vst.msk [vmem:[%s595 + $0x10] sm:$0xff] %vm1486, %v1467
        %1490 = vst.msk [vmem:[%s595 + $0x18] sm:$0xff] %vm1486, %v1469
        %1491 = vst.msk [vmem:[%s595 + $0x20] sm:$0xff] %vm1486, %v1471
        %1492 = vst.msk [vmem:[%s595 + $0x28] sm:$0xff] %vm1486, %v1473
        %1493 = vst.msk [vmem:[%s595 + $0x30] sm:$0xff] %vm1486, %v1475
        %1494 = vst.msk [vmem:[%s595 + $0x38] sm:$0xff] %vm1486, %v1477
        %v1495 = vld [vmem:[%s595] sm:$0xff]
        %v1496 = vld [vmem:[%s595 + $0x8] sm:$0xff]
        %v1497 = vld [vmem:[%s595 + $0x10] sm:$0xff]
        %v1498 = vld [vmem:[%s595 + $0x18] sm:$0xff]
        %v1499 = vld [vmem:[%s595 + $0x20] sm:$0xff]
        %v1500 = vld [vmem:[%s595 + $0x28] sm:$0xff]
        %v1501 = vld [vmem:[%s595 + $0x30] sm:$0xff]
        %v1502 = vld [vmem:[%s595 + $0x38] sm:$0xff]
        %v1503 = vld [vmem:[%s7] sm:$0x1]
        %v1505 = vlaneseq
        %v1506 = vshrl.u32 %v1505, 7
        %v1507 = vsub.s32 0, %v1506
        %v1508 = vrot.slane %v1503, %v1507
        %v1510 = vmul.f32 %v1495, %v1508
        %v1511 = vmul.f32 %v1496, %v1508
        %v1512 = vmul.f32 %v1497, %v1508
        %v1513 = vmul.f32 %v1498, %v1508
        %v1514 = vmul.f32 %v1499, %v1508
        %v1515 = vmul.f32 %v1500, %v1508
        %v1516 = vmul.f32 %v1501, %v1508
        %v1517 = vmul.f32 %v1502, %v1508
        %v1518 = vld [vmem:[%s8] sm:$0x1]
        %v1520 = vlaneseq
        %v1521 = vshrl.u32 %v1520, 7
        %v1522 = vsub.s32 0, %v1521
        %v1523 = vrot.slane %v1518, %v1522
        %v1525 = vadd.f32 %v1510, %v1523
        %v1526 = vadd.f32 %v1511, %v1523
        %v1527 = vadd.f32 %v1512, %v1523
        %v1528 = vadd.f32 %v1513, %v1523
        %v1529 = vadd.f32 %v1514, %v1523
        %v1530 = vadd.f32 %v1515, %v1523
        %v1531 = vadd.f32 %v1516, %v1523
        %v1532 = vadd.f32 %v1517, %v1523
        %v1533 = vmax.f32 %v1525, 0.0
        %v1534 = vmax.f32 %v1526, 0.0
        %v1535 = vmax.f32 %v1527, 0.0
        %v1536 = vmax.f32 %v1528, 0.0
        %v1537 = vmax.f32 %v1529, 0.0
        %v1538 = vmax.f32 %v1530, 0.0
        %v1539 = vmax.f32 %v1531, 0.0
        %v1540 = vmax.f32 %v1532, 0.0
        %v1541 = vld [vmem:[%s9] sm:$0xff]
        %v1542 = vld [vmem:[%s9 + $0x8] sm:$0xff]
        %vm1543 = vcmask 130048
        %v1545 = vsel %vm1543, %v1533, 0
        %v1548 = vsel %vm1543, %v1534, 0
        %v1551 = vsel %vm1543, %v1535, 0
        %v1554 = vsel %vm1543, %v1536, 0
        %v1557 = vsel %vm1543, %v1537, 0
        %v1560 = vsel %vm1543, %v1538, 0
        %v1563 = vsel %vm1543, %v1539, 0
        %v1566 = vsel %vm1543, %v1540, 0
        %1568 = vmatprep.subr.mxu0 0.0
        %1569 = vmatpush1.msra.mxu0 %v1541
        %1570 = vmatprep.subr.mxu0 0.0
        %1571 = vmatpush1.msra.mxu0 %v1542
        %1572 = vmatprep.subr.mxu0 0.0
        %1573 = vmatpush1.msra.mxu0 0.0
        %1574 = vmatprep.subr.mxu0 0.0
        %1575 = vmatpush1.msra.mxu0 0.0
        %1576 = vmatprep.subr.mxu0 0.0
        %1577 = vmatpush1.msra.mxu0 0.0
        %1578 = vmatprep.subr.mxu0 0.0
        %1579 = vmatpush1.msra.mxu0 0.0
        %1580 = vmatprep.subr.mxu0 0.0
        %1581 = vmatpush1.msra.mxu0 0.0
        %1582 = vmatprep.subr.mxu0 0.0
        %1583 = vmatpush1.msra.mxu0 0.0
        %1584 = vmatprep.subr.mxu0 0.0
        %1585 = vmatpush1.msra.mxu0 0.0
        %1586 = vmatprep.subr.mxu0 0.0
        %1587 = vmatpush1.msra.mxu0 0.0
        %1588 = vmatprep.subr.mxu0 0.0
        %1589 = vmatpush1.msra.mxu0 0.0
        %1590 = vmatprep.subr.mxu0 0.0
        %1591 = vmatpush1.msra.mxu0 0.0
        %1592 = vmatprep.subr.mxu0 0.0
        %1593 = vmatpush1.msra.mxu0 0.0
        %1594 = vmatprep.subr.mxu0 0.0
        %1595 = vmatpush1.msra.mxu0 0.0
        %1596 = vmatprep.subr.mxu0 0.0
        %1597 = vmatpush1.msra.mxu0 0.0
        %1598 = vmatprep.subr.mxu0 0.0
        %1599 = vmatpush1.msra.mxu0 0.0
        %1600 = vmatprep.subr.mxu0 0.0
        %1601 = vmatpush1.msra.mxu0 0.0
        %1602 = vmatprep.subr.mxu0 0.0
        %1603 = vmatpush1.msra.mxu0 0.0
        %1604 = vmatprep.subr.mxu0 0.0
        %1605 = vmatpush1.msra.mxu0 0.0
        %1606 = vmatprep.subr.mxu0 0.0
        %1607 = vmatpush1.msra.mxu0 0.0
        %1608 = vmatprep.subr.mxu0 0.0
        %1609 = vmatpush1.msra.mxu0 0.0
        %1610 = vmatprep.subr.mxu0 0.0
        %1611 = vmatpush1.msra.mxu0 0.0
        %1612 = vmatprep.subr.mxu0 0.0
        %1613 = vmatpush1.msra.mxu0 0.0
        %1614 = vmatprep.subr.mxu0 0.0
        %1615 = vmatpush1.msra.mxu0 0.0
        %1616 = vmatprep.subr.mxu0 0.0
        %1617 = vmatpush1.msra.mxu0 0.0
        %1618 = vmatprep.subr.mxu0 0.0
        %1619 = vmatpush1.msra.mxu0 0.0
        %1620 = vmatprep.subr.mxu0 0.0
        %1621 = vmatpush1.msra.mxu0 0.0
        %1622 = vmatprep.subr.mxu0 0.0
        %1623 = vmatpush1.msra.mxu0 0.0
        %1624 = vmatprep.subr.mxu0 0.0
        %1625 = vmatpush1.msra.mxu0 0.0
        %1626 = vmatprep.subr.mxu0 0.0
        %1627 = vmatpush1.msra.mxu0 0.0
        %1628 = vmatprep.subr.mxu0 0.0
        %1629 = vmatpush1.msra.mxu0 0.0
        %1630 = vmatprep.subr.mxu0 0.0
        %1631 = vmatpush1.msra.mxu0 0.0
        %1632 = vmatprep.mubr.f32.mxu0 0.0
        %1633 = vmatmul.mubr.f32.gmra.mrb[0].mxu0 %v1545
        %v1634 = vpop.f32.mrb[0].mxu0
        %v1635 = vadd.f32 0.0, %v1634
        %v1636 = vpop.f32.mrb[0].mxu0
        %1637 = vmatprep.mubr.f32.mxu0 0.0
        %1638 = vmatmul.mubr.f32.gmra.mrb[0].mxu0 %v1548
        %v1639 = vpop.f32.mrb[0].mxu0
        %v1640 = vadd.f32 0.0, %v1639
        %v1641 = vpop.f32.mrb[0].mxu0
        %1642 = vmatprep.mubr.f32.mxu0 0.0
        %1643 = vmatmul.mubr.f32.gmra.mrb[0].mxu0 %v1551
        %v1644 = vpop.f32.mrb[0].mxu0
        %v1645 = vadd.f32 0.0, %v1644
        %v1646 = vpop.f32.mrb[0].mxu0
        %1647 = vmatprep.mubr.f32.mxu0 0.0
        %1648 = vmatmul.mubr.f32.gmra.mrb[0].mxu0 %v1554
        %v1649 = vpop.f32.mrb[0].mxu0
        %v1650 = vadd.f32 0.0, %v1649
        %v1651 = vpop.f32.mrb[0].mxu0
        %1652 = vmatprep.mubr.f32.mxu0 0.0
        %1653 = vmatmul.mubr.f32.gmra.mrb[0].mxu0 %v1557
        %v1654 = vpop.f32.mrb[0].mxu0
        %v1655 = vadd.f32 0.0, %v1654
        %v1656 = vpop.f32.mrb[0].mxu0
        %1657 = vmatprep.mubr.f32.mxu0 0.0
        %1658 = vmatmul.mubr.f32.gmra.mrb[0].mxu0 %v1560
        %v1659 = vpop.f32.mrb[0].mxu0
        %v1660 = vadd.f32 0.0, %v1659
        %v1661 = vpop.f32.mrb[0].mxu0
        %1662 = vmatprep.mubr.f32.mxu0 0.0
        %1663 = vmatmul.mubr.f32.gmra.mrb[0].mxu0 %v1563
        %v1664 = vpop.f32.mrb[0].mxu0
        %v1665 = vadd.f32 0.0, %v1664
        %v1666 = vpop.f32.mrb[0].mxu0
        %1667 = vmatprep.mubr.f32.mxu0 0.0
        %1668 = vmatmul.mubr.f32.gmra.mrb[0].mxu0 %v1566
        %v1669 = vpop.f32.mrb[0].mxu0
        %v1670 = vadd.f32 0.0, %v1669
        %v1671 = vpop.f32.mrb[0].mxu0
        %1672 = vdwg.mxu0
        %v1673 = vld [vmem:[%s10] sm:$0x1]
        %v1675 = vlaneseq
        %v1676 = vshrl.u32 %v1675, 7
        %v1677 = vsub.s32 0, %v1676
        %v1678 = vrot.slane %v1673, %v1677
        %v1680 = vmul.f32 %v1635, %v1678
        %v1681 = vmul.f32 %v1640, %v1678
        %v1682 = vmul.f32 %v1645, %v1678
        %v1683 = vmul.f32 %v1650, %v1678
        %v1684 = vmul.f32 %v1655, %v1678
        %v1685 = vmul.f32 %v1660, %v1678
        %v1686 = vmul.f32 %v1665, %v1678
        %v1687 = vmul.f32 %v1670, %v1678
        %v1688 = vld [vmem:[%s11] sm:$0x1]
        %v1690 = vlaneseq
        %v1691 = vshrl.u32 %v1690, 7
        %v1692 = vsub.s32 0, %v1691
        %v1693 = vrot.slane %v1688, %v1692
        %v1695 = vadd.f32 %v1680, %v1693
        %v1696 = vadd.f32 %v1681, %v1693
        %v1697 = vadd.f32 %v1682, %v1693
        %v1698 = vadd.f32 %v1683, %v1693
        %v1699 = vadd.f32 %v1684, %v1693
        %v1700 = vadd.f32 %v1685, %v1693
        %v1701 = vadd.f32 %v1686, %v1693
        %v1702 = vadd.f32 %v1687, %v1693
        %v1703 = vmax.f32 %v1695, 0.0
        %v1704 = vmax.f32 %v1696, 0.0
        %v1705 = vmax.f32 %v1697, 0.0
        %v1706 = vmax.f32 %v1698, 0.0
        %v1707 = vmax.f32 %v1699, 0.0
        %v1708 = vmax.f32 %v1700, 0.0
        %v1709 = vmax.f32 %v1701, 0.0
        %v1710 = vmax.f32 %v1702, 0.0
        %1711 = vst.msk [vmem:[%s860 + $0x1] sm:$0xff] %vm618, %v1703
        %1712 = vst.msk [vmem:[%s860 + $0x11] sm:$0xff] %vm618, %v1704
        %1713 = vst.msk [vmem:[%s860 + $0x21] sm:$0xff] %vm618, %v1705
        %1714 = vst.msk [vmem:[%s860 + $0x31] sm:$0xff] %vm618, %v1706
        %1715 = vst.msk [vmem:[%s860 + $0x41] sm:$0xff] %vm618, %v1707
        %1716 = vst.msk [vmem:[%s860 + $0x51] sm:$0xff] %vm618, %v1708
        %1717 = vst.msk [vmem:[%s860 + $0x61] sm:$0xff] %vm618, %v1709
        %1718 = vst.msk [vmem:[%s860 + $0x71] sm:$0xff] %vm618, %v1710
        %v1719 = vld [vmem:[#allocation2] sm:$0xff]
        %v1720 = vld [vmem:[#allocation2 + $0x10] sm:$0xff]
        %v1721 = vld [vmem:[#allocation2 + $0x20] sm:$0xff]
        %v1722 = vld [vmem:[#allocation2 + $0x30] sm:$0xff]
        %v1723 = vld [vmem:[#allocation2 + $0x40] sm:$0xff]
        %v1724 = vld [vmem:[#allocation2 + $0x50] sm:$0xff]
        %v1725 = vld [vmem:[#allocation2 + $0x60] sm:$0xff]
        %v1726 = vld [vmem:[#allocation2 + $0x70] sm:$0xff]
        %v1727 = vld [vmem:[#allocation2 + $0x1] sm:$0xff]
        %v1728 = vld [vmem:[#allocation2 + $0x11] sm:$0xff]
        %v1729 = vld [vmem:[#allocation2 + $0x21] sm:$0xff]
        %v1730 = vld [vmem:[#allocation2 + $0x31] sm:$0xff]
        %v1731 = vld [vmem:[#allocation2 + $0x41] sm:$0xff]
        %v1732 = vld [vmem:[#allocation2 + $0x51] sm:$0xff]
        %v1733 = vld [vmem:[#allocation2 + $0x61] sm:$0xff]
        %v1734 = vld [vmem:[#allocation2 + $0x71] sm:$0xff]
        %v1735 = vld [vmem:[#allocation2 + $0x2] sm:$0xff]
        %v1736 = vld [vmem:[#allocation2 + $0x12] sm:$0xff]
        %v1737 = vld [vmem:[#allocation2 + $0x22] sm:$0xff]
        %v1738 = vld [vmem:[#allocation2 + $0x32] sm:$0xff]
        %v1739 = vld [vmem:[#allocation2 + $0x42] sm:$0xff]
        %v1740 = vld [vmem:[#allocation2 + $0x52] sm:$0xff]
        %v1741 = vld [vmem:[#allocation2 + $0x62] sm:$0xff]
        %v1742 = vld [vmem:[#allocation2 + $0x72] sm:$0xff]
        %v1743 = vld [vmem:[%s860] sm:$0xff]
        %v1744 = vld [vmem:[%s860 + $0x10] sm:$0xff]
        %v1745 = vld [vmem:[%s860 + $0x20] sm:$0xff]
        %v1746 = vld [vmem:[%s860 + $0x30] sm:$0xff]
        %v1747 = vld [vmem:[%s860 + $0x40] sm:$0xff]
        %v1748 = vld [vmem:[%s860 + $0x50] sm:$0xff]
        %v1749 = vld [vmem:[%s860 + $0x60] sm:$0xff]
        %v1750 = vld [vmem:[%s860 + $0x70] sm:$0xff]
        %v1751 = vld [vmem:[%s860 + $0x1] sm:$0xff]
        %v1752 = vld [vmem:[%s860 + $0x11] sm:$0xff]
        %v1753 = vld [vmem:[%s860 + $0x21] sm:$0xff]
        %v1754 = vld [vmem:[%s860 + $0x31] sm:$0xff]
        %v1755 = vld [vmem:[%s860 + $0x41] sm:$0xff]
        %v1756 = vld [vmem:[%s860 + $0x51] sm:$0xff]
        %v1757 = vld [vmem:[%s860 + $0x61] sm:$0xff]
        %v1758 = vld [vmem:[%s860 + $0x71] sm:$0xff]
        %v1759 = vld [vmem:[%s860 + $0x2] sm:$0xff]
        %v1760 = vld [vmem:[%s860 + $0x12] sm:$0xff]
        %v1761 = vld [vmem:[%s860 + $0x22] sm:$0xff]
        %v1762 = vld [vmem:[%s860 + $0x32] sm:$0xff]
        %v1763 = vld [vmem:[%s860 + $0x42] sm:$0xff]
        %v1764 = vld [vmem:[%s860 + $0x52] sm:$0xff]
        %v1765 = vld [vmem:[%s860 + $0x62] sm:$0xff]
        %v1766 = vld [vmem:[%s860 + $0x72] sm:$0xff]
        %v1767 = vld [vmem:[%s917] sm:$0xff]
        %v1768 = vld [vmem:[%s917 + $0x10] sm:$0xff]
        %v1769 = vld [vmem:[%s917 + $0x20] sm:$0xff]
        %v1770 = vld [vmem:[%s917 + $0x30] sm:$0xff]
        %v1771 = vld [vmem:[%s917 + $0x40] sm:$0xff]
        %v1772 = vld [vmem:[%s917 + $0x50] sm:$0xff]
        %v1773 = vld [vmem:[%s917 + $0x60] sm:$0xff]
        %v1774 = vld [vmem:[%s917 + $0x70] sm:$0xff]
        %v1775 = vld [vmem:[%s917 + $0x1] sm:$0xff]
        %v1776 = vld [vmem:[%s917 + $0x11] sm:$0xff]
        %v1777 = vld [vmem:[%s917 + $0x21] sm:$0xff]
        %v1778 = vld [vmem:[%s917 + $0x31] sm:$0xff]
        %v1779 = vld [vmem:[%s917 + $0x41] sm:$0xff]
        %v1780 = vld [vmem:[%s917 + $0x51] sm:$0xff]
        %v1781 = vld [vmem:[%s917 + $0x61] sm:$0xff]
        %v1782 = vld [vmem:[%s917 + $0x71] sm:$0xff]
        %v1783 = vld [vmem:[%s917 + $0x2] sm:$0xff]
        %v1784 = vld [vmem:[%s917 + $0x12] sm:$0xff]
        %v1785 = vld [vmem:[%s917 + $0x22] sm:$0xff]
        %v1786 = vld [vmem:[%s917 + $0x32] sm:$0xff]
        %v1787 = vld [vmem:[%s917 + $0x42] sm:$0xff]
        %v1788 = vld [vmem:[%s917 + $0x52] sm:$0xff]
        %v1789 = vld [vmem:[%s917 + $0x62] sm:$0xff]
        %v1790 = vld [vmem:[%s917 + $0x72] sm:$0xff]
        %1799 = vrot.lane.b32.xlu0 %v1727, 32
        %v1800 = vpop.permute.xlu0 %1799
        %1801 = vrot.lane.b32.xlu0 %v1728, 32
        %v1802 = vpop.permute.xlu0 %1801
        %1803 = vrot.lane.b32.xlu0 %v1729, 32
        %v1804 = vpop.permute.xlu0 %1803
        %1805 = vrot.lane.b32.xlu0 %v1730, 32
        %v1806 = vpop.permute.xlu0 %1805
        %1807 = vrot.lane.b32.xlu0 %v1731, 32
        %v1808 = vpop.permute.xlu0 %1807
        %1809 = vrot.lane.b32.xlu0 %v1732, 32
        %v1810 = vpop.permute.xlu0 %1809
        %1811 = vrot.lane.b32.xlu0 %v1733, 32
        %v1812 = vpop.permute.xlu0 %1811
        %1813 = vrot.lane.b32.xlu0 %v1734, 32
        %v1814 = vpop.permute.xlu0 %1813
        %1831 = vrot.lane.b32.xlu0 %v1735, 64
        %v1832 = vpop.permute.xlu0 %1831
        %1833 = vrot.lane.b32.xlu0 %v1736, 64
        %v1834 = vpop.permute.xlu0 %1833
        %1835 = vrot.lane.b32.xlu0 %v1737, 64
        %v1836 = vpop.permute.xlu0 %1835
        %1837 = vrot.lane.b32.xlu0 %v1738, 64
        %v1838 = vpop.permute.xlu0 %1837
        %1839 = vrot.lane.b32.xlu0 %v1739, 64
        %v1840 = vpop.permute.xlu0 %1839
        %1841 = vrot.lane.b32.xlu0 %v1740, 64
        %v1842 = vpop.permute.xlu0 %1841
        %1843 = vrot.lane.b32.xlu0 %v1741, 64
        %v1844 = vpop.permute.xlu0 %1843
        %1845 = vrot.lane.b32.xlu0 %v1742, 64
        %v1846 = vpop.permute.xlu0 %1845
        %1863 = vrot.lane.b32.xlu0 %v1743, 96
        %v1864 = vpop.permute.xlu0 %1863
        %1865 = vrot.lane.b32.xlu0 %v1744, 96
        %v1866 = vpop.permute.xlu0 %1865
        %1867 = vrot.lane.b32.xlu0 %v1745, 96
        %v1868 = vpop.permute.xlu0 %1867
        %1869 = vrot.lane.b32.xlu0 %v1746, 96
        %v1870 = vpop.permute.xlu0 %1869
        %1871 = vrot.lane.b32.xlu0 %v1747, 96
        %v1872 = vpop.permute.xlu0 %1871
        %1873 = vrot.lane.b32.xlu0 %v1748, 96
        %v1874 = vpop.permute.xlu0 %1873
        %1875 = vrot.lane.b32.xlu0 %v1749, 96
        %v1876 = vpop.permute.xlu0 %1875
        %1877 = vrot.lane.b32.xlu0 %v1750, 96
        %v1878 = vpop.permute.xlu0 %1877
        %1895 = vrot.lane.b32.xlu0 %v1759, 32
        %v1896 = vpop.permute.xlu0 %1895
        %1897 = vrot.lane.b32.xlu0 %v1760, 32
        %v1898 = vpop.permute.xlu0 %1897
        %1899 = vrot.lane.b32.xlu0 %v1761, 32
        %v1900 = vpop.permute.xlu0 %1899
        %1901 = vrot.lane.b32.xlu0 %v1762, 32
        %v1902 = vpop.permute.xlu0 %1901
        %1903 = vrot.lane.b32.xlu0 %v1763, 32
        %v1904 = vpop.permute.xlu0 %1903
        %1905 = vrot.lane.b32.xlu0 %v1764, 32
        %v1906 = vpop.permute.xlu0 %1905
        %1907 = vrot.lane.b32.xlu0 %v1765, 32
        %v1908 = vpop.permute.xlu0 %1907
        %1909 = vrot.lane.b32.xlu0 %v1766, 32
        %v1910 = vpop.permute.xlu0 %1909
        %1927 = vrot.lane.b32.xlu0 %v1767, 64
        %v1928 = vpop.permute.xlu0 %1927
        %1929 = vrot.lane.b32.xlu0 %v1768, 64
        %v1930 = vpop.permute.xlu0 %1929
        %1931 = vrot.lane.b32.xlu0 %v1769, 64
        %v1932 = vpop.permute.xlu0 %1931
        %1933 = vrot.lane.b32.xlu0 %v1770, 64
        %v1934 = vpop.permute.xlu0 %1933
        %1935 = vrot.lane.b32.xlu0 %v1771, 64
        %v1936 = vpop.permute.xlu0 %1935
        %1937 = vrot.lane.b32.xlu0 %v1772, 64
        %v1938 = vpop.permute.xlu0 %1937
        %1939 = vrot.lane.b32.xlu0 %v1773, 64
        %v1940 = vpop.permute.xlu0 %1939
        %1941 = vrot.lane.b32.xlu0 %v1774, 64
        %v1942 = vpop.permute.xlu0 %1941
        %1959 = vrot.lane.b32.xlu0 %v1775, 96
        %v1960 = vpop.permute.xlu0 %1959
        %1961 = vrot.lane.b32.xlu0 %v1776, 96
        %v1962 = vpop.permute.xlu0 %1961
        %1963 = vrot.lane.b32.xlu0 %v1777, 96
        %v1964 = vpop.permute.xlu0 %1963
        %1965 = vrot.lane.b32.xlu0 %v1778, 96
        %v1966 = vpop.permute.xlu0 %1965
        %1967 = vrot.lane.b32.xlu0 %v1779, 96
        %v1968 = vpop.permute.xlu0 %1967
        %1969 = vrot.lane.b32.xlu0 %v1780, 96
        %v1970 = vpop.permute.xlu0 %1969
        %1971 = vrot.lane.b32.xlu0 %v1781, 96
        %v1972 = vpop.permute.xlu0 %1971
        %1973 = vrot.lane.b32.xlu0 %v1782, 96
        %v1974 = vpop.permute.xlu0 %1973
        %v1983 = vsel %vm618, %v1719, %v1800
        %v1984 = vsel %vm618, %v1720, %v1802
        %v1985 = vsel %vm618, %v1721, %v1804
        %v1986 = vsel %vm618, %v1722, %v1806
        %v1987 = vsel %vm618, %v1723, %v1808
        %v1988 = vsel %vm618, %v1724, %v1810
        %v1989 = vsel %vm618, %v1725, %v1812
        %v1990 = vsel %vm618, %v1726, %v1814
        %v1991 = vsel %vm1142, %v1983, %v1832
        %v1992 = vsel %vm1142, %v1984, %v1834
        %v1993 = vsel %vm1142, %v1985, %v1836
        %v1994 = vsel %vm1142, %v1986, %v1838
        %v1995 = vsel %vm1142, %v1987, %v1840
        %v1996 = vsel %vm1142, %v1988, %v1842
        %v1997 = vsel %vm1142, %v1989, %v1844
        %v1998 = vsel %vm1142, %v1990, %v1846
        %v1999 = vsel %vm1151, %v1991, %v1864
        %v2000 = vsel %vm1151, %v1992, %v1866
        %v2001 = vsel %vm1151, %v1993, %v1868
        %v2002 = vsel %vm1151, %v1994, %v1870
        %v2003 = vsel %vm1151, %v1995, %v1872
        %v2004 = vsel %vm1151, %v1996, %v1874
        %v2005 = vsel %vm1151, %v1997, %v1876
        %v2006 = vsel %vm1151, %v1998, %v1878
        %v2007 = vsel %vm618, %v1751, %v1896
        %v2008 = vsel %vm618, %v1752, %v1898
        %v2009 = vsel %vm618, %v1753, %v1900
        %v2010 = vsel %vm618, %v1754, %v1902
        %v2011 = vsel %vm618, %v1755, %v1904
        %v2012 = vsel %vm618, %v1756, %v1906
        %v2013 = vsel %vm618, %v1757, %v1908
        %v2014 = vsel %vm618, %v1758, %v1910
        %v2015 = vsel %vm1142, %v2007, %v1928
        %v2016 = vsel %vm1142, %v2008, %v1930
        %v2017 = vsel %vm1142, %v2009, %v1932
        %v2018 = vsel %vm1142, %v2010, %v1934
        %v2019 = vsel %vm1142, %v2011, %v1936
        %v2020 = vsel %vm1142, %v2012, %v1938
        %v2021 = vsel %vm1142, %v2013, %v1940
        %v2022 = vsel %vm1142, %v2014, %v1942
        %v2023 = vsel %vm1151, %v2015, %v1960
        %v2024 = vsel %vm1151, %v2016, %v1962
        %v2025 = vsel %vm1151, %v2017, %v1964
        %v2026 = vsel %vm1151, %v2018, %v1966
        %v2027 = vsel %vm1151, %v2019, %v1968
        %v2028 = vsel %vm1151, %v2020, %v1970
        %v2029 = vsel %vm1151, %v2021, %v1972
        %v2030 = vsel %vm1151, %v2022, %v1974
        %v2031 = vld [vmem:[%s12] sm:$0xff]
        %v2032 = vld [vmem:[%s12 + $0x8] sm:$0xff]
        %v2033 = vld [vmem:[%s12 + $0x10] sm:$0xff]
        %v2034 = vld [vmem:[%s12 + $0x18] sm:$0xff]
        %v2035 = vld [vmem:[%s12 + $0x20] sm:$0xff]
        %v2036 = vld [vmem:[%s12 + $0x28] sm:$0xff]
        %v2037 = vld [vmem:[%s12 + $0x30] sm:$0xff]
        %v2038 = vld [vmem:[%s12 + $0x38] sm:$0xff]
        %v2039 = vld [vmem:[%s12 + $0x40] sm:$0xff]
        %v2040 = vld [vmem:[%s12 + $0x48] sm:$0xff]
        %v2041 = vld [vmem:[%s12 + $0x50] sm:$0xff]
        %v2042 = vld [vmem:[%s12 + $0x58] sm:$0xff]
        %v2043 = vld [vmem:[%s12 + $0x60] sm:$0xff]
        %v2044 = vld [vmem:[%s12 + $0x68] sm:$0xff]
        %v2045 = vld [vmem:[%s12 + $0x70] sm:$0xff]
        %v2046 = vld [vmem:[%s12 + $0x78] sm:$0xff]
        %v2047 = vld [vmem:[%s12 + $0x80] sm:$0xff]
        %v2048 = vld [vmem:[%s12 + $0x88] sm:$0xff]
        %v2049 = vld [vmem:[%s12 + $0x90] sm:$0xff]
        %v2050 = vld [vmem:[%s12 + $0x98] sm:$0xff]
        %v2051 = vld [vmem:[%s12 + $0xa0] sm:$0xff]
        %v2052 = vld [vmem:[%s12 + $0xa8] sm:$0xff]
        %v2053 = vld [vmem:[%s12 + $0xb0] sm:$0xff]
        %v2054 = vld [vmem:[%s12 + $0xb8] sm:$0xff]
        %v2055 = vld [vmem:[%s12 + $0xc0] sm:$0xff]
        %v2056 = vld [vmem:[%s12 + $0xc8] sm:$0xff]
        %v2057 = vld [vmem:[%s12 + $0xd0] sm:$0xff]
        %v2058 = vld [vmem:[%s12 + $0xd8] sm:$0xff]
        %v2059 = vld [vmem:[%s12 + $0xe0] sm:$0xff]
        %v2060 = vld [vmem:[%s12 + $0xe8] sm:$0xff]
        %v2061 = vld [vmem:[%s12 + $0xf0] sm:$0xff]
        %v2062 = vld [vmem:[%s12 + $0xf8] sm:$0xff]
        %v2063 = vld [vmem:[%s12 + $0x100] sm:$0xff]
        %v2064 = vld [vmem:[%s12 + $0x108] sm:$0xff]
        %v2065 = vld [vmem:[%s12 + $0x110] sm:$0xff]
        %v2066 = vld [vmem:[%s12 + $0x118] sm:$0xff]
        %v2068 = vsel %vm618, %v1783, 0
        %v2071 = vsel %vm618, %v1784, 0
        %v2074 = vsel %vm618, %v1785, 0
        %v2077 = vsel %vm618, %v1786, 0
        %v2080 = vsel %vm618, %v1787, 0
        %v2083 = vsel %vm618, %v1788, 0
        %v2086 = vsel %vm618, %v1789, 0
        %v2089 = vsel %vm618, %v1790, 0
        %2091 = vmatprep.subr.mxu0 0.0
        %2092 = vmatpush1.msra.mxu0 %v2031
        %2093 = vmatprep.subr.mxu0 0.0
        %2094 = vmatpush1.msra.mxu0 %v2032
        %2095 = vmatprep.subr.mxu0 0.0
        %2096 = vmatpush1.msra.mxu0 %v2033
        %2097 = vmatprep.subr.mxu0 0.0
        %2098 = vmatpush1.msra.mxu0 %v2034
        %2099 = vmatprep.subr.mxu0 0.0
        %2100 = vmatpush1.msra.mxu0 %v2035
        %2101 = vmatprep.subr.mxu0 0.0
        %2102 = vmatpush1.msra.mxu0 %v2036
        %2103 = vmatprep.subr.mxu0 0.0
        %2104 = vmatpush1.msra.mxu0 %v2037
        %2105 = vmatprep.subr.mxu0 0.0
        %2106 = vmatpush1.msra.mxu0 %v2038
        %2107 = vmatprep.subr.mxu0 0.0
        %2108 = vmatpush1.msra.mxu0 %v2039
        %2109 = vmatprep.subr.mxu0 0.0
        %2110 = vmatpush1.msra.mxu0 %v2040
        %2111 = vmatprep.subr.mxu0 0.0
        %2112 = vmatpush1.msra.mxu0 %v2041
        %2113 = vmatprep.subr.mxu0 0.0
        %2114 = vmatpush1.msra.mxu0 %v2042
        %2115 = vmatprep.subr.mxu0 0.0
        %2116 = vmatpush1.msra.mxu0 %v2043
        %2117 = vmatprep.subr.mxu0 0.0
        %2118 = vmatpush1.msra.mxu0 %v2044
        %2119 = vmatprep.subr.mxu0 0.0
        %2120 = vmatpush1.msra.mxu0 %v2045
        %2121 = vmatprep.subr.mxu0 0.0
        %2122 = vmatpush1.msra.mxu0 %v2046
        %2123 = vmatprep.subr.mxu0 0.0
        %2124 = vmatpush1.msra.mxu0 %v2047
        %2125 = vmatprep.subr.mxu0 0.0
        %2126 = vmatpush1.msra.mxu0 %v2048
        %2127 = vmatprep.subr.mxu0 0.0
        %2128 = vmatpush1.msra.mxu0 %v2049
        %2129 = vmatprep.subr.mxu0 0.0
        %2130 = vmatpush1.msra.mxu0 %v2050
        %2131 = vmatprep.subr.mxu0 0.0
        %2132 = vmatpush1.msra.mxu0 %v2051
        %2133 = vmatprep.subr.mxu0 0.0
        %2134 = vmatpush1.msra.mxu0 %v2052
        %2135 = vmatprep.subr.mxu0 0.0
        %2136 = vmatpush1.msra.mxu0 %v2053
        %2137 = vmatprep.subr.mxu0 0.0
        %2138 = vmatpush1.msra.mxu0 %v2054
        %2139 = vmatprep.subr.mxu0 0.0
        %2140 = vmatpush1.msra.mxu0 %v2055
        %2141 = vmatprep.subr.mxu0 0.0
        %2142 = vmatpush1.msra.mxu0 %v2056
        %2143 = vmatprep.subr.mxu0 0.0
        %2144 = vmatpush1.msra.mxu0 %v2057
        %2145 = vmatprep.subr.mxu0 0.0
        %2146 = vmatpush1.msra.mxu0 %v2058
        %2147 = vmatprep.subr.mxu0 0.0
        %2148 = vmatpush1.msra.mxu0 %v2059
        %2149 = vmatprep.subr.mxu0 0.0
        %2150 = vmatpush1.msra.mxu0 %v2060
        %2151 = vmatprep.subr.mxu0 0.0
        %2152 = vmatpush1.msra.mxu0 %v2061
        %2153 = vmatprep.subr.mxu0 0.0
        %2154 = vmatpush1.msra.mxu0 %v2062
        %2155 = vmatprep.mubr.f32.mxu0 %v2023
        %2156 = vmatmul.mubr.f32.gmra.mrb[0].mxu0 %v1999
        %v2157 = vpop.f32.mrb[0].mxu0
        %v2158 = vadd.f32 0.0, %v2157
        %v2159 = vpop.f32.mrb[0].mxu0
        %2160 = vmatprep.mubr.f32.mxu0 %v2024
        %2161 = vmatmul.mubr.f32.gmra.mrb[0].mxu0 %v2000
        %v2162 = vpop.f32.mrb[0].mxu0
        %v2163 = vadd.f32 0.0, %v2162
        %v2164 = vpop.f32.mrb[0].mxu0
        %2165 = vmatprep.mubr.f32.mxu0 %v2025
        %2166 = vmatmul.mubr.f32.gmra.mrb[0].mxu0 %v2001
        %v2167 = vpop.f32.mrb[0].mxu0
        %v2168 = vadd.f32 0.0, %v2167
        %v2169 = vpop.f32.mrb[0].mxu0
        %2170 = vmatprep.mubr.f32.mxu0 %v2026
        %2171 = vmatmul.mubr.f32.gmra.mrb[0].mxu0 %v2002
        %v2172 = vpop.f32.mrb[0].mxu0
        %v2173 = vadd.f32 0.0, %v2172
        %v2174 = vpop.f32.mrb[0].mxu0
        %2175 = vmatprep.mubr.f32.mxu0 %v2027
        %2176 = vmatmul.mubr.f32.gmra.mrb[0].mxu0 %v2003
        %v2177 = vpop.f32.mrb[0].mxu0
        %v2178 = vadd.f32 0.0, %v2177
        %v2179 = vpop.f32.mrb[0].mxu0
        %2180 = vmatprep.mubr.f32.mxu0 %v2028
        %2181 = vmatmul.mubr.f32.gmra.mrb[0].mxu0 %v2004
        %v2182 = vpop.f32.mrb[0].mxu0
        %v2183 = vadd.f32 0.0, %v2182
        %v2184 = vpop.f32.mrb[0].mxu0
        %2185 = vmatprep.mubr.f32.mxu0 %v2029
        %2186 = vmatmul.mubr.f32.gmra.mrb[0].mxu0 %v2005
        %v2187 = vpop.f32.mrb[0].mxu0
        %v2188 = vadd.f32 0.0, %v2187
        %v2189 = vpop.f32.mrb[0].mxu0
        %2190 = vmatprep.mubr.f32.mxu0 %v2030
        %2191 = vmatmul.mubr.f32.gmra.mrb[0].mxu0 %v2006
        %v2192 = vpop.f32.mrb[0].mxu0
        %v2193 = vadd.f32 0.0, %v2192
        %v2194 = vpop.f32.mrb[0].mxu0
        %2195 = vdwg.mxu0
        %2196 = vmatprep.subr.mxu0 0.0
        %2197 = vmatpush1.msra.mxu0 %v2063
        %2198 = vmatprep.subr.mxu0 0.0
        %2199 = vmatpush1.msra.mxu0 %v2064
        %2200 = vmatprep.subr.mxu0 0.0
        %2201 = vmatpush1.msra.mxu0 %v2065
        %2202 = vmatprep.subr.mxu0 0.0
        %2203 = vmatpush1.msra.mxu0 %v2066
        %2204 = vmatprep.subr.mxu0 0.0
        %2205 = vmatpush1.msra.mxu0 0.0
        %2206 = vmatprep.subr.mxu0 0.0
        %2207 = vmatpush1.msra.mxu0 0.0
        %2208 = vmatprep.subr.mxu0 0.0
        %2209 = vmatpush1.msra.mxu0 0.0
        %2210 = vmatprep.subr.mxu0 0.0
        %2211 = vmatpush1.msra.mxu0 0.0
        %2212 = vmatprep.subr.mxu0 0.0
        %2213 = vmatpush1.msra.mxu0 0.0
        %2214 = vmatprep.subr.mxu0 0.0
        %2215 = vmatpush1.msra.mxu0 0.0
        %2216 = vmatprep.subr.mxu0 0.0
        %2217 = vmatpush1.msra.mxu0 0.0
        %2218 = vmatprep.subr.mxu0 0.0
        %2219 = vmatpush1.msra.mxu0 0.0
        %2220 = vmatprep.subr.mxu0 0.0
        %2221 = vmatpush1.msra.mxu0 0.0
        %2222 = vmatprep.subr.mxu0 0.0
        %2223 = vmatpush1.msra.mxu0 0.0
        %2224 = vmatprep.subr.mxu0 0.0
        %2225 = vmatpush1.msra.mxu0 0.0
        %2226 = vmatprep.subr.mxu0 0.0
        %2227 = vmatpush1.msra.mxu0 0.0
        %2228 = vmatprep.subr.mxu0 0.0
        %2229 = vmatpush1.msra.mxu0 0.0
        %2230 = vmatprep.subr.mxu0 0.0
        %2231 = vmatpush1.msra.mxu0 0.0
        %2232 = vmatprep.subr.mxu0 0.0
        %2233 = vmatpush1.msra.mxu0 0.0
        %2234 = vmatprep.subr.mxu0 0.0
        %2235 = vmatpush1.msra.mxu0 0.0
        %2236 = vmatprep.subr.mxu0 0.0
        %2237 = vmatpush1.msra.mxu0 0.0
        %2238 = vmatprep.subr.mxu0 0.0
        %2239 = vmatpush1.msra.mxu0 0.0
        %2240 = vmatprep.subr.mxu0 0.0
        %2241 = vmatpush1.msra.mxu0 0.0
        %2242 = vmatprep.subr.mxu0 0.0
        %2243 = vmatpush1.msra.mxu0 0.0
        %2244 = vmatprep.subr.mxu0 0.0
        %2245 = vmatpush1.msra.mxu0 0.0
        %2246 = vmatprep.subr.mxu0 0.0
        %2247 = vmatpush1.msra.mxu0 0.0
        %2248 = vmatprep.subr.mxu0 0.0
        %2249 = vmatpush1.msra.mxu0 0.0
        %2250 = vmatprep.subr.mxu0 0.0
        %2251 = vmatpush1.msra.mxu0 0.0
        %2252 = vmatprep.subr.mxu0 0.0
        %2253 = vmatpush1.msra.mxu0 0.0
        %2254 = vmatprep.subr.mxu0 0.0
        %2255 = vmatpush1.msra.mxu0 0.0
        %2256 = vmatprep.subr.mxu0 0.0
        %2257 = vmatpush1.msra.mxu0 0.0
        %2258 = vmatprep.subr.mxu0 0.0
        %2259 = vmatpush1.msra.mxu0 0.0
        %2260 = vmatprep.mubr.f32.mxu0 0.0
        %2261 = vmatmul.mubr.f32.gmra.mrb[0].mxu0 %v2068
        %v2262 = vpop.f32.mrb[0].mxu0
        %v2263 = vadd.f32 %v2158, %v2262
        %v2264 = vpop.f32.mrb[0].mxu0
        %2265 = vmatprep.mubr.f32.mxu0 0.0
        %2266 = vmatmul.mubr.f32.gmra.mrb[0].mxu0 %v2071
        %v2267 = vpop.f32.mrb[0].mxu0
        %v2268 = vadd.f32 %v2163, %v2267
        %v2269 = vpop.f32.mrb[0].mxu0
        %2270 = vmatprep.mubr.f32.mxu0 0.0
        %2271 = vmatmul.mubr.f32.gmra.mrb[0].mxu0 %v2074
        %v2272 = vpop.f32.mrb[0].mxu0
        %v2273 = vadd.f32 %v2168, %v2272
        %v2274 = vpop.f32.mrb[0].mxu0
        %2275 = vmatprep.mubr.f32.mxu0 0.0
        %2276 = vmatmul.mubr.f32.gmra.mrb[0].mxu0 %v2077
        %v2277 = vpop.f32.mrb[0].mxu0
        %v2278 = vadd.f32 %v2173, %v2277
        %v2279 = vpop.f32.mrb[0].mxu0
        %2280 = vmatprep.mubr.f32.mxu0 0.0
        %2281 = vmatmul.mubr.f32.gmra.mrb[0].mxu0 %v2080
        %v2282 = vpop.f32.mrb[0].mxu0
        %v2283 = vadd.f32 %v2178, %v2282
        %v2284 = vpop.f32.mrb[0].mxu0
        %2285 = vmatprep.mubr.f32.mxu0 0.0
        %2286 = vmatmul.mubr.f32.gmra.mrb[0].mxu0 %v2083
        %v2287 = vpop.f32.mrb[0].mxu0
        %v2288 = vadd.f32 %v2183, %v2287
        %v2289 = vpop.f32.mrb[0].mxu0
        %2290 = vmatprep.mubr.f32.mxu0 0.0
        %2291 = vmatmul.mubr.f32.gmra.mrb[0].mxu0 %v2086
        %v2292 = vpop.f32.mrb[0].mxu0
        %v2293 = vadd.f32 %v2188, %v2292
        %v2294 = vpop.f32.mrb[0].mxu0
        %2295 = vmatprep.mubr.f32.mxu0 0.0
        %2296 = vmatmul.mubr.f32.gmra.mrb[0].mxu0 %v2089
        %v2297 = vpop.f32.mrb[0].mxu0
        %v2298 = vadd.f32 %v2193, %v2297
        %v2299 = vpop.f32.mrb[0].mxu0
        %2300 = vdwg.mxu0
        %2309 = vrot.lane.b32.xlu0 %v2263, 16
        %v2310 = vpop.permute.xlu0 %2309
        %2311 = vrot.lane.b32.xlu0 %v2268, 16
        %v2312 = vpop.permute.xlu0 %2311
        %2313 = vrot.lane.b32.xlu0 %v2273, 16
        %v2314 = vpop.permute.xlu0 %2313
        %2315 = vrot.lane.b32.xlu0 %v2278, 16
        %v2316 = vpop.permute.xlu0 %2315
        %2317 = vrot.lane.b32.xlu0 %v2283, 16
        %v2318 = vpop.permute.xlu0 %2317
        %2319 = vrot.lane.b32.xlu0 %v2288, 16
        %v2320 = vpop.permute.xlu0 %2319
        %2321 = vrot.lane.b32.xlu0 %v2293, 16
        %v2322 = vpop.permute.xlu0 %2321
        %2323 = vrot.lane.b32.xlu0 %v2298, 16
        %v2324 = vpop.permute.xlu0 %2323
        %vm2333 = vcmask 195712
        %2334 = vst.msk [vmem:[%s595] sm:$0xff] %vm2333, %v2310
        %2335 = vst.msk [vmem:[%s595 + $0x8] sm:$0xff] %vm2333, %v2312
        %2336 = vst.msk [vmem:[%s595 + $0x10] sm:$0xff] %vm2333, %v2314
        %2337 = vst.msk [vmem:[%s595 + $0x18] sm:$0xff] %vm2333, %v2316
        %2338 = vst.msk [vmem:[%s595 + $0x20] sm:$0xff] %vm2333, %v2318
        %2339 = vst.msk [vmem:[%s595 + $0x28] sm:$0xff] %vm2333, %v2320
        %2340 = vst.msk [vmem:[%s595 + $0x30] sm:$0xff] %vm2333, %v2322
        %2341 = vst.msk [vmem:[%s595 + $0x38] sm:$0xff] %vm2333, %v2324
        %v2342 = vld [vmem:[%s595] sm:$0xff]
        %v2343 = vld [vmem:[%s595 + $0x8] sm:$0xff]
        %v2344 = vld [vmem:[%s595 + $0x10] sm:$0xff]
        %v2345 = vld [vmem:[%s595 + $0x18] sm:$0xff]
        %v2346 = vld [vmem:[%s595 + $0x20] sm:$0xff]
        %v2347 = vld [vmem:[%s595 + $0x28] sm:$0xff]
        %v2348 = vld [vmem:[%s595 + $0x30] sm:$0xff]
        %v2349 = vld [vmem:[%s595 + $0x38] sm:$0xff]
        %v2350 = vld [vmem:[%s13] sm:$0x1]
        %v2352 = vlaneseq
        %v2353 = vshrl.u32 %v2352, 7
        %v2354 = vsub.s32 0, %v2353
        %v2355 = vrot.slane %v2350, %v2354
        %v2357 = vmul.f32 %v2342, %v2355
        %v2358 = vmul.f32 %v2343, %v2355
        %v2359 = vmul.f32 %v2344, %v2355
        %v2360 = vmul.f32 %v2345, %v2355
        %v2361 = vmul.f32 %v2346, %v2355
        %v2362 = vmul.f32 %v2347, %v2355
        %v2363 = vmul.f32 %v2348, %v2355
        %v2364 = vmul.f32 %v2349, %v2355
        %v2365 = vld [vmem:[%s14] sm:$0x1]
        %v2367 = vlaneseq
        %v2368 = vshrl.u32 %v2367, 7
        %v2369 = vsub.s32 0, %v2368
        %v2370 = vrot.slane %v2365, %v2369
        %v2372 = vadd.f32 %v2357, %v2370
        %v2373 = vadd.f32 %v2358, %v2370
        %v2374 = vadd.f32 %v2359, %v2370
        %v2375 = vadd.f32 %v2360, %v2370
        %v2376 = vadd.f32 %v2361, %v2370
        %v2377 = vadd.f32 %v2362, %v2370
        %v2378 = vadd.f32 %v2363, %v2370
        %v2379 = vadd.f32 %v2364, %v2370
        %v2380 = vmax.f32 %v2372, 0.0
        %v2381 = vmax.f32 %v2373, 0.0
        %v2382 = vmax.f32 %v2374, 0.0
        %v2383 = vmax.f32 %v2375, 0.0
        %v2384 = vmax.f32 %v2376, 0.0
        %v2385 = vmax.f32 %v2377, 0.0
        %v2386 = vmax.f32 %v2378, 0.0
        %v2387 = vmax.f32 %v2379, 0.0
        %v2388 = vld [vmem:[%s15] sm:$0xff]
        %v2389 = vld [vmem:[%s15 + $0x8] sm:$0xff]
        %v2390 = vld [vmem:[%s15 + $0x10] sm:$0xff]
        %vm2391 = vcmask 195584
        %v2393 = vsel %vm2391, %v2380, 0
        %v2396 = vsel %vm2391, %v2381, 0
        %v2399 = vsel %vm2391, %v2382, 0
        %v2402 = vsel %vm2391, %v2383, 0
        %v2405 = vsel %vm2391, %v2384, 0
        %v2408 = vsel %vm2391, %v2385, 0
        %v2411 = vsel %vm2391, %v2386, 0
        %v2414 = vsel %vm2391, %v2387, 0
        %2416 = vmatprep.subr.mxu0 0.0
        %2417 = vmatpush1.msra.mxu0 %v2388
        %2418 = vmatprep.subr.mxu0 0.0
        %2419 = vmatpush1.msra.mxu0 %v2389
        %2420 = vmatprep.subr.mxu0 0.0
        %2421 = vmatpush1.msra.mxu0 %v2390
        %2422 = vmatprep.subr.mxu0 0.0
        %2423 = vmatpush1.msra.mxu0 0.0
        %2424 = vmatprep.subr.mxu0 0.0
        %2425 = vmatpush1.msra.mxu0 0.0
        %2426 = vmatprep.subr.mxu0 0.0
        %2427 = vmatpush1.msra.mxu0 0.0
        %2428 = vmatprep.subr.mxu0 0.0
        %2429 = vmatpush1.msra.mxu0 0.0
        %2430 = vmatprep.subr.mxu0 0.0
        %2431 = vmatpush1.msra.mxu0 0.0
        %2432 = vmatprep.subr.mxu0 0.0
        %2433 = vmatpush1.msra.mxu0 0.0
        %2434 = vmatprep.subr.mxu0 0.0
        %2435 = vmatpush1.msra.mxu0 0.0
        %2436 = vmatprep.subr.mxu0 0.0
        %2437 = vmatpush1.msra.mxu0 0.0
        %2438 = vmatprep.subr.mxu0 0.0
        %2439 = vmatpush1.msra.mxu0 0.0
        %2440 = vmatprep.subr.mxu0 0.0
        %2441 = vmatpush1.msra.mxu0 0.0
        %2442 = vmatprep.subr.mxu0 0.0
        %2443 = vmatpush1.msra.mxu0 0.0
        %2444 = vmatprep.subr.mxu0 0.0
        %2445 = vmatpush1.msra.mxu0 0.0
        %2446 = vmatprep.subr.mxu0 0.0
        %2447 = vmatpush1.msra.mxu0 0.0
        %2448 = vmatprep.subr.mxu0 0.0
        %2449 = vmatpush1.msra.mxu0 0.0
        %2450 = vmatprep.subr.mxu0 0.0
        %2451 = vmatpush1.msra.mxu0 0.0
        %2452 = vmatprep.subr.mxu0 0.0
        %2453 = vmatpush1.msra.mxu0 0.0
        %2454 = vmatprep.subr.mxu0 0.0
        %2455 = vmatpush1.msra.mxu0 0.0
        %2456 = vmatprep.subr.mxu0 0.0
        %2457 = vmatpush1.msra.mxu0 0.0
        %2458 = vmatprep.subr.mxu0 0.0
        %2459 = vmatpush1.msra.mxu0 0.0
        %2460 = vmatprep.subr.mxu0 0.0
        %2461 = vmatpush1.msra.mxu0 0.0
        %2462 = vmatprep.subr.mxu0 0.0
        %2463 = vmatpush1.msra.mxu0 0.0
        %2464 = vmatprep.subr.mxu0 0.0
        %2465 = vmatpush1.msra.mxu0 0.0
        %2466 = vmatprep.subr.mxu0 0.0
        %2467 = vmatpush1.msra.mxu0 0.0
        %2468 = vmatprep.subr.mxu0 0.0
        %2469 = vmatpush1.msra.mxu0 0.0
        %2470 = vmatprep.subr.mxu0 0.0
        %2471 = vmatpush1.msra.mxu0 0.0
        %2472 = vmatprep.subr.mxu0 0.0
        %2473 = vmatpush1.msra.mxu0 0.0
        %2474 = vmatprep.subr.mxu0 0.0
        %2475 = vmatpush1.msra.mxu0 0.0
        %2476 = vmatprep.subr.mxu0 0.0
        %2477 = vmatpush1.msra.mxu0 0.0
        %2478 = vmatprep.subr.mxu0 0.0
        %2479 = vmatpush1.msra.mxu0 0.0
        %2480 = vmatprep.mubr.f32.mxu0 0.0
        %2481 = vmatmul.mubr.f32.gmra.mrb[0].mxu0 %v2393
        %v2482 = vpop.f32.mrb[0].mxu0
        %v2483 = vadd.f32 0.0, %v2482
        %v2484 = vpop.f32.mrb[0].mxu0
        %2485 = vmatprep.mubr.f32.mxu0 0.0
        %2486 = vmatmul.mubr.f32.gmra.mrb[0].mxu0 %v2396
        %v2487 = vpop.f32.mrb[0].mxu0
        %v2488 = vadd.f32 0.0, %v2487
        %v2489 = vpop.f32.mrb[0].mxu0
        %2490 = vmatprep.mubr.f32.mxu0 0.0
        %2491 = vmatmul.mubr.f32.gmra.mrb[0].mxu0 %v2399
        %v2492 = vpop.f32.mrb[0].mxu0
        %v2493 = vadd.f32 0.0, %v2492
        %v2494 = vpop.f32.mrb[0].mxu0
        %2495 = vmatprep.mubr.f32.mxu0 0.0
        %2496 = vmatmul.mubr.f32.gmra.mrb[0].mxu0 %v2402
        %v2497 = vpop.f32.mrb[0].mxu0
        %v2498 = vadd.f32 0.0, %v2497
        %v2499 = vpop.f32.mrb[0].mxu0
        %2500 = vmatprep.mubr.f32.mxu0 0.0
        %2501 = vmatmul.mubr.f32.gmra.mrb[0].mxu0 %v2405
        %v2502 = vpop.f32.mrb[0].mxu0
        %v2503 = vadd.f32 0.0, %v2502
        %v2504 = vpop.f32.mrb[0].mxu0
        %2505 = vmatprep.mubr.f32.mxu0 0.0
        %2506 = vmatmul.mubr.f32.gmra.mrb[0].mxu0 %v2408
        %v2507 = vpop.f32.mrb[0].mxu0
        %v2508 = vadd.f32 0.0, %v2507
        %v2509 = vpop.f32.mrb[0].mxu0
        %2510 = vmatprep.mubr.f32.mxu0 0.0
        %2511 = vmatmul.mubr.f32.gmra.mrb[0].mxu0 %v2411
        %v2512 = vpop.f32.mrb[0].mxu0
        %v2513 = vadd.f32 0.0, %v2512
        %v2514 = vpop.f32.mrb[0].mxu0
        %2515 = vmatprep.mubr.f32.mxu0 0.0
        %2516 = vmatmul.mubr.f32.gmra.mrb[0].mxu0 %v2414
        %v2517 = vpop.f32.mrb[0].mxu0
        %v2518 = vadd.f32 0.0, %v2517
        %v2519 = vpop.f32.mrb[0].mxu0
        %2520 = vdwg.mxu0
        %v2521 = vld [vmem:[%s16] sm:$0x1]
        %v2523 = vlaneseq
        %v2524 = vshrl.u32 %v2523, 7
        %v2525 = vsub.s32 0, %v2524
        %v2526 = vrot.slane %v2521, %v2525
        %v2528 = vmul.f32 %v2483, %v2526
        %v2529 = vmul.f32 %v2488, %v2526
        %v2530 = vmul.f32 %v2493, %v2526
        %v2531 = vmul.f32 %v2498, %v2526
        %v2532 = vmul.f32 %v2503, %v2526
        %v2533 = vmul.f32 %v2508, %v2526
        %v2534 = vmul.f32 %v2513, %v2526
        %v2535 = vmul.f32 %v2518, %v2526
        %v2536 = vld [vmem:[%s17] sm:$0x1]
        %v2538 = vlaneseq
        %v2539 = vshrl.u32 %v2538, 7
        %v2540 = vsub.s32 0, %v2539
        %v2541 = vrot.slane %v2536, %v2540
        %v2543 = vadd.f32 %v2528, %v2541
        %v2544 = vadd.f32 %v2529, %v2541
        %v2545 = vadd.f32 %v2530, %v2541
        %v2546 = vadd.f32 %v2531, %v2541
        %v2547 = vadd.f32 %v2532, %v2541
        %v2548 = vadd.f32 %v2533, %v2541
        %v2549 = vadd.f32 %v2534, %v2541
        %v2550 = vadd.f32 %v2535, %v2541
        %v2551 = vmax.f32 %v2543, 0.0
        %v2552 = vmax.f32 %v2544, 0.0
        %v2553 = vmax.f32 %v2545, 0.0
        %v2554 = vmax.f32 %v2546, 0.0
        %v2555 = vmax.f32 %v2547, 0.0
        %v2556 = vmax.f32 %v2548, 0.0
        %v2557 = vmax.f32 %v2549, 0.0
        %v2558 = vmax.f32 %v2550, 0.0
        %2559 = vst.msk [vmem:[%s860 + $0x1] sm:$0xff] %vm618, %v2551
        %2560 = vst.msk [vmem:[%s860 + $0x11] sm:$0xff] %vm618, %v2552
        %2561 = vst.msk [vmem:[%s860 + $0x21] sm:$0xff] %vm618, %v2553
        %2562 = vst.msk [vmem:[%s860 + $0x31] sm:$0xff] %vm618, %v2554
        %2563 = vst.msk [vmem:[%s860 + $0x41] sm:$0xff] %vm618, %v2555
        %2564 = vst.msk [vmem:[%s860 + $0x51] sm:$0xff] %vm618, %v2556
        %2565 = vst.msk [vmem:[%s860 + $0x61] sm:$0xff] %vm618, %v2557
        %2566 = vst.msk [vmem:[%s860 + $0x71] sm:$0xff] %vm618, %v2558
        %v2567 = vld [vmem:[#allocation2] sm:$0xff]
        %v2568 = vld [vmem:[#allocation2 + $0x10] sm:$0xff]
        %v2569 = vld [vmem:[#allocation2 + $0x20] sm:$0xff]
        %v2570 = vld [vmem:[#allocation2 + $0x30] sm:$0xff]
        %v2571 = vld [vmem:[#allocation2 + $0x40] sm:$0xff]
        %v2572 = vld [vmem:[#allocation2 + $0x50] sm:$0xff]
        %v2573 = vld [vmem:[#allocation2 + $0x60] sm:$0xff]
        %v2574 = vld [vmem:[#allocation2 + $0x70] sm:$0xff]
        %v2575 = vld [vmem:[#allocation2 + $0x1] sm:$0xff]
        %v2576 = vld [vmem:[#allocation2 + $0x11] sm:$0xff]
        %v2577 = vld [vmem:[#allocation2 + $0x21] sm:$0xff]
        %v2578 = vld [vmem:[#allocation2 + $0x31] sm:$0xff]
        %v2579 = vld [vmem:[#allocation2 + $0x41] sm:$0xff]
        %v2580 = vld [vmem:[#allocation2 + $0x51] sm:$0xff]
        %v2581 = vld [vmem:[#allocation2 + $0x61] sm:$0xff]
        %v2582 = vld [vmem:[#allocation2 + $0x71] sm:$0xff]
        %v2583 = vld [vmem:[#allocation2 + $0x2] sm:$0xff]
        %v2584 = vld [vmem:[#allocation2 + $0x12] sm:$0xff]
        %v2585 = vld [vmem:[#allocation2 + $0x22] sm:$0xff]
        %v2586 = vld [vmem:[#allocation2 + $0x32] sm:$0xff]
        %v2587 = vld [vmem:[#allocation2 + $0x42] sm:$0xff]
        %v2588 = vld [vmem:[#allocation2 + $0x52] sm:$0xff]
        %v2589 = vld [vmem:[#allocation2 + $0x62] sm:$0xff]
        %v2590 = vld [vmem:[#allocation2 + $0x72] sm:$0xff]
        %v2591 = vld [vmem:[%s860] sm:$0xff]
        %v2592 = vld [vmem:[%s860 + $0x10] sm:$0xff]
        %v2593 = vld [vmem:[%s860 + $0x20] sm:$0xff]
        %v2594 = vld [vmem:[%s860 + $0x30] sm:$0xff]
        %v2595 = vld [vmem:[%s860 + $0x40] sm:$0xff]
        %v2596 = vld [vmem:[%s860 + $0x50] sm:$0xff]
        %v2597 = vld [vmem:[%s860 + $0x60] sm:$0xff]
        %v2598 = vld [vmem:[%s860 + $0x70] sm:$0xff]
        %v2599 = vld [vmem:[%s860 + $0x1] sm:$0xff]
        %v2600 = vld [vmem:[%s860 + $0x11] sm:$0xff]
        %v2601 = vld [vmem:[%s860 + $0x21] sm:$0xff]
        %v2602 = vld [vmem:[%s860 + $0x31] sm:$0xff]
        %v2603 = vld [vmem:[%s860 + $0x41] sm:$0xff]
        %v2604 = vld [vmem:[%s860 + $0x51] sm:$0xff]
        %v2605 = vld [vmem:[%s860 + $0x61] sm:$0xff]
        %v2606 = vld [vmem:[%s860 + $0x71] sm:$0xff]
        %v2607 = vld [vmem:[%s860 + $0x2] sm:$0xff]
        %v2608 = vld [vmem:[%s860 + $0x12] sm:$0xff]
        %v2609 = vld [vmem:[%s860 + $0x22] sm:$0xff]
        %v2610 = vld [vmem:[%s860 + $0x32] sm:$0xff]
        %v2611 = vld [vmem:[%s860 + $0x42] sm:$0xff]
        %v2612 = vld [vmem:[%s860 + $0x52] sm:$0xff]
        %v2613 = vld [vmem:[%s860 + $0x62] sm:$0xff]
        %v2614 = vld [vmem:[%s860 + $0x72] sm:$0xff]
        %v2615 = vld [vmem:[%s917] sm:$0xff]
        %v2616 = vld [vmem:[%s917 + $0x10] sm:$0xff]
        %v2617 = vld [vmem:[%s917 + $0x20] sm:$0xff]
        %v2618 = vld [vmem:[%s917 + $0x30] sm:$0xff]
        %v2619 = vld [vmem:[%s917 + $0x40] sm:$0xff]
        %v2620 = vld [vmem:[%s917 + $0x50] sm:$0xff]
        %v2621 = vld [vmem:[%s917 + $0x60] sm:$0xff]
        %v2622 = vld [vmem:[%s917 + $0x70] sm:$0xff]
        %v2623 = vld [vmem:[%s917 + $0x1] sm:$0xff]
        %v2624 = vld [vmem:[%s917 + $0x11] sm:$0xff]
        %v2625 = vld [vmem:[%s917 + $0x21] sm:$0xff]
        %v2626 = vld [vmem:[%s917 + $0x31] sm:$0xff]
        %v2627 = vld [vmem:[%s917 + $0x41] sm:$0xff]
        %v2628 = vld [vmem:[%s917 + $0x51] sm:$0xff]
        %v2629 = vld [vmem:[%s917 + $0x61] sm:$0xff]
        %v2630 = vld [vmem:[%s917 + $0x71] sm:$0xff]
        %v2631 = vld [vmem:[%s917 + $0x2] sm:$0xff]
        %v2632 = vld [vmem:[%s917 + $0x12] sm:$0xff]
        %v2633 = vld [vmem:[%s917 + $0x22] sm:$0xff]
        %v2634 = vld [vmem:[%s917 + $0x32] sm:$0xff]
        %v2635 = vld [vmem:[%s917 + $0x42] sm:$0xff]
        %v2636 = vld [vmem:[%s917 + $0x52] sm:$0xff]
        %v2637 = vld [vmem:[%s917 + $0x62] sm:$0xff]
        %v2638 = vld [vmem:[%s917 + $0x72] sm:$0xff]
        %2647 = vrot.lane.b32.xlu0 %v2575, 32
        %v2648 = vpop.permute.xlu0 %2647
        %2649 = vrot.lane.b32.xlu0 %v2576, 32
        %v2650 = vpop.permute.xlu0 %2649
        %2651 = vrot.lane.b32.xlu0 %v2577, 32
        %v2652 = vpop.permute.xlu0 %2651
        %2653 = vrot.lane.b32.xlu0 %v2578, 32
        %v2654 = vpop.permute.xlu0 %2653
        %2655 = vrot.lane.b32.xlu0 %v2579, 32
        %v2656 = vpop.permute.xlu0 %2655
        %2657 = vrot.lane.b32.xlu0 %v2580, 32
        %v2658 = vpop.permute.xlu0 %2657
        %2659 = vrot.lane.b32.xlu0 %v2581, 32
        %v2660 = vpop.permute.xlu0 %2659
        %2661 = vrot.lane.b32.xlu0 %v2582, 32
        %v2662 = vpop.permute.xlu0 %2661
        %2679 = vrot.lane.b32.xlu0 %v2583, 64
        %v2680 = vpop.permute.xlu0 %2679
        %2681 = vrot.lane.b32.xlu0 %v2584, 64
        %v2682 = vpop.permute.xlu0 %2681
        %2683 = vrot.lane.b32.xlu0 %v2585, 64
        %v2684 = vpop.permute.xlu0 %2683
        %2685 = vrot.lane.b32.xlu0 %v2586, 64
        %v2686 = vpop.permute.xlu0 %2685
        %2687 = vrot.lane.b32.xlu0 %v2587, 64
        %v2688 = vpop.permute.xlu0 %2687
        %2689 = vrot.lane.b32.xlu0 %v2588, 64
        %v2690 = vpop.permute.xlu0 %2689
        %2691 = vrot.lane.b32.xlu0 %v2589, 64
        %v2692 = vpop.permute.xlu0 %2691
        %2693 = vrot.lane.b32.xlu0 %v2590, 64
        %v2694 = vpop.permute.xlu0 %2693
        %2711 = vrot.lane.b32.xlu0 %v2591, 96
        %v2712 = vpop.permute.xlu0 %2711
        %2713 = vrot.lane.b32.xlu0 %v2592, 96
        %v2714 = vpop.permute.xlu0 %2713
        %2715 = vrot.lane.b32.xlu0 %v2593, 96
        %v2716 = vpop.permute.xlu0 %2715
        %2717 = vrot.lane.b32.xlu0 %v2594, 96
        %v2718 = vpop.permute.xlu0 %2717
        %2719 = vrot.lane.b32.xlu0 %v2595, 96
        %v2720 = vpop.permute.xlu0 %2719
        %2721 = vrot.lane.b32.xlu0 %v2596, 96
        %v2722 = vpop.permute.xlu0 %2721
        %2723 = vrot.lane.b32.xlu0 %v2597, 96
        %v2724 = vpop.permute.xlu0 %2723
        %2725 = vrot.lane.b32.xlu0 %v2598, 96
        %v2726 = vpop.permute.xlu0 %2725
        %2743 = vrot.lane.b32.xlu0 %v2607, 32
        %v2744 = vpop.permute.xlu0 %2743
        %2745 = vrot.lane.b32.xlu0 %v2608, 32
        %v2746 = vpop.permute.xlu0 %2745
        %2747 = vrot.lane.b32.xlu0 %v2609, 32
        %v2748 = vpop.permute.xlu0 %2747
        %2749 = vrot.lane.b32.xlu0 %v2610, 32
        %v2750 = vpop.permute.xlu0 %2749
        %2751 = vrot.lane.b32.xlu0 %v2611, 32
        %v2752 = vpop.permute.xlu0 %2751
        %2753 = vrot.lane.b32.xlu0 %v2612, 32
        %v2754 = vpop.permute.xlu0 %2753
        %2755 = vrot.lane.b32.xlu0 %v2613, 32
        %v2756 = vpop.permute.xlu0 %2755
        %2757 = vrot.lane.b32.xlu0 %v2614, 32
        %v2758 = vpop.permute.xlu0 %2757
        %2775 = vrot.lane.b32.xlu0 %v2615, 64
        %v2776 = vpop.permute.xlu0 %2775
        %2777 = vrot.lane.b32.xlu0 %v2616, 64
        %v2778 = vpop.permute.xlu0 %2777
        %2779 = vrot.lane.b32.xlu0 %v2617, 64
        %v2780 = vpop.permute.xlu0 %2779
        %2781 = vrot.lane.b32.xlu0 %v2618, 64
        %v2782 = vpop.permute.xlu0 %2781
        %2783 = vrot.lane.b32.xlu0 %v2619, 64
        %v2784 = vpop.permute.xlu0 %2783
        %2785 = vrot.lane.b32.xlu0 %v2620, 64
        %v2786 = vpop.permute.xlu0 %2785
        %2787 = vrot.lane.b32.xlu0 %v2621, 64
        %v2788 = vpop.permute.xlu0 %2787
        %2789 = vrot.lane.b32.xlu0 %v2622, 64
        %v2790 = vpop.permute.xlu0 %2789
        %2807 = vrot.lane.b32.xlu0 %v2623, 96
        %v2808 = vpop.permute.xlu0 %2807
        %2809 = vrot.lane.b32.xlu0 %v2624, 96
        %v2810 = vpop.permute.xlu0 %2809
        %2811 = vrot.lane.b32.xlu0 %v2625, 96
        %v2812 = vpop.permute.xlu0 %2811
        %2813 = vrot.lane.b32.xlu0 %v2626, 96
        %v2814 = vpop.permute.xlu0 %2813
        %2815 = vrot.lane.b32.xlu0 %v2627, 96
        %v2816 = vpop.permute.xlu0 %2815
        %2817 = vrot.lane.b32.xlu0 %v2628, 96
        %v2818 = vpop.permute.xlu0 %2817
        %2819 = vrot.lane.b32.xlu0 %v2629, 96
        %v2820 = vpop.permute.xlu0 %2819
        %2821 = vrot.lane.b32.xlu0 %v2630, 96
        %v2822 = vpop.permute.xlu0 %2821
        %v2831 = vsel %vm618, %v2567, %v2648
        %v2832 = vsel %vm618, %v2568, %v2650
        %v2833 = vsel %vm618, %v2569, %v2652
        %v2834 = vsel %vm618, %v2570, %v2654
        %v2835 = vsel %vm618, %v2571, %v2656
        %v2836 = vsel %vm618, %v2572, %v2658
        %v2837 = vsel %vm618, %v2573, %v2660
        %v2838 = vsel %vm618, %v2574, %v2662
        %v2839 = vsel %vm1142, %v2831, %v2680
        %v2840 = vsel %vm1142, %v2832, %v2682
        %v2841 = vsel %vm1142, %v2833, %v2684
        %v2842 = vsel %vm1142, %v2834, %v2686
        %v2843 = vsel %vm1142, %v2835, %v2688
        %v2844 = vsel %vm1142, %v2836, %v2690
        %v2845 = vsel %vm1142, %v2837, %v2692
        %v2846 = vsel %vm1142, %v2838, %v2694
        %v2847 = vsel %vm1151, %v2839, %v2712
        %v2848 = vsel %vm1151, %v2840, %v2714
        %v2849 = vsel %vm1151, %v2841, %v2716
        %v2850 = vsel %vm1151, %v2842, %v2718
        %v2851 = vsel %vm1151, %v2843, %v2720
        %v2852 = vsel %vm1151, %v2844, %v2722
        %v2853 = vsel %vm1151, %v2845, %v2724
        %v2854 = vsel %vm1151, %v2846, %v2726
        %v2855 = vsel %vm618, %v2599, %v2744
        %v2856 = vsel %vm618, %v2600, %v2746
        %v2857 = vsel %vm618, %v2601, %v2748
        %v2858 = vsel %vm618, %v2602, %v2750
        %v2859 = vsel %vm618, %v2603, %v2752
        %v2860 = vsel %vm618, %v2604, %v2754
        %v2861 = vsel %vm618, %v2605, %v2756
        %v2862 = vsel %vm618, %v2606, %v2758
        %v2863 = vsel %vm1142, %v2855, %v2776
        %v2864 = vsel %vm1142, %v2856, %v2778
        %v2865 = vsel %vm1142, %v2857, %v2780
        %v2866 = vsel %vm1142, %v2858, %v2782
        %v2867 = vsel %vm1142, %v2859, %v2784
        %v2868 = vsel %vm1142, %v2860, %v2786
        %v2869 = vsel %vm1142, %v2861, %v2788
        %v2870 = vsel %vm1142, %v2862, %v2790
        %v2871 = vsel %vm1151, %v2863, %v2808
        %v2872 = vsel %vm1151, %v2864, %v2810
        %v2873 = vsel %vm1151, %v2865, %v2812
        %v2874 = vsel %vm1151, %v2866, %v2814
        %v2875 = vsel %vm1151, %v2867, %v2816
        %v2876 = vsel %vm1151, %v2868, %v2818
        %v2877 = vsel %vm1151, %v2869, %v2820
        %v2878 = vsel %vm1151, %v2870, %v2822
        %v2879 = vld [vmem:[%s18] sm:$0xff]
        %v2880 = vld [vmem:[%s18 + $0x8] sm:$0xff]
        %v2881 = vld [vmem:[%s18 + $0x10] sm:$0xff]
        %v2882 = vld [vmem:[%s18 + $0x18] sm:$0xff]
        %v2883 = vld [vmem:[%s18 + $0x20] sm:$0xff]
        %v2884 = vld [vmem:[%s18 + $0x28] sm:$0xff]
        %v2885 = vld [vmem:[%s18 + $0x30] sm:$0xff]
        %v2886 = vld [vmem:[%s18 + $0x38] sm:$0xff]
        %v2887 = vld [vmem:[%s18 + $0x40] sm:$0xff]
        %v2888 = vld [vmem:[%s18 + $0x48] sm:$0xff]
        %v2889 = vld [vmem:[%s18 + $0x50] sm:$0xff]
        %v2890 = vld [vmem:[%s18 + $0x58] sm:$0xff]
        %v2891 = vld [vmem:[%s18 + $0x60] sm:$0xff]
        %v2892 = vld [vmem:[%s18 + $0x68] sm:$0xff]
        %v2893 = vld [vmem:[%s18 + $0x70] sm:$0xff]
        %v2894 = vld [vmem:[%s18 + $0x78] sm:$0xff]
        %v2895 = vld [vmem:[%s18 + $0x80] sm:$0xff]
        %v2896 = vld [vmem:[%s18 + $0x88] sm:$0xff]
        %v2897 = vld [vmem:[%s18 + $0x90] sm:$0xff]
        %v2898 = vld [vmem:[%s18 + $0x98] sm:$0xff]
        %v2899 = vld [vmem:[%s18 + $0xa0] sm:$0xff]
        %v2900 = vld [vmem:[%s18 + $0xa8] sm:$0xff]
        %v2901 = vld [vmem:[%s18 + $0xb0] sm:$0xff]
        %v2902 = vld [vmem:[%s18 + $0xb8] sm:$0xff]
        %v2903 = vld [vmem:[%s18 + $0xc0] sm:$0xff]
        %v2904 = vld [vmem:[%s18 + $0xc8] sm:$0xff]
        %v2905 = vld [vmem:[%s18 + $0xd0] sm:$0xff]
        %v2906 = vld [vmem:[%s18 + $0xd8] sm:$0xff]
        %v2907 = vld [vmem:[%s18 + $0xe0] sm:$0xff]
        %v2908 = vld [vmem:[%s18 + $0xe8] sm:$0xff]
        %v2909 = vld [vmem:[%s18 + $0xf0] sm:$0xff]
        %v2910 = vld [vmem:[%s18 + $0xf8] sm:$0xff]
        %v2911 = vld [vmem:[%s18 + $0x100] sm:$0xff]
        %v2912 = vld [vmem:[%s18 + $0x108] sm:$0xff]
        %v2913 = vld [vmem:[%s18 + $0x110] sm:$0xff]
        %v2914 = vld [vmem:[%s18 + $0x118] sm:$0xff]
        %v2916 = vsel %vm618, %v2631, 0
        %v2919 = vsel %vm618, %v2632, 0
        %v2922 = vsel %vm618, %v2633, 0
        %v2925 = vsel %vm618, %v2634, 0
        %v2928 = vsel %vm618, %v2635, 0
        %v2931 = vsel %vm618, %v2636, 0
        %v2934 = vsel %vm618, %v2637, 0
        %v2937 = vsel %vm618, %v2638, 0
        %2939 = vmatprep.subr.mxu0 0.0
        %2940 = vmatpush1.msra.mxu0 %v2879
        %2941 = vmatprep.subr.mxu0 0.0
        %2942 = vmatpush1.msra.mxu0 %v2880
        %2943 = vmatprep.subr.mxu0 0.0
        %2944 = vmatpush1.msra.mxu0 %v2881
        %2945 = vmatprep.subr.mxu0 0.0
        %2946 = vmatpush1.msra.mxu0 %v2882
        %2947 = vmatprep.subr.mxu0 0.0
        %2948 = vmatpush1.msra.mxu0 %v2883
        %2949 = vmatprep.subr.mxu0 0.0
        %2950 = vmatpush1.msra.mxu0 %v2884
        %2951 = vmatprep.subr.mxu0 0.0
        %2952 = vmatpush1.msra.mxu0 %v2885
        %2953 = vmatprep.subr.mxu0 0.0
        %2954 = vmatpush1.msra.mxu0 %v2886
        %2955 = vmatprep.subr.mxu0 0.0
        %2956 = vmatpush1.msra.mxu0 %v2887
        %2957 = vmatprep.subr.mxu0 0.0
        %2958 = vmatpush1.msra.mxu0 %v2888
        %2959 = vmatprep.subr.mxu0 0.0
        %2960 = vmatpush1.msra.mxu0 %v2889
        %2961 = vmatprep.subr.mxu0 0.0
        %2962 = vmatpush1.msra.mxu0 %v2890
        %2963 = vmatprep.subr.mxu0 0.0
        %2964 = vmatpush1.msra.mxu0 %v2891
        %2965 = vmatprep.subr.mxu0 0.0
        %2966 = vmatpush1.msra.mxu0 %v2892
        %2967 = vmatprep.subr.mxu0 0.0
        %2968 = vmatpush1.msra.mxu0 %v2893
        %2969 = vmatprep.subr.mxu0 0.0
        %2970 = vmatpush1.msra.mxu0 %v2894
        %2971 = vmatprep.subr.mxu0 0.0
        %2972 = vmatpush1.msra.mxu0 %v2895
        %2973 = vmatprep.subr.mxu0 0.0
        %2974 = vmatpush1.msra.mxu0 %v2896
        %2975 = vmatprep.subr.mxu0 0.0
        %2976 = vmatpush1.msra.mxu0 %v2897
        %2977 = vmatprep.subr.mxu0 0.0
        %2978 = vmatpush1.msra.mxu0 %v2898
        %2979 = vmatprep.subr.mxu0 0.0
        %2980 = vmatpush1.msra.mxu0 %v2899
        %2981 = vmatprep.subr.mxu0 0.0
        %2982 = vmatpush1.msra.mxu0 %v2900
        %2983 = vmatprep.subr.mxu0 0.0
        %2984 = vmatpush1.msra.mxu0 %v2901
        %2985 = vmatprep.subr.mxu0 0.0
        %2986 = vmatpush1.msra.mxu0 %v2902
        %2987 = vmatprep.subr.mxu0 0.0
        %2988 = vmatpush1.msra.mxu0 %v2903
        %2989 = vmatprep.subr.mxu0 0.0
        %2990 = vmatpush1.msra.mxu0 %v2904
        %2991 = vmatprep.subr.mxu0 0.0
        %2992 = vmatpush1.msra.mxu0 %v2905
        %2993 = vmatprep.subr.mxu0 0.0
        %2994 = vmatpush1.msra.mxu0 %v2906
        %2995 = vmatprep.subr.mxu0 0.0
        %2996 = vmatpush1.msra.mxu0 %v2907
        %2997 = vmatprep.subr.mxu0 0.0
        %2998 = vmatpush1.msra.mxu0 %v2908
        %2999 = vmatprep.subr.mxu0 0.0
        %3000 = vmatpush1.msra.mxu0 %v2909
        %3001 = vmatprep.subr.mxu0 0.0
        %3002 = vmatpush1.msra.mxu0 %v2910
        %3003 = vmatprep.mubr.f32.mxu0 %v2871
        %3004 = vmatmul.mubr.f32.gmra.mrb[0].mxu0 %v2847
        %v3005 = vpop.f32.mrb[0].mxu0
        %v3006 = vadd.f32 0.0, %v3005
        %v3007 = vpop.f32.mrb[0].mxu0
        %3008 = vmatprep.mubr.f32.mxu0 %v2872
        %3009 = vmatmul.mubr.f32.gmra.mrb[0].mxu0 %v2848
        %v3010 = vpop.f32.mrb[0].mxu0
        %v3011 = vadd.f32 0.0, %v3010
        %v3012 = vpop.f32.mrb[0].mxu0
        %3013 = vmatprep.mubr.f32.mxu0 %v2873
        %3014 = vmatmul.mubr.f32.gmra.mrb[0].mxu0 %v2849
        %v3015 = vpop.f32.mrb[0].mxu0
        %v3016 = vadd.f32 0.0, %v3015
        %v3017 = vpop.f32.mrb[0].mxu0
        %3018 = vmatprep.mubr.f32.mxu0 %v2874
        %3019 = vmatmul.mubr.f32.gmra.mrb[0].mxu0 %v2850
        %v3020 = vpop.f32.mrb[0].mxu0
        %v3021 = vadd.f32 0.0, %v3020
        %v3022 = vpop.f32.mrb[0].mxu0
        %3023 = vmatprep.mubr.f32.mxu0 %v2875
        %3024 = vmatmul.mubr.f32.gmra.mrb[0].mxu0 %v2851
        %v3025 = vpop.f32.mrb[0].mxu0
        %v3026 = vadd.f32 0.0, %v3025
        %v3027 = vpop.f32.mrb[0].mxu0
        %3028 = vmatprep.mubr.f32.mxu0 %v2876
        %3029 = vmatmul.mubr.f32.gmra.mrb[0].mxu0 %v2852
        %v3030 = vpop.f32.mrb[0].mxu0
        %v3031 = vadd.f32 0.0, %v3030
        %v3032 = vpop.f32.mrb[0].mxu0
        %3033 = vmatprep.mubr.f32.mxu0 %v2877
        %3034 = vmatmul.mubr.f32.gmra.mrb[0].mxu0 %v2853
        %v3035 = vpop.f32.mrb[0].mxu0
        %v3036 = vadd.f32 0.0, %v3035
        %v3037 = vpop.f32.mrb[0].mxu0
        %3038 = vmatprep.mubr.f32.mxu0 %v2878
        %3039 = vmatmul.mubr.f32.gmra.mrb[0].mxu0 %v2854
        %v3040 = vpop.f32.mrb[0].mxu0
        %v3041 = vadd.f32 0.0, %v3040
        %v3042 = vpop.f32.mrb[0].mxu0
        %3043 = vdwg.mxu0
        %3044 = vmatprep.subr.mxu0 0.0
        %3045 = vmatpush1.msra.mxu0 %v2911
        %3046 = vmatprep.subr.mxu0 0.0
        %3047 = vmatpush1.msra.mxu0 %v2912
        %3048 = vmatprep.subr.mxu0 0.0
        %3049 = vmatpush1.msra.mxu0 %v2913
        %3050 = vmatprep.subr.mxu0 0.0
        %3051 = vmatpush1.msra.mxu0 %v2914
        %3052 = vmatprep.subr.mxu0 0.0
        %3053 = vmatpush1.msra.mxu0 0.0
        %3054 = vmatprep.subr.mxu0 0.0
        %3055 = vmatpush1.msra.mxu0 0.0
        %3056 = vmatprep.subr.mxu0 0.0
        %3057 = vmatpush1.msra.mxu0 0.0
        %3058 = vmatprep.subr.mxu0 0.0
        %3059 = vmatpush1.msra.mxu0 0.0
        %3060 = vmatprep.subr.mxu0 0.0
        %3061 = vmatpush1.msra.mxu0 0.0
        %3062 = vmatprep.subr.mxu0 0.0
        %3063 = vmatpush1.msra.mxu0 0.0
        %3064 = vmatprep.subr.mxu0 0.0
        %3065 = vmatpush1.msra.mxu0 0.0
        %3066 = vmatprep.subr.mxu0 0.0
        %3067 = vmatpush1.msra.mxu0 0.0
        %3068 = vmatprep.subr.mxu0 0.0
        %3069 = vmatpush1.msra.mxu0 0.0
        %3070 = vmatprep.subr.mxu0 0.0
        %3071 = vmatpush1.msra.mxu0 0.0
        %3072 = vmatprep.subr.mxu0 0.0
        %3073 = vmatpush1.msra.mxu0 0.0
        %3074 = vmatprep.subr.mxu0 0.0
        %3075 = vmatpush1.msra.mxu0 0.0
        %3076 = vmatprep.subr.mxu0 0.0
        %3077 = vmatpush1.msra.mxu0 0.0
        %3078 = vmatprep.subr.mxu0 0.0
        %3079 = vmatpush1.msra.mxu0 0.0
        %3080 = vmatprep.subr.mxu0 0.0
        %3081 = vmatpush1.msra.mxu0 0.0
        %3082 = vmatprep.subr.mxu0 0.0
        %3083 = vmatpush1.msra.mxu0 0.0
        %3084 = vmatprep.subr.mxu0 0.0
        %3085 = vmatpush1.msra.mxu0 0.0
        %3086 = vmatprep.subr.mxu0 0.0
        %3087 = vmatpush1.msra.mxu0 0.0
        %3088 = vmatprep.subr.mxu0 0.0
        %3089 = vmatpush1.msra.mxu0 0.0
        %3090 = vmatprep.subr.mxu0 0.0
        %3091 = vmatpush1.msra.mxu0 0.0
        %3092 = vmatprep.subr.mxu0 0.0
        %3093 = vmatpush1.msra.mxu0 0.0
        %3094 = vmatprep.subr.mxu0 0.0
        %3095 = vmatpush1.msra.mxu0 0.0
        %3096 = vmatprep.subr.mxu0 0.0
        %3097 = vmatpush1.msra.mxu0 0.0
        %3098 = vmatprep.subr.mxu0 0.0
        %3099 = vmatpush1.msra.mxu0 0.0
        %3100 = vmatprep.subr.mxu0 0.0
        %3101 = vmatpush1.msra.mxu0 0.0
        %3102 = vmatprep.subr.mxu0 0.0
        %3103 = vmatpush1.msra.mxu0 0.0
        %3104 = vmatprep.subr.mxu0 0.0
        %3105 = vmatpush1.msra.mxu0 0.0
        %3106 = vmatprep.subr.mxu0 0.0
        %3107 = vmatpush1.msra.mxu0 0.0
        %3108 = vmatprep.mubr.f32.mxu0 0.0
        %3109 = vmatmul.mubr.f32.gmra.mrb[0].mxu0 %v2916
        %v3110 = vpop.f32.mrb[0].mxu0
        %v3111 = vadd.f32 %v3006, %v3110
        %v3112 = vpop.f32.mrb[0].mxu0
        %3113 = vmatprep.mubr.f32.mxu0 0.0
        %3114 = vmatmul.mubr.f32.gmra.mrb[0].mxu0 %v2919
        %v3115 = vpop.f32.mrb[0].mxu0
        %v3116 = vadd.f32 %v3011, %v3115
        %v3117 = vpop.f32.mrb[0].mxu0
        %3118 = vmatprep.mubr.f32.mxu0 0.0
        %3119 = vmatmul.mubr.f32.gmra.mrb[0].mxu0 %v2922
        %v3120 = vpop.f32.mrb[0].mxu0
        %v3121 = vadd.f32 %v3016, %v3120
        %v3122 = vpop.f32.mrb[0].mxu0
        %3123 = vmatprep.mubr.f32.mxu0 0.0
        %3124 = vmatmul.mubr.f32.gmra.mrb[0].mxu0 %v2925
        %v3125 = vpop.f32.mrb[0].mxu0
        %v3126 = vadd.f32 %v3021, %v3125
        %v3127 = vpop.f32.mrb[0].mxu0
        %3128 = vmatprep.mubr.f32.mxu0 0.0
        %3129 = vmatmul.mubr.f32.gmra.mrb[0].mxu0 %v2928
        %v3130 = vpop.f32.mrb[0].mxu0
        %v3131 = vadd.f32 %v3026, %v3130
        %v3132 = vpop.f32.mrb[0].mxu0
        %3133 = vmatprep.mubr.f32.mxu0 0.0
        %3134 = vmatmul.mubr.f32.gmra.mrb[0].mxu0 %v2931
        %v3135 = vpop.f32.mrb[0].mxu0
        %v3136 = vadd.f32 %v3031, %v3135
        %v3137 = vpop.f32.mrb[0].mxu0
        %3138 = vmatprep.mubr.f32.mxu0 0.0
        %3139 = vmatmul.mubr.f32.gmra.mrb[0].mxu0 %v2934
        %v3140 = vpop.f32.mrb[0].mxu0
        %v3141 = vadd.f32 %v3036, %v3140
        %v3142 = vpop.f32.mrb[0].mxu0
        %3143 = vmatprep.mubr.f32.mxu0 0.0
        %3144 = vmatmul.mubr.f32.gmra.mrb[0].mxu0 %v2937
        %v3145 = vpop.f32.mrb[0].mxu0
        %v3146 = vadd.f32 %v3041, %v3145
        %v3147 = vpop.f32.mrb[0].mxu0
        %3148 = vdwg.mxu0
        %3157 = vrot.lane.b32.xlu0 %v3111, 24
        %v3158 = vpop.permute.xlu0 %3157
        %3159 = vrot.lane.b32.xlu0 %v3116, 24
        %v3160 = vpop.permute.xlu0 %3159
        %3161 = vrot.lane.b32.xlu0 %v3121, 24
        %v3162 = vpop.permute.xlu0 %3161
        %3163 = vrot.lane.b32.xlu0 %v3126, 24
        %v3164 = vpop.permute.xlu0 %3163
        %3165 = vrot.lane.b32.xlu0 %v3131, 24
        %v3166 = vpop.permute.xlu0 %3165
        %3167 = vrot.lane.b32.xlu0 %v3136, 24
        %v3168 = vpop.permute.xlu0 %3167
        %3169 = vrot.lane.b32.xlu0 %v3141, 24
        %v3170 = vpop.permute.xlu0 %3169
        %3171 = vrot.lane.b32.xlu0 %v3146, 24
        %v3172 = vpop.permute.xlu0 %3171
        %vm3181 = vcmask 261312
        %3182 = vst.msk [vmem:[%s595] sm:$0xff] %vm3181, %v3158
        %3183 = vst.msk [vmem:[%s595 + $0x8] sm:$0xff] %vm3181, %v3160
        %3184 = vst.msk [vmem:[%s595 + $0x10] sm:$0xff] %vm3181, %v3162
        %3185 = vst.msk [vmem:[%s595 + $0x18] sm:$0xff] %vm3181, %v3164
        %3186 = vst.msk [vmem:[%s595 + $0x20] sm:$0xff] %vm3181, %v3166
        %3187 = vst.msk [vmem:[%s595 + $0x28] sm:$0xff] %vm3181, %v3168
        %3188 = vst.msk [vmem:[%s595 + $0x30] sm:$0xff] %vm3181, %v3170
        %3189 = vst.msk [vmem:[%s595 + $0x38] sm:$0xff] %vm3181, %v3172
        %s3190 = sand.u32 %s445, 1
        %s3191 = scalar_lea.sflag [#allocation4], %s3190
        %s3192 = sand.u32 %s445, 1
        %s3193 = smul.addr %s3192, 64
        %s3194 = scalar_lea.vmem [#allocation3], %s3193
        // Predicated region
        $region97: #{tpu_custom_call.1} parent=95 // pred_check
          %p3195 = pneg %p455
        $region98: #{tpu_custom_call.1} parent=95 // pred_check_branch
          %3197 = sbr.rel (%p3195) target = $region100
        $region99: #{tpu_custom_call.1} parent=95 // pred_region
          %s3199 = ssub.s32 1024, 1024
          %3200 = vsyncadd %s3191, %s3199
          %s3201 = smul.addr %s33, 8
          %s3202 = smul.addr %s3201, 128
          %s3203 = scalar_lea.hbm %s19, %s3202
          %s3204 = sshll.u32 %s3194, 4
          %s3205 = int_to_ptr.vmem [resolvable:$true] %s3204
          %3210 = dma.vmem_to_hbm [thread:$0]  %s3205, 1024, %s3203, %s3191, 128, 128, 8
        $region100: #{tpu_custom_call.1} parent=95 // pred_fallthru
          _
      $region96: #{tpu_custom_call.1} parent=5 // pred_fallthru
        _
      %p3211 = scmp.le.s32.totalorder 2, %s28
      // Predicated region
      $region101: #{tpu_custom_call.1} parent=5 // pred_check
        %p3212 = pneg %p3211
      $region102: #{tpu_custom_call.1} parent=5 // pred_check_branch
        %3214 = sbr.rel (%p3212) target = $region104
      $region103: #{tpu_custom_call.1} parent=5 // pred_region
        %s3215 = ssub.s32 %s28, 2
        // Predicated region
        $region105: #{tpu_custom_call.1} parent=103 // pred_check
          %p3216 = pneg %p461
        $region106: #{tpu_custom_call.1} parent=103 // pred_check_branch
          %3218 = sbr.rel (%p3216) target = $region108
        $region107: #{tpu_custom_call.1} parent=103 // pred_region
          %s3219 = sand.u32 %s446, 1
          %s3220 = scalar_lea.sflag [#allocation4], %s3219
          %s3221 = sand.u32 %s446, 1
          %s3222 = smul.addr %s3221, 64
          %s3223 = scalar_lea.vmem [#allocation3], %s3222
          %3224 = dma.done %s3220, 1024
        $region108: #{tpu_custom_call.1} parent=103 // pred_fallthru
          _
      $region104: #{tpu_custom_call.1} parent=5 // pred_fallthru
        _
    $region6: #{tpu_custom_call.1} parent=1 // loop_footer
      %s32 = sadd.s32 1, %s28
    $region7: #{tpu_custom_call.1} parent=1 // loop_footer_branch
      %27 = sbr.rel target = $region3
    $region8: #{tpu_custom_call.1} parent=1 // loop_exit
      _
    %3225 = vsyncpa [#allocation4], 1
    %s3226 = scalar_lea.sflag [#allocation4], 1
    %3227 = vsyncpa %s3226, 1

</llo_original>
